<compile_context>
chip_gen: v7x
topology: tpu7x:2x2x1
jax: 0.10.0
libtpu: 0.0.40
codegen_flags: <defaults>
</compile_context>

<pallas_src>
import functools

import numpy as np
import jax
import jax.numpy as jnp
from jax.experimental import pallas as pl
from jax.experimental.pallas import tpu as pltpu

EPS = 1e-5   # eps of BatchNorm2d / InstanceNorm2d

_CIN, _COUT = 3, 8
# offsets into the packed 1-D parameter vector (all f32).  b_bn is deliberately
# NOT packed: BatchNorm's centering and beta cancel exactly under the following
# InstanceNorm mean subtraction, so the kernel never needs it.
_W1 = 0
_W2 = _W1 + _CIN * _COUT          # 24
_W3 = _W2 + _CIN * _COUT          # 48
_B1 = _W3 + _COUT * _COUT         # 112
_B2 = _B1 + _COUT                 # 120
_B3 = _B2 + _COUT                 # 128
_GBN = _B3 + _COUT                # 136
_GIN = _GBN + _COUT               # 144
_BIN = _GIN + _COUT               # 152
_NPRM = _BIN + _COUT              # 160


def _pack_params(p):
    """Flatten every needed weight / bias / affine param into one 1-D f32 vector (SMEM)."""
    return jnp.concatenate([
        p['w1'].reshape(-1), p['w2'].reshape(-1), p['w3'].reshape(-1),
        p['b1'].reshape(-1), p['b2'].reshape(-1), p['b3'].reshape(-1),
        p['g_bn'].reshape(-1), p['g_in'].reshape(-1), p['b_in'].reshape(-1),
    ]).astype(jnp.float32)


def _fused_kernel(prm_ref, x1_ref, x2_ref, out_ref, ring_ref, v7_scr, *, n, s0, s1):
    """conv1+conv2+add + BN(train) fused into IN + sigmoid + conv3, interior only.

    prm_ref  : (160,) f32 SMEM packed parameters
    x refs   : (CIN*N, Sp) f32 VMEM, channel-major interior slabs (zero-padded lanes)
    out_ref  : (COUT*N, Sp) f32 VMEM, final conv3 interior (b3 included)
    ring_ref : (N, COUT) f32 VMEM, constant conv3 output ring value per (n, d)
    v7_scr   : (COUT*N, Sp) f32 VMEM scratch staging the sigmoid activations
    """
    sp = x1_ref.shape[1]
    pad = sp - s0                    # zero-padded lanes; there acc == c0 exactly
    border = s1 - s0                 # constant conv-padding ring pixel count
    corr = float(border - pad)       # analytic correction swapping pad-lanes for the ring
    inv_nb = 1.0 / float(n * s1)     # BatchNorm (train) count: N*(H+2)*(W+2)
    inv_ni = 1.0 / float(s1)         # InstanceNorm count: (H+2)*(W+2)

    v7b = []                         # per-channel (N,1) sigmoid of the constant border
    for d in range(_COUT):
        # --- conv1 + conv2 + add: VPU scalar*vector FMAs (channels far too small for MXU).
        c0 = prm_ref[_B1 + d] + prm_ref[_B2 + d]            # constant border value of v3
        acc = (prm_ref[_W1 + d] * x1_ref[0:n, :]
               + prm_ref[_W2 + d] * x2_ref[0:n, :])
        for c in range(1, _CIN):
            acc = acc + prm_ref[_W1 + c * _COUT + d] * x1_ref[c * n:(c + 1) * n, :]
            acc = acc + prm_ref[_W2 + c * _COUT + d] * x2_ref[c * n:(c + 1) * n, :]
        acc = acc + c0

        # TODO(synk): v4 = LayerNorm(8)(v3) in the PyTorch module is dead code
        # (its result is never used), so it is not emitted.

        # --- shared one-pass Sum / SumSq statistics (interior) + analytic constant
        #     border correction.  NOTE: E[x^2]-E[x]^2 has mild cancellation risk in
        #     f32; acceptable for the O(1) activations here.
        acc2 = acc * acc
        s_row = jnp.sum(acc, axis=1, keepdims=True) + corr * c0            # (N,1)
        q_row = jnp.sum(acc2, axis=1, keepdims=True) + corr * (c0 * c0)    # (N,1)
        s_all = jnp.sum(s_row, axis=0, keepdims=True)                      # (1,1)
        q_all = jnp.sum(q_row, axis=0, keepdims=True)                      # (1,1)

        # BatchNorm(train) fused into InstanceNorm: the centering and beta_bn cancel
        # under IN's mean subtraction; only s_b survives inside IN's variance.
        mu_b = s_all * inv_nb
        var_b = q_all * inv_nb - mu_b * mu_b
        s_b = prm_ref[_GBN + d] * jax.lax.rsqrt(var_b + EPS)               # (1,1)

        mu_i = s_row * inv_ni                                              # (N,1)
        var_i = q_row * inv_ni - mu_i * mu_i
        row_scale = (prm_ref[_GIN + d] * s_b) * jax.lax.rsqrt(s_b * s_b * var_i + EPS)

        b_in = prm_ref[_BIN + d]
        v6 = (acc - mu_i) * row_scale + b_in
        # sigmoid via one exact EUP op: sigmoid(x) = 0.5 + 0.5*tanh(0.5*x)
        v7_scr[d * n:(d + 1) * n, :] = 0.5 + 0.5 * jnp.tanh(0.5 * v6)

        v6b = (c0 - mu_i) * row_scale + b_in                               # (N,1)
        v7b.append(0.5 + 0.5 * jnp.tanh(0.5 * v6b))

    # --- conv3 (1x1) on the interior + the constant output ring (per-(n,d) scalar).
    for d in range(_COUT):
        b3 = prm_ref[_B3 + d]
        y = prm_ref[_W3 + d] * v7_scr[0:n, :]
        r = prm_ref[_W3 + d] * v7b[0]
        for c in range(1, _COUT):
            w = prm_ref[_W3 + c * _COUT + d]
            y = y + w * v7_scr[c * n:(c + 1) * n, :]
            r = r + w * v7b[c]
        out_ref[d * n:(d + 1) * n, :] = y + b3
        ring_ref[:, d:d + 1] = r + b3


def model_forward(x1, x2, p):
    """x1, x2: NCHW float32 (N, 3, H, W). Returns NCHW float32 (N, 8, H+4, W+4)."""
    N, Cin, H, W = x1.shape
    assert Cin == _CIN
    S0 = H * W                              # interior pixel count (what the kernel sees)
    Sp = ((S0 + 127) // 128) * 128          # lane-pad to x128 (no-op for 16x16 / 64x64)
    S1 = (H + 2) * (W + 2)                  # conv1/conv2 output grid (padding=1)

    def prep(x):
        # channel-major 2-D slab (C*N, Sp): contiguous per-channel planes, lane-dense.
        x = jnp.transpose(x, (1, 0, 2, 3)).reshape(_CIN * N, S0)
        if Sp != S0:
            x = jnp.pad(x, ((0, 0), (0, Sp - S0)))
        return x

    out_int, ring = pl.pallas_call(
        functools.partial(_fused_kernel, n=N, s0=S0, s1=S1),
        out_shape=(jax.ShapeDtypeStruct((_COUT * N, Sp), jnp.float32),
                   jax.ShapeDtypeStruct((N, _COUT), jnp.float32)),
        in_specs=[
            pl.BlockSpec(memory_space=pltpu.MemorySpace.SMEM),   # packed params
            pl.BlockSpec(memory_space=pltpu.MemorySpace.VMEM),   # x1 slab
            pl.BlockSpec(memory_space=pltpu.MemorySpace.VMEM),   # x2 slab
        ],
        out_specs=(pl.BlockSpec(memory_space=pltpu.MemorySpace.VMEM),
                   pl.BlockSpec(memory_space=pltpu.MemorySpace.VMEM)),
        scratch_shapes=[pltpu.VMEM((_COUT * N, Sp), jnp.float32)],
        # TODO(synk): at production sizes add a 'parallel' grid (channels / spatial
        # tiles) for v7x megacore and set vmem_limit_bytes explicitly; at 2x16x16
        # the per-step grid overhead would exceed the gain, so no grid here.
    )(_pack_params(p), prep(x1), prep(x2))

    # Output assembly (N, 8, H+4, W+4):
    #   outermost ring (conv3 over zero padding of v7)           -> exactly b3
    #   next ring (conv3 over the constant conv1/2 padding ring) -> per-(n,d) scalar `ring`
    #   interior HxW                                             -> kernel output
    inner = jnp.transpose(out_int[:, :S0].reshape(_COUT, N, H, W), (1, 0, 2, 3))
    out = jnp.broadcast_to(p['b3'].reshape(1, _COUT, 1, 1), (N, _COUT, H + 4, W + 4))
    ring_plane = jnp.broadcast_to(ring.reshape(N, _COUT, 1, 1), (N, _COUT, H + 2, W + 2))
    out = out.at[:, :, 1:H + 3, 1:W + 3].set(ring_plane)
    out = out.at[:, :, 2:H + 2, 2:W + 2].set(inner)
    return out


def reference_forward(x1, x2, p):
    """Pure-JAX reference with identical semantics (correctness check)."""
    def conv1x1(x, w, b):
        x = jnp.pad(x, ((0, 0), (0, 0), (1, 1), (1, 1)))
        return jnp.einsum('nchw,cd->ndhw', x, w) + b.reshape(1, -1, 1, 1)

    v1 = conv1x1(x1, p['w1'], p['b1'])
    v2 = conv1x1(x2, p['w2'], p['b2'])
    v3 = v1 + v2
    mu = v3.mean(axis=(0, 2, 3), keepdims=True)
    var = ((v3 - mu) ** 2).mean(axis=(0, 2, 3), keepdims=True)
    v5 = (v3 - mu) / jnp.sqrt(var + EPS) * p['g_bn'].reshape(1, -1, 1, 1) \
        + p['b_bn'].reshape(1, -1, 1, 1)
    mui = v5.mean(axis=(2, 3), keepdims=True)
    vari = ((v5 - mui) ** 2).mean(axis=(2, 3), keepdims=True)
    v6 = (v5 - mui) / jnp.sqrt(vari + EPS) * p['g_in'].reshape(1, -1, 1, 1) \
        + p['b_in'].reshape(1, -1, 1, 1)
    v7 = jax.nn.sigmoid(v6)
    return conv1x1(v7, p['w3'], p['b3'])


if __name__ == "__main__":
    key = jax.random.PRNGKey(0)
    ks = jax.random.split(key, 12)

    # Small shapes consistent with the module: batch=2, Cin=3 (fixed by conv1), spatial=16.
    N, Cin, H, W = 2, 3, 16, 16
    x1 = jax.random.normal(ks[0], (N, Cin, H, W), jnp.float32)
    x2 = jax.random.normal(ks[1], (N, Cin, H, W), jnp.float32)

    params = dict(
        w1=0.1 * jax.random.normal(ks[2], (Cin, _COUT), jnp.float32),
        b1=0.1 * jax.random.normal(ks[3], (_COUT,), jnp.float32),
        w2=0.1 * jax.random.normal(ks[4], (Cin, _COUT), jnp.float32),
        b2=0.1 * jax.random.normal(ks[5], (_COUT,), jnp.float32),
        # nontrivial affine params to exercise the BN/IN affine paths
        g_bn=1.0 + 0.1 * jax.random.normal(ks[8], (_COUT,), jnp.float32),
        b_bn=0.1 * jax.random.normal(ks[9], (_COUT,), jnp.float32),   # cancels analytically
        g_in=1.0 + 0.1 * jax.random.normal(ks[10], (_COUT,), jnp.float32),
        b_in=0.1 * jax.random.normal(ks[11], (_COUT,), jnp.float32),
        w3=0.1 * jax.random.normal(ks[6], (_COUT, _COUT), jnp.float32),
        b3=0.1 * jax.random.normal(ks[7], (_COUT,), jnp.float32),
    )

    fwd = jax.jit(model_forward)
    out = fwd(x1, x2, params)
    jax.block_until_ready(out)

    assert out.shape == (N, _COUT, H + 4, W + 4), out.shape
    ref = reference_forward(x1, x2, params)
    # exact tanh-sigmoid lets the tolerance be tight; slack covers the one-pass
    # E[x^2]-E[x]^2 variance reassociation in f32.
    np.testing.assert_allclose(np.asarray(out), np.asarray(ref), rtol=2e-4, atol=2e-4)

    print("KERNEL_OK")
</pallas_src>

<mosaic_0001>
module attributes {stable_mosaic.version = 11 : i64} {
  func.func @_fused_kernel(%arg0: memref<160xf32, #tpu.memory_space<smem>>, %arg1: memref<6x256xf32, #tpu.memory_space<vmem>>, %arg2: memref<6x256xf32, #tpu.memory_space<vmem>>, %arg3: memref<16x256xf32, #tpu.memory_space<vmem>>, %arg4: memref<2x8xf32, #tpu.memory_space<vmem>>, %arg5: memref<16x256xf32, #tpu.memory_space<vmem>>) attributes {dimension_semantics = [], scalar_prefetch = 0 : i64, scratch_operands = 1 : i64, tpu.core_type = #tpu.core_type<tc>} {
    %c112 = arith.constant 112 : index
    %0 = memref.load %arg0[%c112] : memref<160xf32, #tpu.memory_space<smem>>
    %c120 = arith.constant 120 : index
    %1 = memref.load %arg0[%c120] : memref<160xf32, #tpu.memory_space<smem>>
    %2 = arith.addf %0, %1 : f32
    %c0 = arith.constant 0 : index
    %3 = memref.load %arg0[%c0] : memref<160xf32, #tpu.memory_space<smem>>
    %c0_0 = arith.constant 0 : index
    %c0_1 = arith.constant 0 : index
    %4 = vector.load %arg1[%c0_0, %c0_1] : memref<6x256xf32, #tpu.memory_space<vmem>>, vector<2x256xf32>
    %5 = vector.broadcast %3 : f32 to vector<2x256xf32>
    %6 = arith.mulf %5, %4 : vector<2x256xf32>
    %c24 = arith.constant 24 : index
    %7 = memref.load %arg0[%c24] : memref<160xf32, #tpu.memory_space<smem>>
    %c0_2 = arith.constant 0 : index
    %c0_3 = arith.constant 0 : index
    %8 = vector.load %arg2[%c0_2, %c0_3] : memref<6x256xf32, #tpu.memory_space<vmem>>, vector<2x256xf32>
    %9 = vector.broadcast %7 : f32 to vector<2x256xf32>
    %10 = arith.mulf %9, %8 : vector<2x256xf32>
    %11 = arith.addf %6, %10 : vector<2x256xf32>
    %c8 = arith.constant 8 : index
    %12 = memref.load %arg0[%c8] : memref<160xf32, #tpu.memory_space<smem>>
    %c2 = arith.constant 2 : index
    %c0_4 = arith.constant 0 : index
    %13 = vector.load %arg1[%c2, %c0_4] : memref<6x256xf32, #tpu.memory_space<vmem>>, vector<2x256xf32>
    %14 = vector.broadcast %12 : f32 to vector<2x256xf32>
    %15 = arith.mulf %14, %13 : vector<2x256xf32>
    %16 = arith.addf %11, %15 : vector<2x256xf32>
    %c32 = arith.constant 32 : index
    %17 = memref.load %arg0[%c32] : memref<160xf32, #tpu.memory_space<smem>>
    %c2_5 = arith.constant 2 : index
    %c0_6 = arith.constant 0 : index
    %18 = vector.load %arg2[%c2_5, %c0_6] : memref<6x256xf32, #tpu.memory_space<vmem>>, vector<2x256xf32>
    %19 = vector.broadcast %17 : f32 to vector<2x256xf32>
    %20 = arith.mulf %19, %18 : vector<2x256xf32>
    %21 = arith.addf %16, %20 : vector<2x256xf32>
    %c16 = arith.constant 16 : index
    %22 = memref.load %arg0[%c16] : memref<160xf32, #tpu.memory_space<smem>>
    %c4 = arith.constant 4 : index
    %c0_7 = arith.constant 0 : index
    %23 = vector.load %arg1[%c4, %c0_7] : memref<6x256xf32, #tpu.memory_space<vmem>>, vector<2x256xf32>
    %24 = vector.broadcast %22 : f32 to vector<2x256xf32>
    %25 = arith.mulf %24, %23 : vector<2x256xf32>
    %26 = arith.addf %21, %25 : vector<2x256xf32>
    %c40 = arith.constant 40 : index
    %27 = memref.load %arg0[%c40] : memref<160xf32, #tpu.memory_space<smem>>
    %c4_8 = arith.constant 4 : index
    %c0_9 = arith.constant 0 : index
    %28 = vector.load %arg2[%c4_8, %c0_9] : memref<6x256xf32, #tpu.memory_space<vmem>>, vector<2x256xf32>
    %29 = vector.broadcast %27 : f32 to vector<2x256xf32>
    %30 = arith.mulf %29, %28 : vector<2x256xf32>
    %31 = arith.addf %26, %30 : vector<2x256xf32>
    %32 = vector.broadcast %2 : f32 to vector<2x256xf32>
    %33 = arith.addf %31, %32 : vector<2x256xf32>
    %34 = arith.mulf %33, %33 : vector<2x256xf32>
    %cst = arith.constant dense<0.000000e+00> : vector<2xf32>
    %35 = vector.multi_reduction <add>, %33, %cst [1] : vector<2x256xf32> to vector<2xf32>
    %36 = vector.shape_cast %35 : vector<2xf32> to vector<2x1xf32>
    %cst_10 = arith.constant 6.800000e+01 : f32
    %37 = arith.mulf %cst_10, %2 : f32
    %38 = vector.broadcast %37 : f32 to vector<2x1xf32>
    %39 = arith.addf %36, %38 : vector<2x1xf32>
    %cst_11 = arith.constant dense<0.000000e+00> : vector<2xf32>
    %40 = vector.multi_reduction <add>, %34, %cst_11 [1] : vector<2x256xf32> to vector<2xf32>
    %41 = vector.shape_cast %40 : vector<2xf32> to vector<2x1xf32>
    %42 = arith.mulf %2, %2 : f32
    %cst_12 = arith.constant 6.800000e+01 : f32
    %43 = arith.mulf %cst_12, %42 : f32
    %44 = vector.broadcast %43 : f32 to vector<2x1xf32>
    %45 = arith.addf %41, %44 : vector<2x1xf32>
    %cst_13 = arith.constant dense<0.000000e+00> : vector<1xf32>
    %46 = vector.multi_reduction <add>, %39, %cst_13 [0] : vector<2x1xf32> to vector<1xf32>
    %47 = vector.shape_cast %46 : vector<1xf32> to vector<1x1xf32>
    %cst_14 = arith.constant dense<0.000000e+00> : vector<1xf32>
    %48 = vector.multi_reduction <add>, %45, %cst_14 [0] : vector<2x1xf32> to vector<1xf32>
    %49 = vector.shape_cast %48 : vector<1xf32> to vector<1x1xf32>
    %cst_15 = arith.constant 0.00154320989 : f32
    %50 = vector.broadcast %cst_15 : f32 to vector<1x1xf32>
    %51 = arith.mulf %47, %50 : vector<1x1xf32>
    %cst_16 = arith.constant 0.00154320989 : f32
    %52 = vector.broadcast %cst_16 : f32 to vector<1x1xf32>
    %53 = arith.mulf %49, %52 : vector<1x1xf32>
    %54 = arith.mulf %51, %51 : vector<1x1xf32>
    %55 = arith.subf %53, %54 : vector<1x1xf32>
    %c136 = arith.constant 136 : index
    %56 = memref.load %arg0[%c136] : memref<160xf32, #tpu.memory_space<smem>>
    %cst_17 = arith.constant 9.99999974E-6 : f32
    %57 = vector.broadcast %cst_17 : f32 to vector<1x1xf32>
    %58 = arith.addf %55, %57 : vector<1x1xf32>
    %59 = math.rsqrt %58 : vector<1x1xf32>
    %60 = vector.broadcast %56 : f32 to vector<1x1xf32>
    %61 = arith.mulf %60, %59 : vector<1x1xf32>
    %cst_18 = arith.constant 0.00308641978 : f32
    %62 = vector.broadcast %cst_18 : f32 to vector<2x1xf32>
    %63 = arith.mulf %39, %62 : vector<2x1xf32>
    %cst_19 = arith.constant 0.00308641978 : f32
    %64 = vector.broadcast %cst_19 : f32 to vector<2x1xf32>
    %65 = arith.mulf %45, %64 : vector<2x1xf32>
    %66 = arith.mulf %63, %63 : vector<2x1xf32>
    %67 = arith.subf %65, %66 : vector<2x1xf32>
    %c144 = arith.constant 144 : index
    %68 = memref.load %arg0[%c144] : memref<160xf32, #tpu.memory_space<smem>>
    %69 = vector.broadcast %68 : f32 to vector<1x1xf32>
    %70 = arith.mulf %69, %61 : vector<1x1xf32>
    %71 = arith.mulf %61, %61 : vector<1x1xf32>
    %72 = vector.broadcast %71 : vector<1x1xf32> to vector<2x1xf32>
    %73 = arith.mulf %72, %67 : vector<2x1xf32>
    %cst_20 = arith.constant 9.99999974E-6 : f32
    %74 = vector.broadcast %cst_20 : f32 to vector<2x1xf32>
    %75 = arith.addf %73, %74 : vector<2x1xf32>
    %76 = math.rsqrt %75 : vector<2x1xf32>
    %77 = vector.broadcast %70 : vector<1x1xf32> to vector<2x1xf32>
    %78 = arith.mulf %77, %76 : vector<2x1xf32>
    %c152 = arith.constant 152 : index
    %79 = memref.load %arg0[%c152] : memref<160xf32, #tpu.memory_space<smem>>
    %80 = vector.broadcast %63 : vector<2x1xf32> to vector<2x256xf32>
    %81 = arith.subf %33, %80 : vector<2x256xf32>
    %82 = vector.broadcast %78 : vector<2x1xf32> to vector<2x256xf32>
    %83 = arith.mulf %81, %82 : vector<2x256xf32>
    %84 = vector.broadcast %79 : f32 to vector<2x256xf32>
    %85 = arith.addf %83, %84 : vector<2x256xf32>
    %cst_21 = arith.constant 5.000000e-01 : f32
    %86 = vector.broadcast %cst_21 : f32 to vector<2x256xf32>
    %87 = arith.mulf %86, %85 : vector<2x256xf32>
    %88 = math.tanh %87 : vector<2x256xf32>
    %cst_22 = arith.constant 5.000000e-01 : f32
    %89 = vector.broadcast %cst_22 : f32 to vector<2x256xf32>
    %90 = arith.mulf %89, %88 : vector<2x256xf32>
    %cst_23 = arith.constant 5.000000e-01 : f32
    %91 = vector.broadcast %cst_23 : f32 to vector<2x256xf32>
    %92 = arith.addf %91, %90 : vector<2x256xf32>
    %c0_24 = arith.constant 0 : index
    %c0_25 = arith.constant 0 : index
    %93 = vector.load %arg5[%c0_24, %c0_25] : memref<16x256xf32, #tpu.memory_space<vmem>>, vector<2x256xf32>
    tpu.vector_store %arg5[%c0_24, %c0_25], %92 {strides = array<i32>} : memref<16x256xf32, #tpu.memory_space<vmem>>, vector<2x256xf32>,
    %94 = vector.broadcast %2 : f32 to vector<2x1xf32>
    %95 = arith.subf %94, %63 : vector<2x1xf32>
    %96 = arith.mulf %95, %78 : vector<2x1xf32>
    %97 = vector.broadcast %79 : f32 to vector<2x1xf32>
    %98 = arith.addf %96, %97 : vector<2x1xf32>
    %cst_26 = arith.constant 5.000000e-01 : f32
    %99 = vector.broadcast %cst_26 : f32 to vector<2x1xf32>
    %100 = arith.mulf %99, %98 : vector<2x1xf32>
    %101 = math.tanh %100 : vector<2x1xf32>
    %cst_27 = arith.constant 5.000000e-01 : f32
    %102 = vector.broadcast %cst_27 : f32 to vector<2x1xf32>
    %103 = arith.mulf %102, %101 : vector<2x1xf32>
    %cst_28 = arith.constant 5.000000e-01 : f32
    %104 = vector.broadcast %cst_28 : f32 to vector<2x1xf32>
    %105 = arith.addf %104, %103 : vector<2x1xf32>
    %c113 = arith.constant 113 : index
    %106 = memref.load %arg0[%c113] : memref<160xf32, #tpu.memory_space<smem>>
    %c121 = arith.constant 121 : index
    %107 = memref.load %arg0[%c121] : memref<160xf32, #tpu.memory_space<smem>>
    %108 = arith.addf %106, %107 : f32
    %c1 = arith.constant 1 : index
    %109 = memref.load %arg0[%c1] : memref<160xf32, #tpu.memory_space<smem>>
    %c0_29 = arith.constant 0 : index
    %c0_30 = arith.constant 0 : index
    %110 = vector.load %arg1[%c0_29, %c0_30] : memref<6x256xf32, #tpu.memory_space<vmem>>, vector<2x256xf32>
    %111 = vector.broadcast %109 : f32 to vector<2x256xf32>
    %112 = arith.mulf %111, %110 : vector<2x256xf32>
    %c25 = arith.constant 25 : index
    %113 = memref.load %arg0[%c25] : memref<160xf32, #tpu.memory_space<smem>>
    %c0_31 = arith.constant 0 : index
    %c0_32 = arith.constant 0 : index
    %114 = vector.load %arg2[%c0_31, %c0_32] : memref<6x256xf32, #tpu.memory_space<vmem>>, vector<2x256xf32>
    %115 = vector.broadcast %113 : f32 to vector<2x256xf32>
    %116 = arith.mulf %115, %114 : vector<2x256xf32>
    %117 = arith.addf %112, %116 : vector<2x256xf32>
    %c9 = arith.constant 9 : index
    %118 = memref.load %arg0[%c9] : memref<160xf32, #tpu.memory_space<smem>>
    %c2_33 = arith.constant 2 : index
    %c0_34 = arith.constant 0 : index
    %119 = vector.load %arg1[%c2_33, %c0_34] : memref<6x256xf32, #tpu.memory_space<vmem>>, vector<2x256xf32>
    %120 = vector.broadcast %118 : f32 to vector<2x256xf32>
    %121 = arith.mulf %120, %119 : vector<2x256xf32>
    %122 = arith.addf %117, %121 : vector<2x256xf32>
    %c33 = arith.constant 33 : index
    %123 = memref.load %arg0[%c33] : memref<160xf32, #tpu.memory_space<smem>>
    %c2_35 = arith.constant 2 : index
    %c0_36 = arith.constant 0 : index
    %124 = vector.load %arg2[%c2_35, %c0_36] : memref<6x256xf32, #tpu.memory_space<vmem>>, vector<2x256xf32>
    %125 = vector.broadcast %123 : f32 to vector<2x256xf32>
    %126 = arith.mulf %125, %124 : vector<2x256xf32>
    %127 = arith.addf %122, %126 : vector<2x256xf32>
    %c17 = arith.constant 17 : index
    %128 = memref.load %arg0[%c17] : memref<160xf32, #tpu.memory_space<smem>>
    %c4_37 = arith.constant 4 : index
    %c0_38 = arith.constant 0 : index
    %129 = vector.load %arg1[%c4_37, %c0_38] : memref<6x256xf32, #tpu.memory_space<vmem>>, vector<2x256xf32>
    %130 = vector.broadcast %128 : f32 to vector<2x256xf32>
    %131 = arith.mulf %130, %129 : vector<2x256xf32>
    %132 = arith.addf %127, %131 : vector<2x256xf32>
    %c41 = arith.constant 41 : index
    %133 = memref.load %arg0[%c41] : memref<160xf32, #tpu.memory_space<smem>>
    %c4_39 = arith.constant 4 : index
    %c0_40 = arith.constant 0 : index
    %134 = vector.load %arg2[%c4_39, %c0_40] : memref<6x256xf32, #tpu.memory_space<vmem>>, vector<2x256xf32>
    %135 = vector.broadcast %133 : f32 to vector<2x256xf32>
    %136 = arith.mulf %135, %134 : vector<2x256xf32>
    %137 = arith.addf %132, %136 : vector<2x256xf32>
    %138 = vector.broadcast %108 : f32 to vector<2x256xf32>
    %139 = arith.addf %137, %138 : vector<2x256xf32>
    %140 = arith.mulf %139, %139 : vector<2x256xf32>
    %cst_41 = arith.constant dense<0.000000e+00> : vector<2xf32>
    %141 = vector.multi_reduction <add>, %139, %cst_41 [1] : vector<2x256xf32> to vector<2xf32>
    %142 = vector.shape_cast %141 : vector<2xf32> to vector<2x1xf32>
    %cst_42 = arith.constant 6.800000e+01 : f32
    %143 = arith.mulf %cst_42, %108 : f32
    %144 = vector.broadcast %143 : f32 to vector<2x1xf32>
    %145 = arith.addf %142, %144 : vector<2x1xf32>
    %cst_43 = arith.constant dense<0.000000e+00> : vector<2xf32>
    %146 = vector.multi_reduction <add>, %140, %cst_43 [1] : vector<2x256xf32> to vector<2xf32>
    %147 = vector.shape_cast %146 : vector<2xf32> to vector<2x1xf32>
    %148 = arith.mulf %108, %108 : f32
    %cst_44 = arith.constant 6.800000e+01 : f32
    %149 = arith.mulf %cst_44, %148 : f32
    %150 = vector.broadcast %149 : f32 to vector<2x1xf32>
    %151 = arith.addf %147, %150 : vector<2x1xf32>
    %cst_45 = arith.constant dense<0.000000e+00> : vector<1xf32>
    %152 = vector.multi_reduction <add>, %145, %cst_45 [0] : vector<2x1xf32> to vector<1xf32>
    %153 = vector.shape_cast %152 : vector<1xf32> to vector<1x1xf32>
    %cst_46 = arith.constant dense<0.000000e+00> : vector<1xf32>
    %154 = vector.multi_reduction <add>, %151, %cst_46 [0] : vector<2x1xf32> to vector<1xf32>
    %155 = vector.shape_cast %154 : vector<1xf32> to vector<1x1xf32>
    %cst_47 = arith.constant 0.00154320989 : f32
    %156 = vector.broadcast %cst_47 : f32 to vector<1x1xf32>
    %157 = arith.mulf %153, %156 : vector<1x1xf32>
    %cst_48 = arith.constant 0.00154320989 : f32
    %158 = vector.broadcast %cst_48 : f32 to vector<1x1xf32>
    %159 = arith.mulf %155, %158 : vector<1x1xf32>
    %160 = arith.mulf %157, %157 : vector<1x1xf32>
    %161 = arith.subf %159, %160 : vector<1x1xf32>
    %c137 = arith.constant 137 : index
    %162 = memref.load %arg0[%c137] : memref<160xf32, #tpu.memory_space<smem>>
    %cst_49 = arith.constant 9.99999974E-6 : f32
    %163 = vector.broadcast %cst_49 : f32 to vector<1x1xf32>
    %164 = arith.addf %161, %163 : vector<1x1xf32>
    %165 = math.rsqrt %164 : vector<1x1xf32>
    %166 = vector.broadcast %162 : f32 to vector<1x1xf32>
    %167 = arith.mulf %166, %165 : vector<1x1xf32>
    %cst_50 = arith.constant 0.00308641978 : f32
    %168 = vector.broadcast %cst_50 : f32 to vector<2x1xf32>
    %169 = arith.mulf %145, %168 : vector<2x1xf32>
    %cst_51 = arith.constant 0.00308641978 : f32
    %170 = vector.broadcast %cst_51 : f32 to vector<2x1xf32>
    %171 = arith.mulf %151, %170 : vector<2x1xf32>
    %172 = arith.mulf %169, %169 : vector<2x1xf32>
    %173 = arith.subf %171, %172 : vector<2x1xf32>
    %c145 = arith.constant 145 : index
    %174 = memref.load %arg0[%c145] : memref<160xf32, #tpu.memory_space<smem>>
    %175 = vector.broadcast %174 : f32 to vector<1x1xf32>
    %176 = arith.mulf %175, %167 : vector<1x1xf32>
    %177 = arith.mulf %167, %167 : vector<1x1xf32>
    %178 = vector.broadcast %177 : vector<1x1xf32> to vector<2x1xf32>
    %179 = arith.mulf %178, %173 : vector<2x1xf32>
    %cst_52 = arith.constant 9.99999974E-6 : f32
    %180 = vector.broadcast %cst_52 : f32 to vector<2x1xf32>
    %181 = arith.addf %179, %180 : vector<2x1xf32>
    %182 = math.rsqrt %181 : vector<2x1xf32>
    %183 = vector.broadcast %176 : vector<1x1xf32> to vector<2x1xf32>
    %184 = arith.mulf %183, %182 : vector<2x1xf32>
    %c153 = arith.constant 153 : index
    %185 = memref.load %arg0[%c153] : memref<160xf32, #tpu.memory_space<smem>>
    %186 = vector.broadcast %169 : vector<2x1xf32> to vector<2x256xf32>
    %187 = arith.subf %139, %186 : vector<2x256xf32>
    %188 = vector.broadcast %184 : vector<2x1xf32> to vector<2x256xf32>
    %189 = arith.mulf %187, %188 : vector<2x256xf32>
    %190 = vector.broadcast %185 : f32 to vector<2x256xf32>
    %191 = arith.addf %189, %190 : vector<2x256xf32>
    %cst_53 = arith.constant 5.000000e-01 : f32
    %192 = vector.broadcast %cst_53 : f32 to vector<2x256xf32>
    %193 = arith.mulf %192, %191 : vector<2x256xf32>
    %194 = math.tanh %193 : vector<2x256xf32>
    %cst_54 = arith.constant 5.000000e-01 : f32
    %195 = vector.broadcast %cst_54 : f32 to vector<2x256xf32>
    %196 = arith.mulf %195, %194 : vector<2x256xf32>
    %cst_55 = arith.constant 5.000000e-01 : f32
    %197 = vector.broadcast %cst_55 : f32 to vector<2x256xf32>
    %198 = arith.addf %197, %196 : vector<2x256xf32>
    %c2_56 = arith.constant 2 : index
    %c0_57 = arith.constant 0 : index
    %199 = vector.load %arg5[%c2_56, %c0_57] : memref<16x256xf32, #tpu.memory_space<vmem>>, vector<2x256xf32>
    tpu.vector_store %arg5[%c2_56, %c0_57], %198 {strides = array<i32>} : memref<16x256xf32, #tpu.memory_space<vmem>>, vector<2x256xf32>,
    %200 = vector.broadcast %108 : f32 to vector<2x1xf32>
    %201 = arith.subf %200, %169 : vector<2x1xf32>
    %202 = arith.mulf %201, %184 : vector<2x1xf32>
    %203 = vector.broadcast %185 : f32 to vector<2x1xf32>
    %204 = arith.addf %202, %203 : vector<2x1xf32>
    %cst_58 = arith.constant 5.000000e-01 : f32
    %205 = vector.broadcast %cst_58 : f32 to vector<2x1xf32>
    %206 = arith.mulf %205, %204 : vector<2x1xf32>
    %207 = math.tanh %206 : vector<2x1xf32>
    %cst_59 = arith.constant 5.000000e-01 : f32
    %208 = vector.broadcast %cst_59 : f32 to vector<2x1xf32>
    %209 = arith.mulf %208, %207 : vector<2x1xf32>
    %cst_60 = arith.constant 5.000000e-01 : f32
    %210 = vector.broadcast %cst_60 : f32 to vector<2x1xf32>
    %211 = arith.addf %210, %209 : vector<2x1xf32>
    %c114 = arith.constant 114 : index
    %212 = memref.load %arg0[%c114] : memref<160xf32, #tpu.memory_space<smem>>
    %c122 = arith.constant 122 : index
    %213 = memref.load %arg0[%c122] : memref<160xf32, #tpu.memory_space<smem>>
    %214 = arith.addf %212, %213 : f32
    %c2_61 = arith.constant 2 : index
    %215 = memref.load %arg0[%c2_61] : memref<160xf32, #tpu.memory_space<smem>>
    %c0_62 = arith.constant 0 : index
    %c0_63 = arith.constant 0 : index
    %216 = vector.load %arg1[%c0_62, %c0_63] : memref<6x256xf32, #tpu.memory_space<vmem>>, vector<2x256xf32>
    %217 = vector.broadcast %215 : f32 to vector<2x256xf32>
    %218 = arith.mulf %217, %216 : vector<2x256xf32>
    %c26 = arith.constant 26 : index
    %219 = memref.load %arg0[%c26] : memref<160xf32, #tpu.memory_space<smem>>
    %c0_64 = arith.constant 0 : index
    %c0_65 = arith.constant 0 : index
    %220 = vector.load %arg2[%c0_64, %c0_65] : memref<6x256xf32, #tpu.memory_space<vmem>>, vector<2x256xf32>
    %221 = vector.broadcast %219 : f32 to vector<2x256xf32>
    %222 = arith.mulf %221, %220 : vector<2x256xf32>
    %223 = arith.addf %218, %222 : vector<2x256xf32>
    %c10 = arith.constant 10 : index
    %224 = memref.load %arg0[%c10] : memref<160xf32, #tpu.memory_space<smem>>
    %c2_66 = arith.constant 2 : index
    %c0_67 = arith.constant 0 : index
    %225 = vector.load %arg1[%c2_66, %c0_67] : memref<6x256xf32, #tpu.memory_space<vmem>>, vector<2x256xf32>
    %226 = vector.broadcast %224 : f32 to vector<2x256xf32>
    %227 = arith.mulf %226, %225 : vector<2x256xf32>
    %228 = arith.addf %223, %227 : vector<2x256xf32>
    %c34 = arith.constant 34 : index
    %229 = memref.load %arg0[%c34] : memref<160xf32, #tpu.memory_space<smem>>
    %c2_68 = arith.constant 2 : index
    %c0_69 = arith.constant 0 : index
    %230 = vector.load %arg2[%c2_68, %c0_69] : memref<6x256xf32, #tpu.memory_space<vmem>>, vector<2x256xf32>
    %231 = vector.broadcast %229 : f32 to vector<2x256xf32>
    %232 = arith.mulf %231, %230 : vector<2x256xf32>
    %233 = arith.addf %228, %232 : vector<2x256xf32>
    %c18 = arith.constant 18 : index
    %234 = memref.load %arg0[%c18] : memref<160xf32, #tpu.memory_space<smem>>
    %c4_70 = arith.constant 4 : index
    %c0_71 = arith.constant 0 : index
    %235 = vector.load %arg1[%c4_70, %c0_71] : memref<6x256xf32, #tpu.memory_space<vmem>>, vector<2x256xf32>
    %236 = vector.broadcast %234 : f32 to vector<2x256xf32>
    %237 = arith.mulf %236, %235 : vector<2x256xf32>
    %238 = arith.addf %233, %237 : vector<2x256xf32>
    %c42 = arith.constant 42 : index
    %239 = memref.load %arg0[%c42] : memref<160xf32, #tpu.memory_space<smem>>
    %c4_72 = arith.constant 4 : index
    %c0_73 = arith.constant 0 : index
    %240 = vector.load %arg2[%c4_72, %c0_73] : memref<6x256xf32, #tpu.memory_space<vmem>>, vector<2x256xf32>
    %241 = vector.broadcast %239 : f32 to vector<2x256xf32>
    %242 = arith.mulf %241, %240 : vector<2x256xf32>
    %243 = arith.addf %238, %242 : vector<2x256xf32>
    %244 = vector.broadcast %214 : f32 to vector<2x256xf32>
    %245 = arith.addf %243, %244 : vector<2x256xf32>
    %246 = arith.mulf %245, %245 : vector<2x256xf32>
    %cst_74 = arith.constant dense<0.000000e+00> : vector<2xf32>
    %247 = vector.multi_reduction <add>, %245, %cst_74 [1] : vector<2x256xf32> to vector<2xf32>
    %248 = vector.shape_cast %247 : vector<2xf32> to vector<2x1xf32>
    %cst_75 = arith.constant 6.800000e+01 : f32
    %249 = arith.mulf %cst_75, %214 : f32
    %250 = vector.broadcast %249 : f32 to vector<2x1xf32>
    %251 = arith.addf %248, %250 : vector<2x1xf32>
    %cst_76 = arith.constant dense<0.000000e+00> : vector<2xf32>
    %252 = vector.multi_reduction <add>, %246, %cst_76 [1] : vector<2x256xf32> to vector<2xf32>
    %253 = vector.shape_cast %252 : vector<2xf32> to vector<2x1xf32>
    %254 = arith.mulf %214, %214 : f32
    %cst_77 = arith.constant 6.800000e+01 : f32
    %255 = arith.mulf %cst_77, %254 : f32
    %256 = vector.broadcast %255 : f32 to vector<2x1xf32>
    %257 = arith.addf %253, %256 : vector<2x1xf32>
    %cst_78 = arith.constant dense<0.000000e+00> : vector<1xf32>
    %258 = vector.multi_reduction <add>, %251, %cst_78 [0] : vector<2x1xf32> to vector<1xf32>
    %259 = vector.shape_cast %258 : vector<1xf32> to vector<1x1xf32>
    %cst_79 = arith.constant dense<0.000000e+00> : vector<1xf32>
    %260 = vector.multi_reduction <add>, %257, %cst_79 [0] : vector<2x1xf32> to vector<1xf32>
    %261 = vector.shape_cast %260 : vector<1xf32> to vector<1x1xf32>
    %cst_80 = arith.constant 0.00154320989 : f32
    %262 = vector.broadcast %cst_80 : f32 to vector<1x1xf32>
    %263 = arith.mulf %259, %262 : vector<1x1xf32>
    %cst_81 = arith.constant 0.00154320989 : f32
    %264 = vector.broadcast %cst_81 : f32 to vector<1x1xf32>
    %265 = arith.mulf %261, %264 : vector<1x1xf32>
    %266 = arith.mulf %263, %263 : vector<1x1xf32>
    %267 = arith.subf %265, %266 : vector<1x1xf32>
    %c138 = arith.constant 138 : index
    %268 = memref.load %arg0[%c138] : memref<160xf32, #tpu.memory_space<smem>>
    %cst_82 = arith.constant 9.99999974E-6 : f32
    %269 = vector.broadcast %cst_82 : f32 to vector<1x1xf32>
    %270 = arith.addf %267, %269 : vector<1x1xf32>
    %271 = math.rsqrt %270 : vector<1x1xf32>
    %272 = vector.broadcast %268 : f32 to vector<1x1xf32>
    %273 = arith.mulf %272, %271 : vector<1x1xf32>
    %cst_83 = arith.constant 0.00308641978 : f32
    %274 = vector.broadcast %cst_83 : f32 to vector<2x1xf32>
    %275 = arith.mulf %251, %274 : vector<2x1xf32>
    %cst_84 = arith.constant 0.00308641978 : f32
    %276 = vector.broadcast %cst_84 : f32 to vector<2x1xf32>
    %277 = arith.mulf %257, %276 : vector<2x1xf32>
    %278 = arith.mulf %275, %275 : vector<2x1xf32>
    %279 = arith.subf %277, %278 : vector<2x1xf32>
    %c146 = arith.constant 146 : index
    %280 = memref.load %arg0[%c146] : memref<160xf32, #tpu.memory_space<smem>>
    %281 = vector.broadcast %280 : f32 to vector<1x1xf32>
    %282 = arith.mulf %281, %273 : vector<1x1xf32>
    %283 = arith.mulf %273, %273 : vector<1x1xf32>
    %284 = vector.broadcast %283 : vector<1x1xf32> to vector<2x1xf32>
    %285 = arith.mulf %284, %279 : vector<2x1xf32>
    %cst_85 = arith.constant 9.99999974E-6 : f32
    %286 = vector.broadcast %cst_85 : f32 to vector<2x1xf32>
    %287 = arith.addf %285, %286 : vector<2x1xf32>
    %288 = math.rsqrt %287 : vector<2x1xf32>
    %289 = vector.broadcast %282 : vector<1x1xf32> to vector<2x1xf32>
    %290 = arith.mulf %289, %288 : vector<2x1xf32>
    %c154 = arith.constant 154 : index
    %291 = memref.load %arg0[%c154] : memref<160xf32, #tpu.memory_space<smem>>
    %292 = vector.broadcast %275 : vector<2x1xf32> to vector<2x256xf32>
    %293 = arith.subf %245, %292 : vector<2x256xf32>
    %294 = vector.broadcast %290 : vector<2x1xf32> to vector<2x256xf32>
    %295 = arith.mulf %293, %294 : vector<2x256xf32>
    %296 = vector.broadcast %291 : f32 to vector<2x256xf32>
    %297 = arith.addf %295, %296 : vector<2x256xf32>
    %cst_86 = arith.constant 5.000000e-01 : f32
    %298 = vector.broadcast %cst_86 : f32 to vector<2x256xf32>
    %299 = arith.mulf %298, %297 : vector<2x256xf32>
    %300 = math.tanh %299 : vector<2x256xf32>
    %cst_87 = arith.constant 5.000000e-01 : f32
    %301 = vector.broadcast %cst_87 : f32 to vector<2x256xf32>
    %302 = arith.mulf %301, %300 : vector<2x256xf32>
    %cst_88 = arith.constant 5.000000e-01 : f32
    %303 = vector.broadcast %cst_88 : f32 to vector<2x256xf32>
    %304 = arith.addf %303, %302 : vector<2x256xf32>
    %c4_89 = arith.constant 4 : index
    %c0_90 = arith.constant 0 : index
    %305 = vector.load %arg5[%c4_89, %c0_90] : memref<16x256xf32, #tpu.memory_space<vmem>>, vector<2x256xf32>
    tpu.vector_store %arg5[%c4_89, %c0_90], %304 {strides = array<i32>} : memref<16x256xf32, #tpu.memory_space<vmem>>, vector<2x256xf32>,
    %306 = vector.broadcast %214 : f32 to vector<2x1xf32>
    %307 = arith.subf %306, %275 : vector<2x1xf32>
    %308 = arith.mulf %307, %290 : vector<2x1xf32>
    %309 = vector.broadcast %291 : f32 to vector<2x1xf32>
    %310 = arith.addf %308, %309 : vector<2x1xf32>
    %cst_91 = arith.constant 5.000000e-01 : f32
    %311 = vector.broadcast %cst_91 : f32 to vector<2x1xf32>
    %312 = arith.mulf %311, %310 : vector<2x1xf32>
    %313 = math.tanh %312 : vector<2x1xf32>
    %cst_92 = arith.constant 5.000000e-01 : f32
    %314 = vector.broadcast %cst_92 : f32 to vector<2x1xf32>
    %315 = arith.mulf %314, %313 : vector<2x1xf32>
    %cst_93 = arith.constant 5.000000e-01 : f32
    %316 = vector.broadcast %cst_93 : f32 to vector<2x1xf32>
    %317 = arith.addf %316, %315 : vector<2x1xf32>
    %c115 = arith.constant 115 : index
    %318 = memref.load %arg0[%c115] : memref<160xf32, #tpu.memory_space<smem>>
    %c123 = arith.constant 123 : index
    %319 = memref.load %arg0[%c123] : memref<160xf32, #tpu.memory_space<smem>>
    %320 = arith.addf %318, %319 : f32
    %c3 = arith.constant 3 : index
    %321 = memref.load %arg0[%c3] : memref<160xf32, #tpu.memory_space<smem>>
    %c0_94 = arith.constant 0 : index
    %c0_95 = arith.constant 0 : index
    %322 = vector.load %arg1[%c0_94, %c0_95] : memref<6x256xf32, #tpu.memory_space<vmem>>, vector<2x256xf32>
    %323 = vector.broadcast %321 : f32 to vector<2x256xf32>
    %324 = arith.mulf %323, %322 : vector<2x256xf32>
    %c27 = arith.constant 27 : index
    %325 = memref.load %arg0[%c27] : memref<160xf32, #tpu.memory_space<smem>>
    %c0_96 = arith.constant 0 : index
    %c0_97 = arith.constant 0 : index
    %326 = vector.load %arg2[%c0_96, %c0_97] : memref<6x256xf32, #tpu.memory_space<vmem>>, vector<2x256xf32>
    %327 = vector.broadcast %325 : f32 to vector<2x256xf32>
    %328 = arith.mulf %327, %326 : vector<2x256xf32>
    %329 = arith.addf %324, %328 : vector<2x256xf32>
    %c11 = arith.constant 11 : index
    %330 = memref.load %arg0[%c11] : memref<160xf32, #tpu.memory_space<smem>>
    %c2_98 = arith.constant 2 : index
    %c0_99 = arith.constant 0 : index
    %331 = vector.load %arg1[%c2_98, %c0_99] : memref<6x256xf32, #tpu.memory_space<vmem>>, vector<2x256xf32>
    %332 = vector.broadcast %330 : f32 to vector<2x256xf32>
    %333 = arith.mulf %332, %331 : vector<2x256xf32>
    %334 = arith.addf %329, %333 : vector<2x256xf32>
    %c35 = arith.constant 35 : index
    %335 = memref.load %arg0[%c35] : memref<160xf32, #tpu.memory_space<smem>>
    %c2_100 = arith.constant 2 : index
    %c0_101 = arith.constant 0 : index
    %336 = vector.load %arg2[%c2_100, %c0_101] : memref<6x256xf32, #tpu.memory_space<vmem>>, vector<2x256xf32>
    %337 = vector.broadcast %335 : f32 to vector<2x256xf32>
    %338 = arith.mulf %337, %336 : vector<2x256xf32>
    %339 = arith.addf %334, %338 : vector<2x256xf32>
    %c19 = arith.constant 19 : index
    %340 = memref.load %arg0[%c19] : memref<160xf32, #tpu.memory_space<smem>>
    %c4_102 = arith.constant 4 : index
    %c0_103 = arith.constant 0 : index
    %341 = vector.load %arg1[%c4_102, %c0_103] : memref<6x256xf32, #tpu.memory_space<vmem>>, vector<2x256xf32>
    %342 = vector.broadcast %340 : f32 to vector<2x256xf32>
    %343 = arith.mulf %342, %341 : vector<2x256xf32>
    %344 = arith.addf %339, %343 : vector<2x256xf32>
    %c43 = arith.constant 43 : index
    %345 = memref.load %arg0[%c43] : memref<160xf32, #tpu.memory_space<smem>>
    %c4_104 = arith.constant 4 : index
    %c0_105 = arith.constant 0 : index
    %346 = vector.load %arg2[%c4_104, %c0_105] : memref<6x256xf32, #tpu.memory_space<vmem>>, vector<2x256xf32>
    %347 = vector.broadcast %345 : f32 to vector<2x256xf32>
    %348 = arith.mulf %347, %346 : vector<2x256xf32>
    %349 = arith.addf %344, %348 : vector<2x256xf32>
    %350 = vector.broadcast %320 : f32 to vector<2x256xf32>
    %351 = arith.addf %349, %350 : vector<2x256xf32>
    %352 = arith.mulf %351, %351 : vector<2x256xf32>
    %cst_106 = arith.constant dense<0.000000e+00> : vector<2xf32>
    %353 = vector.multi_reduction <add>, %351, %cst_106 [1] : vector<2x256xf32> to vector<2xf32>
    %354 = vector.shape_cast %353 : vector<2xf32> to vector<2x1xf32>
    %cst_107 = arith.constant 6.800000e+01 : f32
    %355 = arith.mulf %cst_107, %320 : f32
    %356 = vector.broadcast %355 : f32 to vector<2x1xf32>
    %357 = arith.addf %354, %356 : vector<2x1xf32>
    %cst_108 = arith.constant dense<0.000000e+00> : vector<2xf32>
    %358 = vector.multi_reduction <add>, %352, %cst_108 [1] : vector<2x256xf32> to vector<2xf32>
    %359 = vector.shape_cast %358 : vector<2xf32> to vector<2x1xf32>
    %360 = arith.mulf %320, %320 : f32
    %cst_109 = arith.constant 6.800000e+01 : f32
    %361 = arith.mulf %cst_109, %360 : f32
    %362 = vector.broadcast %361 : f32 to vector<2x1xf32>
    %363 = arith.addf %359, %362 : vector<2x1xf32>
    %cst_110 = arith.constant dense<0.000000e+00> : vector<1xf32>
    %364 = vector.multi_reduction <add>, %357, %cst_110 [0] : vector<2x1xf32> to vector<1xf32>
    %365 = vector.shape_cast %364 : vector<1xf32> to vector<1x1xf32>
    %cst_111 = arith.constant dense<0.000000e+00> : vector<1xf32>
    %366 = vector.multi_reduction <add>, %363, %cst_111 [0] : vector<2x1xf32> to vector<1xf32>
    %367 = vector.shape_cast %366 : vector<1xf32> to vector<1x1xf32>
    %cst_112 = arith.constant 0.00154320989 : f32
    %368 = vector.broadcast %cst_112 : f32 to vector<1x1xf32>
    %369 = arith.mulf %365, %368 : vector<1x1xf32>
    %cst_113 = arith.constant 0.00154320989 : f32
    %370 = vector.broadcast %cst_113 : f32 to vector<1x1xf32>
    %371 = arith.mulf %367, %370 : vector<1x1xf32>
    %372 = arith.mulf %369, %369 : vector<1x1xf32>
    %373 = arith.subf %371, %372 : vector<1x1xf32>
    %c139 = arith.constant 139 : index
    %374 = memref.load %arg0[%c139] : memref<160xf32, #tpu.memory_space<smem>>
    %cst_114 = arith.constant 9.99999974E-6 : f32
    %375 = vector.broadcast %cst_114 : f32 to vector<1x1xf32>
    %376 = arith.addf %373, %375 : vector<1x1xf32>
    %377 = math.rsqrt %376 : vector<1x1xf32>
    %378 = vector.broadcast %374 : f32 to vector<1x1xf32>
    %379 = arith.mulf %378, %377 : vector<1x1xf32>
    %cst_115 = arith.constant 0.00308641978 : f32
    %380 = vector.broadcast %cst_115 : f32 to vector<2x1xf32>
    %381 = arith.mulf %357, %380 : vector<2x1xf32>
    %cst_116 = arith.constant 0.00308641978 : f32
    %382 = vector.broadcast %cst_116 : f32 to vector<2x1xf32>
    %383 = arith.mulf %363, %382 : vector<2x1xf32>
    %384 = arith.mulf %381, %381 : vector<2x1xf32>
    %385 = arith.subf %383, %384 : vector<2x1xf32>
    %c147 = arith.constant 147 : index
    %386 = memref.load %arg0[%c147] : memref<160xf32, #tpu.memory_space<smem>>
    %387 = vector.broadcast %386 : f32 to vector<1x1xf32>
    %388 = arith.mulf %387, %379 : vector<1x1xf32>
    %389 = arith.mulf %379, %379 : vector<1x1xf32>
    %390 = vector.broadcast %389 : vector<1x1xf32> to vector<2x1xf32>
    %391 = arith.mulf %390, %385 : vector<2x1xf32>
    %cst_117 = arith.constant 9.99999974E-6 : f32
    %392 = vector.broadcast %cst_117 : f32 to vector<2x1xf32>
    %393 = arith.addf %391, %392 : vector<2x1xf32>
    %394 = math.rsqrt %393 : vector<2x1xf32>
    %395 = vector.broadcast %388 : vector<1x1xf32> to vector<2x1xf32>
    %396 = arith.mulf %395, %394 : vector<2x1xf32>
    %c155 = arith.constant 155 : index
    %397 = memref.load %arg0[%c155] : memref<160xf32, #tpu.memory_space<smem>>
    %398 = vector.broadcast %381 : vector<2x1xf32> to vector<2x256xf32>
    %399 = arith.subf %351, %398 : vector<2x256xf32>
    %400 = vector.broadcast %396 : vector<2x1xf32> to vector<2x256xf32>
    %401 = arith.mulf %399, %400 : vector<2x256xf32>
    %402 = vector.broadcast %397 : f32 to vector<2x256xf32>
    %403 = arith.addf %401, %402 : vector<2x256xf32>
    %cst_118 = arith.constant 5.000000e-01 : f32
    %404 = vector.broadcast %cst_118 : f32 to vector<2x256xf32>
    %405 = arith.mulf %404, %403 : vector<2x256xf32>
    %406 = math.tanh %405 : vector<2x256xf32>
    %cst_119 = arith.constant 5.000000e-01 : f32
    %407 = vector.broadcast %cst_119 : f32 to vector<2x256xf32>
    %408 = arith.mulf %407, %406 : vector<2x256xf32>
    %cst_120 = arith.constant 5.000000e-01 : f32
    %409 = vector.broadcast %cst_120 : f32 to vector<2x256xf32>
    %410 = arith.addf %409, %408 : vector<2x256xf32>
    %c6 = arith.constant 6 : index
    %c0_121 = arith.constant 0 : index
    %411 = vector.load %arg5[%c6, %c0_121] : memref<16x256xf32, #tpu.memory_space<vmem>>, vector<2x256xf32>
    tpu.vector_store %arg5[%c6, %c0_121], %410 {strides = array<i32>} : memref<16x256xf32, #tpu.memory_space<vmem>>, vector<2x256xf32>,
    %412 = vector.broadcast %320 : f32 to vector<2x1xf32>
    %413 = arith.subf %412, %381 : vector<2x1xf32>
    %414 = arith.mulf %413, %396 : vector<2x1xf32>
    %415 = vector.broadcast %397 : f32 to vector<2x1xf32>
    %416 = arith.addf %414, %415 : vector<2x1xf32>
    %cst_122 = arith.constant 5.000000e-01 : f32
    %417 = vector.broadcast %cst_122 : f32 to vector<2x1xf32>
    %418 = arith.mulf %417, %416 : vector<2x1xf32>
    %419 = math.tanh %418 : vector<2x1xf32>
    %cst_123 = arith.constant 5.000000e-01 : f32
    %420 = vector.broadcast %cst_123 : f32 to vector<2x1xf32>
    %421 = arith.mulf %420, %419 : vector<2x1xf32>
    %cst_124 = arith.constant 5.000000e-01 : f32
    %422 = vector.broadcast %cst_124 : f32 to vector<2x1xf32>
    %423 = arith.addf %422, %421 : vector<2x1xf32>
    %c116 = arith.constant 116 : index
    %424 = memref.load %arg0[%c116] : memref<160xf32, #tpu.memory_space<smem>>
    %c124 = arith.constant 124 : index
    %425 = memref.load %arg0[%c124] : memref<160xf32, #tpu.memory_space<smem>>
    %426 = arith.addf %424, %425 : f32
    %c4_125 = arith.constant 4 : index
    %427 = memref.load %arg0[%c4_125] : memref<160xf32, #tpu.memory_space<smem>>
    %c0_126 = arith.constant 0 : index
    %c0_127 = arith.constant 0 : index
    %428 = vector.load %arg1[%c0_126, %c0_127] : memref<6x256xf32, #tpu.memory_space<vmem>>, vector<2x256xf32>
    %429 = vector.broadcast %427 : f32 to vector<2x256xf32>
    %430 = arith.mulf %429, %428 : vector<2x256xf32>
    %c28 = arith.constant 28 : index
    %431 = memref.load %arg0[%c28] : memref<160xf32, #tpu.memory_space<smem>>
    %c0_128 = arith.constant 0 : index
    %c0_129 = arith.constant 0 : index
    %432 = vector.load %arg2[%c0_128, %c0_129] : memref<6x256xf32, #tpu.memory_space<vmem>>, vector<2x256xf32>
    %433 = vector.broadcast %431 : f32 to vector<2x256xf32>
    %434 = arith.mulf %433, %432 : vector<2x256xf32>
    %435 = arith.addf %430, %434 : vector<2x256xf32>
    %c12 = arith.constant 12 : index
    %436 = memref.load %arg0[%c12] : memref<160xf32, #tpu.memory_space<smem>>
    %c2_130 = arith.constant 2 : index
    %c0_131 = arith.constant 0 : index
    %437 = vector.load %arg1[%c2_130, %c0_131] : memref<6x256xf32, #tpu.memory_space<vmem>>, vector<2x256xf32>
    %438 = vector.broadcast %436 : f32 to vector<2x256xf32>
    %439 = arith.mulf %438, %437 : vector<2x256xf32>
    %440 = arith.addf %435, %439 : vector<2x256xf32>
    %c36 = arith.constant 36 : index
    %441 = memref.load %arg0[%c36] : memref<160xf32, #tpu.memory_space<smem>>
    %c2_132 = arith.constant 2 : index
    %c0_133 = arith.constant 0 : index
    %442 = vector.load %arg2[%c2_132, %c0_133] : memref<6x256xf32, #tpu.memory_space<vmem>>, vector<2x256xf32>
    %443 = vector.broadcast %441 : f32 to vector<2x256xf32>
    %444 = arith.mulf %443, %442 : vector<2x256xf32>
    %445 = arith.addf %440, %444 : vector<2x256xf32>
    %c20 = arith.constant 20 : index
    %446 = memref.load %arg0[%c20] : memref<160xf32, #tpu.memory_space<smem>>
    %c4_134 = arith.constant 4 : index
    %c0_135 = arith.constant 0 : index
    %447 = vector.load %arg1[%c4_134, %c0_135] : memref<6x256xf32, #tpu.memory_space<vmem>>, vector<2x256xf32>
    %448 = vector.broadcast %446 : f32 to vector<2x256xf32>
    %449 = arith.mulf %448, %447 : vector<2x256xf32>
    %450 = arith.addf %445, %449 : vector<2x256xf32>
    %c44 = arith.constant 44 : index
    %451 = memref.load %arg0[%c44] : memref<160xf32, #tpu.memory_space<smem>>
    %c4_136 = arith.constant 4 : index
    %c0_137 = arith.constant 0 : index
    %452 = vector.load %arg2[%c4_136, %c0_137] : memref<6x256xf32, #tpu.memory_space<vmem>>, vector<2x256xf32>
    %453 = vector.broadcast %451 : f32 to vector<2x256xf32>
    %454 = arith.mulf %453, %452 : vector<2x256xf32>
    %455 = arith.addf %450, %454 : vector<2x256xf32>
    %456 = vector.broadcast %426 : f32 to vector<2x256xf32>
    %457 = arith.addf %455, %456 : vector<2x256xf32>
    %458 = arith.mulf %457, %457 : vector<2x256xf32>
    %cst_138 = arith.constant dense<0.000000e+00> : vector<2xf32>
    %459 = vector.multi_reduction <add>, %457, %cst_138 [1] : vector<2x256xf32> to vector<2xf32>
    %460 = vector.shape_cast %459 : vector<2xf32> to vector<2x1xf32>
    %cst_139 = arith.constant 6.800000e+01 : f32
    %461 = arith.mulf %cst_139, %426 : f32
    %462 = vector.broadcast %461 : f32 to vector<2x1xf32>
    %463 = arith.addf %460, %462 : vector<2x1xf32>
    %cst_140 = arith.constant dense<0.000000e+00> : vector<2xf32>
    %464 = vector.multi_reduction <add>, %458, %cst_140 [1] : vector<2x256xf32> to vector<2xf32>
    %465 = vector.shape_cast %464 : vector<2xf32> to vector<2x1xf32>
    %466 = arith.mulf %426, %426 : f32
    %cst_141 = arith.constant 6.800000e+01 : f32
    %467 = arith.mulf %cst_141, %466 : f32
    %468 = vector.broadcast %467 : f32 to vector<2x1xf32>
    %469 = arith.addf %465, %468 : vector<2x1xf32>
    %cst_142 = arith.constant dense<0.000000e+00> : vector<1xf32>
    %470 = vector.multi_reduction <add>, %463, %cst_142 [0] : vector<2x1xf32> to vector<1xf32>
    %471 = vector.shape_cast %470 : vector<1xf32> to vector<1x1xf32>
    %cst_143 = arith.constant dense<0.000000e+00> : vector<1xf32>
    %472 = vector.multi_reduction <add>, %469, %cst_143 [0] : vector<2x1xf32> to vector<1xf32>
    %473 = vector.shape_cast %472 : vector<1xf32> to vector<1x1xf32>
    %cst_144 = arith.constant 0.00154320989 : f32
    %474 = vector.broadcast %cst_144 : f32 to vector<1x1xf32>
    %475 = arith.mulf %471, %474 : vector<1x1xf32>
    %cst_145 = arith.constant 0.00154320989 : f32
    %476 = vector.broadcast %cst_145 : f32 to vector<1x1xf32>
    %477 = arith.mulf %473, %476 : vector<1x1xf32>
    %478 = arith.mulf %475, %475 : vector<1x1xf32>
    %479 = arith.subf %477, %478 : vector<1x1xf32>
    %c140 = arith.constant 140 : index
    %480 = memref.load %arg0[%c140] : memref<160xf32, #tpu.memory_space<smem>>
    %cst_146 = arith.constant 9.99999974E-6 : f32
    %481 = vector.broadcast %cst_146 : f32 to vector<1x1xf32>
    %482 = arith.addf %479, %481 : vector<1x1xf32>
    %483 = math.rsqrt %482 : vector<1x1xf32>
    %484 = vector.broadcast %480 : f32 to vector<1x1xf32>
    %485 = arith.mulf %484, %483 : vector<1x1xf32>
    %cst_147 = arith.constant 0.00308641978 : f32
    %486 = vector.broadcast %cst_147 : f32 to vector<2x1xf32>
    %487 = arith.mulf %463, %486 : vector<2x1xf32>
    %cst_148 = arith.constant 0.00308641978 : f32
    %488 = vector.broadcast %cst_148 : f32 to vector<2x1xf32>
    %489 = arith.mulf %469, %488 : vector<2x1xf32>
    %490 = arith.mulf %487, %487 : vector<2x1xf32>
    %491 = arith.subf %489, %490 : vector<2x1xf32>
    %c148 = arith.constant 148 : index
    %492 = memref.load %arg0[%c148] : memref<160xf32, #tpu.memory_space<smem>>
    %493 = vector.broadcast %492 : f32 to vector<1x1xf32>
    %494 = arith.mulf %493, %485 : vector<1x1xf32>
    %495 = arith.mulf %485, %485 : vector<1x1xf32>
    %496 = vector.broadcast %495 : vector<1x1xf32> to vector<2x1xf32>
    %497 = arith.mulf %496, %491 : vector<2x1xf32>
    %cst_149 = arith.constant 9.99999974E-6 : f32
    %498 = vector.broadcast %cst_149 : f32 to vector<2x1xf32>
    %499 = arith.addf %497, %498 : vector<2x1xf32>
    %500 = math.rsqrt %499 : vector<2x1xf32>
    %501 = vector.broadcast %494 : vector<1x1xf32> to vector<2x1xf32>
    %502 = arith.mulf %501, %500 : vector<2x1xf32>
    %c156 = arith.constant 156 : index
    %503 = memref.load %arg0[%c156] : memref<160xf32, #tpu.memory_space<smem>>
    %504 = vector.broadcast %487 : vector<2x1xf32> to vector<2x256xf32>
    %505 = arith.subf %457, %504 : vector<2x256xf32>
    %506 = vector.broadcast %502 : vector<2x1xf32> to vector<2x256xf32>
    %507 = arith.mulf %505, %506 : vector<2x256xf32>
    %508 = vector.broadcast %503 : f32 to vector<2x256xf32>
    %509 = arith.addf %507, %508 : vector<2x256xf32>
    %cst_150 = arith.constant 5.000000e-01 : f32
    %510 = vector.broadcast %cst_150 : f32 to vector<2x256xf32>
    %511 = arith.mulf %510, %509 : vector<2x256xf32>
    %512 = math.tanh %511 : vector<2x256xf32>
    %cst_151 = arith.constant 5.000000e-01 : f32
    %513 = vector.broadcast %cst_151 : f32 to vector<2x256xf32>
    %514 = arith.mulf %513, %512 : vector<2x256xf32>
    %cst_152 = arith.constant 5.000000e-01 : f32
    %515 = vector.broadcast %cst_152 : f32 to vector<2x256xf32>
    %516 = arith.addf %515, %514 : vector<2x256xf32>
    %c8_153 = arith.constant 8 : index
    %c0_154 = arith.constant 0 : index
    %517 = vector.load %arg5[%c8_153, %c0_154] : memref<16x256xf32, #tpu.memory_space<vmem>>, vector<2x256xf32>
    tpu.vector_store %arg5[%c8_153, %c0_154], %516 {strides = array<i32>} : memref<16x256xf32, #tpu.memory_space<vmem>>, vector<2x256xf32>,
    %518 = vector.broadcast %426 : f32 to vector<2x1xf32>
    %519 = arith.subf %518, %487 : vector<2x1xf32>
    %520 = arith.mulf %519, %502 : vector<2x1xf32>
    %521 = vector.broadcast %503 : f32 to vector<2x1xf32>
    %522 = arith.addf %520, %521 : vector<2x1xf32>
    %cst_155 = arith.constant 5.000000e-01 : f32
    %523 = vector.broadcast %cst_155 : f32 to vector<2x1xf32>
    %524 = arith.mulf %523, %522 : vector<2x1xf32>
    %525 = math.tanh %524 : vector<2x1xf32>
    %cst_156 = arith.constant 5.000000e-01 : f32
    %526 = vector.broadcast %cst_156 : f32 to vector<2x1xf32>
    %527 = arith.mulf %526, %525 : vector<2x1xf32>
    %cst_157 = arith.constant 5.000000e-01 : f32
    %528 = vector.broadcast %cst_157 : f32 to vector<2x1xf32>
    %529 = arith.addf %528, %527 : vector<2x1xf32>
    %c117 = arith.constant 117 : index
    %530 = memref.load %arg0[%c117] : memref<160xf32, #tpu.memory_space<smem>>
    %c125 = arith.constant 125 : index
    %531 = memref.load %arg0[%c125] : memref<160xf32, #tpu.memory_space<smem>>
    %532 = arith.addf %530, %531 : f32
    %c5 = arith.constant 5 : index
    %533 = memref.load %arg0[%c5] : memref<160xf32, #tpu.memory_space<smem>>
    %c0_158 = arith.constant 0 : index
    %c0_159 = arith.constant 0 : index
    %534 = vector.load %arg1[%c0_158, %c0_159] : memref<6x256xf32, #tpu.memory_space<vmem>>, vector<2x256xf32>
    %535 = vector.broadcast %533 : f32 to vector<2x256xf32>
    %536 = arith.mulf %535, %534 : vector<2x256xf32>
    %c29 = arith.constant 29 : index
    %537 = memref.load %arg0[%c29] : memref<160xf32, #tpu.memory_space<smem>>
    %c0_160 = arith.constant 0 : index
    %c0_161 = arith.constant 0 : index
    %538 = vector.load %arg2[%c0_160, %c0_161] : memref<6x256xf32, #tpu.memory_space<vmem>>, vector<2x256xf32>
    %539 = vector.broadcast %537 : f32 to vector<2x256xf32>
    %540 = arith.mulf %539, %538 : vector<2x256xf32>
    %541 = arith.addf %536, %540 : vector<2x256xf32>
    %c13 = arith.constant 13 : index
    %542 = memref.load %arg0[%c13] : memref<160xf32, #tpu.memory_space<smem>>
    %c2_162 = arith.constant 2 : index
    %c0_163 = arith.constant 0 : index
    %543 = vector.load %arg1[%c2_162, %c0_163] : memref<6x256xf32, #tpu.memory_space<vmem>>, vector<2x256xf32>
    %544 = vector.broadcast %542 : f32 to vector<2x256xf32>
    %545 = arith.mulf %544, %543 : vector<2x256xf32>
    %546 = arith.addf %541, %545 : vector<2x256xf32>
    %c37 = arith.constant 37 : index
    %547 = memref.load %arg0[%c37] : memref<160xf32, #tpu.memory_space<smem>>
    %c2_164 = arith.constant 2 : index
    %c0_165 = arith.constant 0 : index
    %548 = vector.load %arg2[%c2_164, %c0_165] : memref<6x256xf32, #tpu.memory_space<vmem>>, vector<2x256xf32>
    %549 = vector.broadcast %547 : f32 to vector<2x256xf32>
    %550 = arith.mulf %549, %548 : vector<2x256xf32>
    %551 = arith.addf %546, %550 : vector<2x256xf32>
    %c21 = arith.constant 21 : index
    %552 = memref.load %arg0[%c21] : memref<160xf32, #tpu.memory_space<smem>>
    %c4_166 = arith.constant 4 : index
    %c0_167 = arith.constant 0 : index
    %553 = vector.load %arg1[%c4_166, %c0_167] : memref<6x256xf32, #tpu.memory_space<vmem>>, vector<2x256xf32>
    %554 = vector.broadcast %552 : f32 to vector<2x256xf32>
    %555 = arith.mulf %554, %553 : vector<2x256xf32>
    %556 = arith.addf %551, %555 : vector<2x256xf32>
    %c45 = arith.constant 45 : index
    %557 = memref.load %arg0[%c45] : memref<160xf32, #tpu.memory_space<smem>>
    %c4_168 = arith.constant 4 : index
    %c0_169 = arith.constant 0 : index
    %558 = vector.load %arg2[%c4_168, %c0_169] : memref<6x256xf32, #tpu.memory_space<vmem>>, vector<2x256xf32>
    %559 = vector.broadcast %557 : f32 to vector<2x256xf32>
    %560 = arith.mulf %559, %558 : vector<2x256xf32>
    %561 = arith.addf %556, %560 : vector<2x256xf32>
    %562 = vector.broadcast %532 : f32 to vector<2x256xf32>
    %563 = arith.addf %561, %562 : vector<2x256xf32>
    %564 = arith.mulf %563, %563 : vector<2x256xf32>
    %cst_170 = arith.constant dense<0.000000e+00> : vector<2xf32>
    %565 = vector.multi_reduction <add>, %563, %cst_170 [1] : vector<2x256xf32> to vector<2xf32>
    %566 = vector.shape_cast %565 : vector<2xf32> to vector<2x1xf32>
    %cst_171 = arith.constant 6.800000e+01 : f32
    %567 = arith.mulf %cst_171, %532 : f32
    %568 = vector.broadcast %567 : f32 to vector<2x1xf32>
    %569 = arith.addf %566, %568 : vector<2x1xf32>
    %cst_172 = arith.constant dense<0.000000e+00> : vector<2xf32>
    %570 = vector.multi_reduction <add>, %564, %cst_172 [1] : vector<2x256xf32> to vector<2xf32>
    %571 = vector.shape_cast %570 : vector<2xf32> to vector<2x1xf32>
    %572 = arith.mulf %532, %532 : f32
    %cst_173 = arith.constant 6.800000e+01 : f32
    %573 = arith.mulf %cst_173, %572 : f32
    %574 = vector.broadcast %573 : f32 to vector<2x1xf32>
    %575 = arith.addf %571, %574 : vector<2x1xf32>
    %cst_174 = arith.constant dense<0.000000e+00> : vector<1xf32>
    %576 = vector.multi_reduction <add>, %569, %cst_174 [0] : vector<2x1xf32> to vector<1xf32>
    %577 = vector.shape_cast %576 : vector<1xf32> to vector<1x1xf32>
    %cst_175 = arith.constant dense<0.000000e+00> : vector<1xf32>
    %578 = vector.multi_reduction <add>, %575, %cst_175 [0] : vector<2x1xf32> to vector<1xf32>
    %579 = vector.shape_cast %578 : vector<1xf32> to vector<1x1xf32>
    %cst_176 = arith.constant 0.00154320989 : f32
    %580 = vector.broadcast %cst_176 : f32 to vector<1x1xf32>
    %581 = arith.mulf %577, %580 : vector<1x1xf32>
    %cst_177 = arith.constant 0.00154320989 : f32
    %582 = vector.broadcast %cst_177 : f32 to vector<1x1xf32>
    %583 = arith.mulf %579, %582 : vector<1x1xf32>
    %584 = arith.mulf %581, %581 : vector<1x1xf32>
    %585 = arith.subf %583, %584 : vector<1x1xf32>
    %c141 = arith.constant 141 : index
    %586 = memref.load %arg0[%c141] : memref<160xf32, #tpu.memory_space<smem>>
    %cst_178 = arith.constant 9.99999974E-6 : f32
    %587 = vector.broadcast %cst_178 : f32 to vector<1x1xf32>
    %588 = arith.addf %585, %587 : vector<1x1xf32>
    %589 = math.rsqrt %588 : vector<1x1xf32>
    %590 = vector.broadcast %586 : f32 to vector<1x1xf32>
    %591 = arith.mulf %590, %589 : vector<1x1xf32>
    %cst_179 = arith.constant 0.00308641978 : f32
    %592 = vector.broadcast %cst_179 : f32 to vector<2x1xf32>
    %593 = arith.mulf %569, %592 : vector<2x1xf32>
    %cst_180 = arith.constant 0.00308641978 : f32
    %594 = vector.broadcast %cst_180 : f32 to vector<2x1xf32>
    %595 = arith.mulf %575, %594 : vector<2x1xf32>
    %596 = arith.mulf %593, %593 : vector<2x1xf32>
    %597 = arith.subf %595, %596 : vector<2x1xf32>
    %c149 = arith.constant 149 : index
    %598 = memref.load %arg0[%c149] : memref<160xf32, #tpu.memory_space<smem>>
    %599 = vector.broadcast %598 : f32 to vector<1x1xf32>
    %600 = arith.mulf %599, %591 : vector<1x1xf32>
    %601 = arith.mulf %591, %591 : vector<1x1xf32>
    %602 = vector.broadcast %601 : vector<1x1xf32> to vector<2x1xf32>
    %603 = arith.mulf %602, %597 : vector<2x1xf32>
    %cst_181 = arith.constant 9.99999974E-6 : f32
    %604 = vector.broadcast %cst_181 : f32 to vector<2x1xf32>
    %605 = arith.addf %603, %604 : vector<2x1xf32>
    %606 = math.rsqrt %605 : vector<2x1xf32>
    %607 = vector.broadcast %600 : vector<1x1xf32> to vector<2x1xf32>
    %608 = arith.mulf %607, %606 : vector<2x1xf32>
    %c157 = arith.constant 157 : index
    %609 = memref.load %arg0[%c157] : memref<160xf32, #tpu.memory_space<smem>>
    %610 = vector.broadcast %593 : vector<2x1xf32> to vector<2x256xf32>
    %611 = arith.subf %563, %610 : vector<2x256xf32>
    %612 = vector.broadcast %608 : vector<2x1xf32> to vector<2x256xf32>
    %613 = arith.mulf %611, %612 : vector<2x256xf32>
    %614 = vector.broadcast %609 : f32 to vector<2x256xf32>
    %615 = arith.addf %613, %614 : vector<2x256xf32>
    %cst_182 = arith.constant 5.000000e-01 : f32
    %616 = vector.broadcast %cst_182 : f32 to vector<2x256xf32>
    %617 = arith.mulf %616, %615 : vector<2x256xf32>
    %618 = math.tanh %617 : vector<2x256xf32>
    %cst_183 = arith.constant 5.000000e-01 : f32
    %619 = vector.broadcast %cst_183 : f32 to vector<2x256xf32>
    %620 = arith.mulf %619, %618 : vector<2x256xf32>
    %cst_184 = arith.constant 5.000000e-01 : f32
    %621 = vector.broadcast %cst_184 : f32 to vector<2x256xf32>
    %622 = arith.addf %621, %620 : vector<2x256xf32>
    %c10_185 = arith.constant 10 : index
    %c0_186 = arith.constant 0 : index
    %623 = vector.load %arg5[%c10_185, %c0_186] : memref<16x256xf32, #tpu.memory_space<vmem>>, vector<2x256xf32>
    tpu.vector_store %arg5[%c10_185, %c0_186], %622 {strides = array<i32>} : memref<16x256xf32, #tpu.memory_space<vmem>>, vector<2x256xf32>,
    %624 = vector.broadcast %532 : f32 to vector<2x1xf32>
    %625 = arith.subf %624, %593 : vector<2x1xf32>
    %626 = arith.mulf %625, %608 : vector<2x1xf32>
    %627 = vector.broadcast %609 : f32 to vector<2x1xf32>
    %628 = arith.addf %626, %627 : vector<2x1xf32>
    %cst_187 = arith.constant 5.000000e-01 : f32
    %629 = vector.broadcast %cst_187 : f32 to vector<2x1xf32>
    %630 = arith.mulf %629, %628 : vector<2x1xf32>
    %631 = math.tanh %630 : vector<2x1xf32>
    %cst_188 = arith.constant 5.000000e-01 : f32
    %632 = vector.broadcast %cst_188 : f32 to vector<2x1xf32>
    %633 = arith.mulf %632, %631 : vector<2x1xf32>
    %cst_189 = arith.constant 5.000000e-01 : f32
    %634 = vector.broadcast %cst_189 : f32 to vector<2x1xf32>
    %635 = arith.addf %634, %633 : vector<2x1xf32>
    %c118 = arith.constant 118 : index
    %636 = memref.load %arg0[%c118] : memref<160xf32, #tpu.memory_space<smem>>
    %c126 = arith.constant 126 : index
    %637 = memref.load %arg0[%c126] : memref<160xf32, #tpu.memory_space<smem>>
    %638 = arith.addf %636, %637 : f32
    %c6_190 = arith.constant 6 : index
    %639 = memref.load %arg0[%c6_190] : memref<160xf32, #tpu.memory_space<smem>>
    %c0_191 = arith.constant 0 : index
    %c0_192 = arith.constant 0 : index
    %640 = vector.load %arg1[%c0_191, %c0_192] : memref<6x256xf32, #tpu.memory_space<vmem>>, vector<2x256xf32>
    %641 = vector.broadcast %639 : f32 to vector<2x256xf32>
    %642 = arith.mulf %641, %640 : vector<2x256xf32>
    %c30 = arith.constant 30 : index
    %643 = memref.load %arg0[%c30] : memref<160xf32, #tpu.memory_space<smem>>
    %c0_193 = arith.constant 0 : index
    %c0_194 = arith.constant 0 : index
    %644 = vector.load %arg2[%c0_193, %c0_194] : memref<6x256xf32, #tpu.memory_space<vmem>>, vector<2x256xf32>
    %645 = vector.broadcast %643 : f32 to vector<2x256xf32>
    %646 = arith.mulf %645, %644 : vector<2x256xf32>
    %647 = arith.addf %642, %646 : vector<2x256xf32>
    %c14 = arith.constant 14 : index
    %648 = memref.load %arg0[%c14] : memref<160xf32, #tpu.memory_space<smem>>
    %c2_195 = arith.constant 2 : index
    %c0_196 = arith.constant 0 : index
    %649 = vector.load %arg1[%c2_195, %c0_196] : memref<6x256xf32, #tpu.memory_space<vmem>>, vector<2x256xf32>
    %650 = vector.broadcast %648 : f32 to vector<2x256xf32>
    %651 = arith.mulf %650, %649 : vector<2x256xf32>
    %652 = arith.addf %647, %651 : vector<2x256xf32>
    %c38 = arith.constant 38 : index
    %653 = memref.load %arg0[%c38] : memref<160xf32, #tpu.memory_space<smem>>
    %c2_197 = arith.constant 2 : index
    %c0_198 = arith.constant 0 : index
    %654 = vector.load %arg2[%c2_197, %c0_198] : memref<6x256xf32, #tpu.memory_space<vmem>>, vector<2x256xf32>
    %655 = vector.broadcast %653 : f32 to vector<2x256xf32>
    %656 = arith.mulf %655, %654 : vector<2x256xf32>
    %657 = arith.addf %652, %656 : vector<2x256xf32>
    %c22 = arith.constant 22 : index
    %658 = memref.load %arg0[%c22] : memref<160xf32, #tpu.memory_space<smem>>
    %c4_199 = arith.constant 4 : index
    %c0_200 = arith.constant 0 : index
    %659 = vector.load %arg1[%c4_199, %c0_200] : memref<6x256xf32, #tpu.memory_space<vmem>>, vector<2x256xf32>
    %660 = vector.broadcast %658 : f32 to vector<2x256xf32>
    %661 = arith.mulf %660, %659 : vector<2x256xf32>
    %662 = arith.addf %657, %661 : vector<2x256xf32>
    %c46 = arith.constant 46 : index
    %663 = memref.load %arg0[%c46] : memref<160xf32, #tpu.memory_space<smem>>
    %c4_201 = arith.constant 4 : index
    %c0_202 = arith.constant 0 : index
    %664 = vector.load %arg2[%c4_201, %c0_202] : memref<6x256xf32, #tpu.memory_space<vmem>>, vector<2x256xf32>
    %665 = vector.broadcast %663 : f32 to vector<2x256xf32>
    %666 = arith.mulf %665, %664 : vector<2x256xf32>
    %667 = arith.addf %662, %666 : vector<2x256xf32>
    %668 = vector.broadcast %638 : f32 to vector<2x256xf32>
    %669 = arith.addf %667, %668 : vector<2x256xf32>
    %670 = arith.mulf %669, %669 : vector<2x256xf32>
    %cst_203 = arith.constant dense<0.000000e+00> : vector<2xf32>
    %671 = vector.multi_reduction <add>, %669, %cst_203 [1] : vector<2x256xf32> to vector<2xf32>
    %672 = vector.shape_cast %671 : vector<2xf32> to vector<2x1xf32>
    %cst_204 = arith.constant 6.800000e+01 : f32
    %673 = arith.mulf %cst_204, %638 : f32
    %674 = vector.broadcast %673 : f32 to vector<2x1xf32>
    %675 = arith.addf %672, %674 : vector<2x1xf32>
    %cst_205 = arith.constant dense<0.000000e+00> : vector<2xf32>
    %676 = vector.multi_reduction <add>, %670, %cst_205 [1] : vector<2x256xf32> to vector<2xf32>
    %677 = vector.shape_cast %676 : vector<2xf32> to vector<2x1xf32>
    %678 = arith.mulf %638, %638 : f32
    %cst_206 = arith.constant 6.800000e+01 : f32
    %679 = arith.mulf %cst_206, %678 : f32
    %680 = vector.broadcast %679 : f32 to vector<2x1xf32>
    %681 = arith.addf %677, %680 : vector<2x1xf32>
    %cst_207 = arith.constant dense<0.000000e+00> : vector<1xf32>
    %682 = vector.multi_reduction <add>, %675, %cst_207 [0] : vector<2x1xf32> to vector<1xf32>
    %683 = vector.shape_cast %682 : vector<1xf32> to vector<1x1xf32>
    %cst_208 = arith.constant dense<0.000000e+00> : vector<1xf32>
    %684 = vector.multi_reduction <add>, %681, %cst_208 [0] : vector<2x1xf32> to vector<1xf32>
    %685 = vector.shape_cast %684 : vector<1xf32> to vector<1x1xf32>
    %cst_209 = arith.constant 0.00154320989 : f32
    %686 = vector.broadcast %cst_209 : f32 to vector<1x1xf32>
    %687 = arith.mulf %683, %686 : vector<1x1xf32>
    %cst_210 = arith.constant 0.00154320989 : f32
    %688 = vector.broadcast %cst_210 : f32 to vector<1x1xf32>
    %689 = arith.mulf %685, %688 : vector<1x1xf32>
    %690 = arith.mulf %687, %687 : vector<1x1xf32>
    %691 = arith.subf %689, %690 : vector<1x1xf32>
    %c142 = arith.constant 142 : index
    %692 = memref.load %arg0[%c142] : memref<160xf32, #tpu.memory_space<smem>>
    %cst_211 = arith.constant 9.99999974E-6 : f32
    %693 = vector.broadcast %cst_211 : f32 to vector<1x1xf32>
    %694 = arith.addf %691, %693 : vector<1x1xf32>
    %695 = math.rsqrt %694 : vector<1x1xf32>
    %696 = vector.broadcast %692 : f32 to vector<1x1xf32>
    %697 = arith.mulf %696, %695 : vector<1x1xf32>
    %cst_212 = arith.constant 0.00308641978 : f32
    %698 = vector.broadcast %cst_212 : f32 to vector<2x1xf32>
    %699 = arith.mulf %675, %698 : vector<2x1xf32>
    %cst_213 = arith.constant 0.00308641978 : f32
    %700 = vector.broadcast %cst_213 : f32 to vector<2x1xf32>
    %701 = arith.mulf %681, %700 : vector<2x1xf32>
    %702 = arith.mulf %699, %699 : vector<2x1xf32>
    %703 = arith.subf %701, %702 : vector<2x1xf32>
    %c150 = arith.constant 150 : index
    %704 = memref.load %arg0[%c150] : memref<160xf32, #tpu.memory_space<smem>>
    %705 = vector.broadcast %704 : f32 to vector<1x1xf32>
    %706 = arith.mulf %705, %697 : vector<1x1xf32>
    %707 = arith.mulf %697, %697 : vector<1x1xf32>
    %708 = vector.broadcast %707 : vector<1x1xf32> to vector<2x1xf32>
    %709 = arith.mulf %708, %703 : vector<2x1xf32>
    %cst_214 = arith.constant 9.99999974E-6 : f32
    %710 = vector.broadcast %cst_214 : f32 to vector<2x1xf32>
    %711 = arith.addf %709, %710 : vector<2x1xf32>
    %712 = math.rsqrt %711 : vector<2x1xf32>
    %713 = vector.broadcast %706 : vector<1x1xf32> to vector<2x1xf32>
    %714 = arith.mulf %713, %712 : vector<2x1xf32>
    %c158 = arith.constant 158 : index
    %715 = memref.load %arg0[%c158] : memref<160xf32, #tpu.memory_space<smem>>
    %716 = vector.broadcast %699 : vector<2x1xf32> to vector<2x256xf32>
    %717 = arith.subf %669, %716 : vector<2x256xf32>
    %718 = vector.broadcast %714 : vector<2x1xf32> to vector<2x256xf32>
    %719 = arith.mulf %717, %718 : vector<2x256xf32>
    %720 = vector.broadcast %715 : f32 to vector<2x256xf32>
    %721 = arith.addf %719, %720 : vector<2x256xf32>
    %cst_215 = arith.constant 5.000000e-01 : f32
    %722 = vector.broadcast %cst_215 : f32 to vector<2x256xf32>
    %723 = arith.mulf %722, %721 : vector<2x256xf32>
    %724 = math.tanh %723 : vector<2x256xf32>
    %cst_216 = arith.constant 5.000000e-01 : f32
    %725 = vector.broadcast %cst_216 : f32 to vector<2x256xf32>
    %726 = arith.mulf %725, %724 : vector<2x256xf32>
    %cst_217 = arith.constant 5.000000e-01 : f32
    %727 = vector.broadcast %cst_217 : f32 to vector<2x256xf32>
    %728 = arith.addf %727, %726 : vector<2x256xf32>
    %c12_218 = arith.constant 12 : index
    %c0_219 = arith.constant 0 : index
    %729 = vector.load %arg5[%c12_218, %c0_219] : memref<16x256xf32, #tpu.memory_space<vmem>>, vector<2x256xf32>
    tpu.vector_store %arg5[%c12_218, %c0_219], %728 {strides = array<i32>} : memref<16x256xf32, #tpu.memory_space<vmem>>, vector<2x256xf32>,
    %730 = vector.broadcast %638 : f32 to vector<2x1xf32>
    %731 = arith.subf %730, %699 : vector<2x1xf32>
    %732 = arith.mulf %731, %714 : vector<2x1xf32>
    %733 = vector.broadcast %715 : f32 to vector<2x1xf32>
    %734 = arith.addf %732, %733 : vector<2x1xf32>
    %cst_220 = arith.constant 5.000000e-01 : f32
    %735 = vector.broadcast %cst_220 : f32 to vector<2x1xf32>
    %736 = arith.mulf %735, %734 : vector<2x1xf32>
    %737 = math.tanh %736 : vector<2x1xf32>
    %cst_221 = arith.constant 5.000000e-01 : f32
    %738 = vector.broadcast %cst_221 : f32 to vector<2x1xf32>
    %739 = arith.mulf %738, %737 : vector<2x1xf32>
    %cst_222 = arith.constant 5.000000e-01 : f32
    %740 = vector.broadcast %cst_222 : f32 to vector<2x1xf32>
    %741 = arith.addf %740, %739 : vector<2x1xf32>
    %c119 = arith.constant 119 : index
    %742 = memref.load %arg0[%c119] : memref<160xf32, #tpu.memory_space<smem>>
    %c127 = arith.constant 127 : index
    %743 = memref.load %arg0[%c127] : memref<160xf32, #tpu.memory_space<smem>>
    %744 = arith.addf %742, %743 : f32
    %c7 = arith.constant 7 : index
    %745 = memref.load %arg0[%c7] : memref<160xf32, #tpu.memory_space<smem>>
    %c0_223 = arith.constant 0 : index
    %c0_224 = arith.constant 0 : index
    %746 = vector.load %arg1[%c0_223, %c0_224] : memref<6x256xf32, #tpu.memory_space<vmem>>, vector<2x256xf32>
    %747 = vector.broadcast %745 : f32 to vector<2x256xf32>
    %748 = arith.mulf %747, %746 : vector<2x256xf32>
    %c31 = arith.constant 31 : index
    %749 = memref.load %arg0[%c31] : memref<160xf32, #tpu.memory_space<smem>>
    %c0_225 = arith.constant 0 : index
    %c0_226 = arith.constant 0 : index
    %750 = vector.load %arg2[%c0_225, %c0_226] : memref<6x256xf32, #tpu.memory_space<vmem>>, vector<2x256xf32>
    %751 = vector.broadcast %749 : f32 to vector<2x256xf32>
    %752 = arith.mulf %751, %750 : vector<2x256xf32>
    %753 = arith.addf %748, %752 : vector<2x256xf32>
    %c15 = arith.constant 15 : index
    %754 = memref.load %arg0[%c15] : memref<160xf32, #tpu.memory_space<smem>>
    %c2_227 = arith.constant 2 : index
    %c0_228 = arith.constant 0 : index
    %755 = vector.load %arg1[%c2_227, %c0_228] : memref<6x256xf32, #tpu.memory_space<vmem>>, vector<2x256xf32>
    %756 = vector.broadcast %754 : f32 to vector<2x256xf32>
    %757 = arith.mulf %756, %755 : vector<2x256xf32>
    %758 = arith.addf %753, %757 : vector<2x256xf32>
    %c39 = arith.constant 39 : index
    %759 = memref.load %arg0[%c39] : memref<160xf32, #tpu.memory_space<smem>>
    %c2_229 = arith.constant 2 : index
    %c0_230 = arith.constant 0 : index
    %760 = vector.load %arg2[%c2_229, %c0_230] : memref<6x256xf32, #tpu.memory_space<vmem>>, vector<2x256xf32>
    %761 = vector.broadcast %759 : f32 to vector<2x256xf32>
    %762 = arith.mulf %761, %760 : vector<2x256xf32>
    %763 = arith.addf %758, %762 : vector<2x256xf32>
    %c23 = arith.constant 23 : index
    %764 = memref.load %arg0[%c23] : memref<160xf32, #tpu.memory_space<smem>>
    %c4_231 = arith.constant 4 : index
    %c0_232 = arith.constant 0 : index
    %765 = vector.load %arg1[%c4_231, %c0_232] : memref<6x256xf32, #tpu.memory_space<vmem>>, vector<2x256xf32>
    %766 = vector.broadcast %764 : f32 to vector<2x256xf32>
    %767 = arith.mulf %766, %765 : vector<2x256xf32>
    %768 = arith.addf %763, %767 : vector<2x256xf32>
    %c47 = arith.constant 47 : index
    %769 = memref.load %arg0[%c47] : memref<160xf32, #tpu.memory_space<smem>>
    %c4_233 = arith.constant 4 : index
    %c0_234 = arith.constant 0 : index
    %770 = vector.load %arg2[%c4_233, %c0_234] : memref<6x256xf32, #tpu.memory_space<vmem>>, vector<2x256xf32>
    %771 = vector.broadcast %769 : f32 to vector<2x256xf32>
    %772 = arith.mulf %771, %770 : vector<2x256xf32>
    %773 = arith.addf %768, %772 : vector<2x256xf32>
    %774 = vector.broadcast %744 : f32 to vector<2x256xf32>
    %775 = arith.addf %773, %774 : vector<2x256xf32>
    %776 = arith.mulf %775, %775 : vector<2x256xf32>
    %cst_235 = arith.constant dense<0.000000e+00> : vector<2xf32>
    %777 = vector.multi_reduction <add>, %775, %cst_235 [1] : vector<2x256xf32> to vector<2xf32>
    %778 = vector.shape_cast %777 : vector<2xf32> to vector<2x1xf32>
    %cst_236 = arith.constant 6.800000e+01 : f32
    %779 = arith.mulf %cst_236, %744 : f32
    %780 = vector.broadcast %779 : f32 to vector<2x1xf32>
    %781 = arith.addf %778, %780 : vector<2x1xf32>
    %cst_237 = arith.constant dense<0.000000e+00> : vector<2xf32>
    %782 = vector.multi_reduction <add>, %776, %cst_237 [1] : vector<2x256xf32> to vector<2xf32>
    %783 = vector.shape_cast %782 : vector<2xf32> to vector<2x1xf32>
    %784 = arith.mulf %744, %744 : f32
    %cst_238 = arith.constant 6.800000e+01 : f32
    %785 = arith.mulf %cst_238, %784 : f32
    %786 = vector.broadcast %785 : f32 to vector<2x1xf32>
    %787 = arith.addf %783, %786 : vector<2x1xf32>
    %cst_239 = arith.constant dense<0.000000e+00> : vector<1xf32>
    %788 = vector.multi_reduction <add>, %781, %cst_239 [0] : vector<2x1xf32> to vector<1xf32>
    %789 = vector.shape_cast %788 : vector<1xf32> to vector<1x1xf32>
    %cst_240 = arith.constant dense<0.000000e+00> : vector<1xf32>
    %790 = vector.multi_reduction <add>, %787, %cst_240 [0] : vector<2x1xf32> to vector<1xf32>
    %791 = vector.shape_cast %790 : vector<1xf32> to vector<1x1xf32>
    %cst_241 = arith.constant 0.00154320989 : f32
    %792 = vector.broadcast %cst_241 : f32 to vector<1x1xf32>
    %793 = arith.mulf %789, %792 : vector<1x1xf32>
    %cst_242 = arith.constant 0.00154320989 : f32
    %794 = vector.broadcast %cst_242 : f32 to vector<1x1xf32>
    %795 = arith.mulf %791, %794 : vector<1x1xf32>
    %796 = arith.mulf %793, %793 : vector<1x1xf32>
    %797 = arith.subf %795, %796 : vector<1x1xf32>
    %c143 = arith.constant 143 : index
    %798 = memref.load %arg0[%c143] : memref<160xf32, #tpu.memory_space<smem>>
    %cst_243 = arith.constant 9.99999974E-6 : f32
    %799 = vector.broadcast %cst_243 : f32 to vector<1x1xf32>
    %800 = arith.addf %797, %799 : vector<1x1xf32>
    %801 = math.rsqrt %800 : vector<1x1xf32>
    %802 = vector.broadcast %798 : f32 to vector<1x1xf32>
    %803 = arith.mulf %802, %801 : vector<1x1xf32>
    %cst_244 = arith.constant 0.00308641978 : f32
    %804 = vector.broadcast %cst_244 : f32 to vector<2x1xf32>
    %805 = arith.mulf %781, %804 : vector<2x1xf32>
    %cst_245 = arith.constant 0.00308641978 : f32
    %806 = vector.broadcast %cst_245 : f32 to vector<2x1xf32>
    %807 = arith.mulf %787, %806 : vector<2x1xf32>
    %808 = arith.mulf %805, %805 : vector<2x1xf32>
    %809 = arith.subf %807, %808 : vector<2x1xf32>
    %c151 = arith.constant 151 : index
    %810 = memref.load %arg0[%c151] : memref<160xf32, #tpu.memory_space<smem>>
    %811 = vector.broadcast %810 : f32 to vector<1x1xf32>
    %812 = arith.mulf %811, %803 : vector<1x1xf32>
    %813 = arith.mulf %803, %803 : vector<1x1xf32>
    %814 = vector.broadcast %813 : vector<1x1xf32> to vector<2x1xf32>
    %815 = arith.mulf %814, %809 : vector<2x1xf32>
    %cst_246 = arith.constant 9.99999974E-6 : f32
    %816 = vector.broadcast %cst_246 : f32 to vector<2x1xf32>
    %817 = arith.addf %815, %816 : vector<2x1xf32>
    %818 = math.rsqrt %817 : vector<2x1xf32>
    %819 = vector.broadcast %812 : vector<1x1xf32> to vector<2x1xf32>
    %820 = arith.mulf %819, %818 : vector<2x1xf32>
    %c159 = arith.constant 159 : index
    %821 = memref.load %arg0[%c159] : memref<160xf32, #tpu.memory_space<smem>>
    %822 = vector.broadcast %805 : vector<2x1xf32> to vector<2x256xf32>
    %823 = arith.subf %775, %822 : vector<2x256xf32>
    %824 = vector.broadcast %820 : vector<2x1xf32> to vector<2x256xf32>
    %825 = arith.mulf %823, %824 : vector<2x256xf32>
    %826 = vector.broadcast %821 : f32 to vector<2x256xf32>
    %827 = arith.addf %825, %826 : vector<2x256xf32>
    %cst_247 = arith.constant 5.000000e-01 : f32
    %828 = vector.broadcast %cst_247 : f32 to vector<2x256xf32>
    %829 = arith.mulf %828, %827 : vector<2x256xf32>
    %830 = math.tanh %829 : vector<2x256xf32>
    %cst_248 = arith.constant 5.000000e-01 : f32
    %831 = vector.broadcast %cst_248 : f32 to vector<2x256xf32>
    %832 = arith.mulf %831, %830 : vector<2x256xf32>
    %cst_249 = arith.constant 5.000000e-01 : f32
    %833 = vector.broadcast %cst_249 : f32 to vector<2x256xf32>
    %834 = arith.addf %833, %832 : vector<2x256xf32>
    %c14_250 = arith.constant 14 : index
    %c0_251 = arith.constant 0 : index
    %835 = vector.load %arg5[%c14_250, %c0_251] : memref<16x256xf32, #tpu.memory_space<vmem>>, vector<2x256xf32>
    tpu.vector_store %arg5[%c14_250, %c0_251], %834 {strides = array<i32>} : memref<16x256xf32, #tpu.memory_space<vmem>>, vector<2x256xf32>,
    %836 = vector.broadcast %744 : f32 to vector<2x1xf32>
    %837 = arith.subf %836, %805 : vector<2x1xf32>
    %838 = arith.mulf %837, %820 : vector<2x1xf32>
    %839 = vector.broadcast %821 : f32 to vector<2x1xf32>
    %840 = arith.addf %838, %839 : vector<2x1xf32>
    %cst_252 = arith.constant 5.000000e-01 : f32
    %841 = vector.broadcast %cst_252 : f32 to vector<2x1xf32>
    %842 = arith.mulf %841, %840 : vector<2x1xf32>
    %843 = math.tanh %842 : vector<2x1xf32>
    %cst_253 = arith.constant 5.000000e-01 : f32
    %844 = vector.broadcast %cst_253 : f32 to vector<2x1xf32>
    %845 = arith.mulf %844, %843 : vector<2x1xf32>
    %cst_254 = arith.constant 5.000000e-01 : f32
    %846 = vector.broadcast %cst_254 : f32 to vector<2x1xf32>
    %847 = arith.addf %846, %845 : vector<2x1xf32>
    %c128 = arith.constant 128 : index
    %848 = memref.load %arg0[%c128] : memref<160xf32, #tpu.memory_space<smem>>
    %c48 = arith.constant 48 : index
    %849 = memref.load %arg0[%c48] : memref<160xf32, #tpu.memory_space<smem>>
    %c0_255 = arith.constant 0 : index
    %c0_256 = arith.constant 0 : index
    %850 = vector.load %arg5[%c0_255, %c0_256] : memref<16x256xf32, #tpu.memory_space<vmem>>, vector<2x256xf32>
    %851 = vector.broadcast %849 : f32 to vector<2x256xf32>
    %852 = arith.mulf %851, %850 : vector<2x256xf32>
    %c48_257 = arith.constant 48 : index
    %853 = memref.load %arg0[%c48_257] : memref<160xf32, #tpu.memory_space<smem>>
    %854 = vector.broadcast %853 : f32 to vector<2x1xf32>
    %855 = arith.mulf %854, %105 : vector<2x1xf32>
    %c56 = arith.constant 56 : index
    %856 = memref.load %arg0[%c56] : memref<160xf32, #tpu.memory_space<smem>>
    %c2_258 = arith.constant 2 : index
    %c0_259 = arith.constant 0 : index
    %857 = vector.load %arg5[%c2_258, %c0_259] : memref<16x256xf32, #tpu.memory_space<vmem>>, vector<2x256xf32>
    %858 = vector.broadcast %856 : f32 to vector<2x256xf32>
    %859 = arith.mulf %858, %857 : vector<2x256xf32>
    %860 = arith.addf %852, %859 : vector<2x256xf32>
    %861 = vector.broadcast %856 : f32 to vector<2x1xf32>
    %862 = arith.mulf %861, %211 : vector<2x1xf32>
    %863 = arith.addf %855, %862 : vector<2x1xf32>
    %c64 = arith.constant 64 : index
    %864 = memref.load %arg0[%c64] : memref<160xf32, #tpu.memory_space<smem>>
    %c4_260 = arith.constant 4 : index
    %c0_261 = arith.constant 0 : index
    %865 = vector.load %arg5[%c4_260, %c0_261] : memref<16x256xf32, #tpu.memory_space<vmem>>, vector<2x256xf32>
    %866 = vector.broadcast %864 : f32 to vector<2x256xf32>
    %867 = arith.mulf %866, %865 : vector<2x256xf32>
    %868 = arith.addf %860, %867 : vector<2x256xf32>
    %869 = vector.broadcast %864 : f32 to vector<2x1xf32>
    %870 = arith.mulf %869, %317 : vector<2x1xf32>
    %871 = arith.addf %863, %870 : vector<2x1xf32>
    %c72 = arith.constant 72 : index
    %872 = memref.load %arg0[%c72] : memref<160xf32, #tpu.memory_space<smem>>
    %c6_262 = arith.constant 6 : index
    %c0_263 = arith.constant 0 : index
    %873 = vector.load %arg5[%c6_262, %c0_263] : memref<16x256xf32, #tpu.memory_space<vmem>>, vector<2x256xf32>
    %874 = vector.broadcast %872 : f32 to vector<2x256xf32>
    %875 = arith.mulf %874, %873 : vector<2x256xf32>
    %876 = arith.addf %868, %875 : vector<2x256xf32>
    %877 = vector.broadcast %872 : f32 to vector<2x1xf32>
    %878 = arith.mulf %877, %423 : vector<2x1xf32>
    %879 = arith.addf %871, %878 : vector<2x1xf32>
    %c80 = arith.constant 80 : index
    %880 = memref.load %arg0[%c80] : memref<160xf32, #tpu.memory_space<smem>>
    %c8_264 = arith.constant 8 : index
    %c0_265 = arith.constant 0 : index
    %881 = vector.load %arg5[%c8_264, %c0_265] : memref<16x256xf32, #tpu.memory_space<vmem>>, vector<2x256xf32>
    %882 = vector.broadcast %880 : f32 to vector<2x256xf32>
    %883 = arith.mulf %882, %881 : vector<2x256xf32>
    %884 = arith.addf %876, %883 : vector<2x256xf32>
    %885 = vector.broadcast %880 : f32 to vector<2x1xf32>
    %886 = arith.mulf %885, %529 : vector<2x1xf32>
    %887 = arith.addf %879, %886 : vector<2x1xf32>
    %c88 = arith.constant 88 : index
    %888 = memref.load %arg0[%c88] : memref<160xf32, #tpu.memory_space<smem>>
    %c10_266 = arith.constant 10 : index
    %c0_267 = arith.constant 0 : index
    %889 = vector.load %arg5[%c10_266, %c0_267] : memref<16x256xf32, #tpu.memory_space<vmem>>, vector<2x256xf32>
    %890 = vector.broadcast %888 : f32 to vector<2x256xf32>
    %891 = arith.mulf %890, %889 : vector<2x256xf32>
    %892 = arith.addf %884, %891 : vector<2x256xf32>
    %893 = vector.broadcast %888 : f32 to vector<2x1xf32>
    %894 = arith.mulf %893, %635 : vector<2x1xf32>
    %895 = arith.addf %887, %894 : vector<2x1xf32>
    %c96 = arith.constant 96 : index
    %896 = memref.load %arg0[%c96] : memref<160xf32, #tpu.memory_space<smem>>
    %c12_268 = arith.constant 12 : index
    %c0_269 = arith.constant 0 : index
    %897 = vector.load %arg5[%c12_268, %c0_269] : memref<16x256xf32, #tpu.memory_space<vmem>>, vector<2x256xf32>
    %898 = vector.broadcast %896 : f32 to vector<2x256xf32>
    %899 = arith.mulf %898, %897 : vector<2x256xf32>
    %900 = arith.addf %892, %899 : vector<2x256xf32>
    %901 = vector.broadcast %896 : f32 to vector<2x1xf32>
    %902 = arith.mulf %901, %741 : vector<2x1xf32>
    %903 = arith.addf %895, %902 : vector<2x1xf32>
    %c104 = arith.constant 104 : index
    %904 = memref.load %arg0[%c104] : memref<160xf32, #tpu.memory_space<smem>>
    %c14_270 = arith.constant 14 : index
    %c0_271 = arith.constant 0 : index
    %905 = vector.load %arg5[%c14_270, %c0_271] : memref<16x256xf32, #tpu.memory_space<vmem>>, vector<2x256xf32>
    %906 = vector.broadcast %904 : f32 to vector<2x256xf32>
    %907 = arith.mulf %906, %905 : vector<2x256xf32>
    %908 = arith.addf %900, %907 : vector<2x256xf32>
    %909 = vector.broadcast %904 : f32 to vector<2x1xf32>
    %910 = arith.mulf %909, %847 : vector<2x1xf32>
    %911 = arith.addf %903, %910 : vector<2x1xf32>
    %912 = vector.broadcast %848 : f32 to vector<2x256xf32>
    %913 = arith.addf %908, %912 : vector<2x256xf32>
    %c0_272 = arith.constant 0 : index
    %c0_273 = arith.constant 0 : index
    %914 = vector.load %arg3[%c0_272, %c0_273] : memref<16x256xf32, #tpu.memory_space<vmem>>, vector<2x256xf32>
    tpu.vector_store %arg3[%c0_272, %c0_273], %913 {strides = array<i32>} : memref<16x256xf32, #tpu.memory_space<vmem>>, vector<2x256xf32>,
    %915 = vector.broadcast %848 : f32 to vector<2x1xf32>
    %916 = arith.addf %911, %915 : vector<2x1xf32>
    %c0_274 = arith.constant 0 : index
    %c0_275 = arith.constant 0 : index
    %917 = vector.load %arg4[%c0_274, %c0_275] : memref<2x8xf32, #tpu.memory_space<vmem>>, vector<2x1xf32>
    tpu.vector_store %arg4[%c0_274, %c0_275], %916 {strides = array<i32>} : memref<2x8xf32, #tpu.memory_space<vmem>>, vector<2x1xf32>,
    %c129 = arith.constant 129 : index
    %918 = memref.load %arg0[%c129] : memref<160xf32, #tpu.memory_space<smem>>
    %c49 = arith.constant 49 : index
    %919 = memref.load %arg0[%c49] : memref<160xf32, #tpu.memory_space<smem>>
    %c0_276 = arith.constant 0 : index
    %c0_277 = arith.constant 0 : index
    %920 = vector.load %arg5[%c0_276, %c0_277] : memref<16x256xf32, #tpu.memory_space<vmem>>, vector<2x256xf32>
    %921 = vector.broadcast %919 : f32 to vector<2x256xf32>
    %922 = arith.mulf %921, %920 : vector<2x256xf32>
    %c49_278 = arith.constant 49 : index
    %923 = memref.load %arg0[%c49_278] : memref<160xf32, #tpu.memory_space<smem>>
    %924 = vector.broadcast %923 : f32 to vector<2x1xf32>
    %925 = arith.mulf %924, %105 : vector<2x1xf32>
    %c57 = arith.constant 57 : index
    %926 = memref.load %arg0[%c57] : memref<160xf32, #tpu.memory_space<smem>>
    %c2_279 = arith.constant 2 : index
    %c0_280 = arith.constant 0 : index
    %927 = vector.load %arg5[%c2_279, %c0_280] : memref<16x256xf32, #tpu.memory_space<vmem>>, vector<2x256xf32>
    %928 = vector.broadcast %926 : f32 to vector<2x256xf32>
    %929 = arith.mulf %928, %927 : vector<2x256xf32>
    %930 = arith.addf %922, %929 : vector<2x256xf32>
    %931 = vector.broadcast %926 : f32 to vector<2x1xf32>
    %932 = arith.mulf %931, %211 : vector<2x1xf32>
    %933 = arith.addf %925, %932 : vector<2x1xf32>
    %c65 = arith.constant 65 : index
    %934 = memref.load %arg0[%c65] : memref<160xf32, #tpu.memory_space<smem>>
    %c4_281 = arith.constant 4 : index
    %c0_282 = arith.constant 0 : index
    %935 = vector.load %arg5[%c4_281, %c0_282] : memref<16x256xf32, #tpu.memory_space<vmem>>, vector<2x256xf32>
    %936 = vector.broadcast %934 : f32 to vector<2x256xf32>
    %937 = arith.mulf %936, %935 : vector<2x256xf32>
    %938 = arith.addf %930, %937 : vector<2x256xf32>
    %939 = vector.broadcast %934 : f32 to vector<2x1xf32>
    %940 = arith.mulf %939, %317 : vector<2x1xf32>
    %941 = arith.addf %933, %940 : vector<2x1xf32>
    %c73 = arith.constant 73 : index
    %942 = memref.load %arg0[%c73] : memref<160xf32, #tpu.memory_space<smem>>
    %c6_283 = arith.constant 6 : index
    %c0_284 = arith.constant 0 : index
    %943 = vector.load %arg5[%c6_283, %c0_284] : memref<16x256xf32, #tpu.memory_space<vmem>>, vector<2x256xf32>
    %944 = vector.broadcast %942 : f32 to vector<2x256xf32>
    %945 = arith.mulf %944, %943 : vector<2x256xf32>
    %946 = arith.addf %938, %945 : vector<2x256xf32>
    %947 = vector.broadcast %942 : f32 to vector<2x1xf32>
    %948 = arith.mulf %947, %423 : vector<2x1xf32>
    %949 = arith.addf %941, %948 : vector<2x1xf32>
    %c81 = arith.constant 81 : index
    %950 = memref.load %arg0[%c81] : memref<160xf32, #tpu.memory_space<smem>>
    %c8_285 = arith.constant 8 : index
    %c0_286 = arith.constant 0 : index
    %951 = vector.load %arg5[%c8_285, %c0_286] : memref<16x256xf32, #tpu.memory_space<vmem>>, vector<2x256xf32>
    %952 = vector.broadcast %950 : f32 to vector<2x256xf32>
    %953 = arith.mulf %952, %951 : vector<2x256xf32>
    %954 = arith.addf %946, %953 : vector<2x256xf32>
    %955 = vector.broadcast %950 : f32 to vector<2x1xf32>
    %956 = arith.mulf %955, %529 : vector<2x1xf32>
    %957 = arith.addf %949, %956 : vector<2x1xf32>
    %c89 = arith.constant 89 : index
    %958 = memref.load %arg0[%c89] : memref<160xf32, #tpu.memory_space<smem>>
    %c10_287 = arith.constant 10 : index
    %c0_288 = arith.constant 0 : index
    %959 = vector.load %arg5[%c10_287, %c0_288] : memref<16x256xf32, #tpu.memory_space<vmem>>, vector<2x256xf32>
    %960 = vector.broadcast %958 : f32 to vector<2x256xf32>
    %961 = arith.mulf %960, %959 : vector<2x256xf32>
    %962 = arith.addf %954, %961 : vector<2x256xf32>
    %963 = vector.broadcast %958 : f32 to vector<2x1xf32>
    %964 = arith.mulf %963, %635 : vector<2x1xf32>
    %965 = arith.addf %957, %964 : vector<2x1xf32>
    %c97 = arith.constant 97 : index
    %966 = memref.load %arg0[%c97] : memref<160xf32, #tpu.memory_space<smem>>
    %c12_289 = arith.constant 12 : index
    %c0_290 = arith.constant 0 : index
    %967 = vector.load %arg5[%c12_289, %c0_290] : memref<16x256xf32, #tpu.memory_space<vmem>>, vector<2x256xf32>
    %968 = vector.broadcast %966 : f32 to vector<2x256xf32>
    %969 = arith.mulf %968, %967 : vector<2x256xf32>
    %970 = arith.addf %962, %969 : vector<2x256xf32>
    %971 = vector.broadcast %966 : f32 to vector<2x1xf32>
    %972 = arith.mulf %971, %741 : vector<2x1xf32>
    %973 = arith.addf %965, %972 : vector<2x1xf32>
    %c105 = arith.constant 105 : index
    %974 = memref.load %arg0[%c105] : memref<160xf32, #tpu.memory_space<smem>>
    %c14_291 = arith.constant 14 : index
    %c0_292 = arith.constant 0 : index
    %975 = vector.load %arg5[%c14_291, %c0_292] : memref<16x256xf32, #tpu.memory_space<vmem>>, vector<2x256xf32>
    %976 = vector.broadcast %974 : f32 to vector<2x256xf32>
    %977 = arith.mulf %976, %975 : vector<2x256xf32>
    %978 = arith.addf %970, %977 : vector<2x256xf32>
    %979 = vector.broadcast %974 : f32 to vector<2x1xf32>
    %980 = arith.mulf %979, %847 : vector<2x1xf32>
    %981 = arith.addf %973, %980 : vector<2x1xf32>
    %982 = vector.broadcast %918 : f32 to vector<2x256xf32>
    %983 = arith.addf %978, %982 : vector<2x256xf32>
    %c2_293 = arith.constant 2 : index
    %c0_294 = arith.constant 0 : index
    %984 = vector.load %arg3[%c2_293, %c0_294] : memref<16x256xf32, #tpu.memory_space<vmem>>, vector<2x256xf32>
    tpu.vector_store %arg3[%c2_293, %c0_294], %983 {strides = array<i32>} : memref<16x256xf32, #tpu.memory_space<vmem>>, vector<2x256xf32>,
    %985 = vector.broadcast %918 : f32 to vector<2x1xf32>
    %986 = arith.addf %981, %985 : vector<2x1xf32>
    %c0_295 = arith.constant 0 : index
    %c1_296 = arith.constant 1 : index
    %987 = vector.load %arg4[%c0_295, %c1_296] : memref<2x8xf32, #tpu.memory_space<vmem>>, vector<2x1xf32>
    tpu.vector_store %arg4[%c0_295, %c1_296], %986 {strides = array<i32>} : memref<2x8xf32, #tpu.memory_space<vmem>>, vector<2x1xf32>,
    %c130 = arith.constant 130 : index
    %988 = memref.load %arg0[%c130] : memref<160xf32, #tpu.memory_space<smem>>
    %c50 = arith.constant 50 : index
    %989 = memref.load %arg0[%c50] : memref<160xf32, #tpu.memory_space<smem>>
    %c0_297 = arith.constant 0 : index
    %c0_298 = arith.constant 0 : index
    %990 = vector.load %arg5[%c0_297, %c0_298] : memref<16x256xf32, #tpu.memory_space<vmem>>, vector<2x256xf32>
    %991 = vector.broadcast %989 : f32 to vector<2x256xf32>
    %992 = arith.mulf %991, %990 : vector<2x256xf32>
    %c50_299 = arith.constant 50 : index
    %993 = memref.load %arg0[%c50_299] : memref<160xf32, #tpu.memory_space<smem>>
    %994 = vector.broadcast %993 : f32 to vector<2x1xf32>
    %995 = arith.mulf %994, %105 : vector<2x1xf32>
    %c58 = arith.constant 58 : index
    %996 = memref.load %arg0[%c58] : memref<160xf32, #tpu.memory_space<smem>>
    %c2_300 = arith.constant 2 : index
    %c0_301 = arith.constant 0 : index
    %997 = vector.load %arg5[%c2_300, %c0_301] : memref<16x256xf32, #tpu.memory_space<vmem>>, vector<2x256xf32>
    %998 = vector.broadcast %996 : f32 to vector<2x256xf32>
    %999 = arith.mulf %998, %997 : vector<2x256xf32>
    %1000 = arith.addf %992, %999 : vector<2x256xf32>
    %1001 = vector.broadcast %996 : f32 to vector<2x1xf32>
    %1002 = arith.mulf %1001, %211 : vector<2x1xf32>
    %1003 = arith.addf %995, %1002 : vector<2x1xf32>
    %c66 = arith.constant 66 : index
    %1004 = memref.load %arg0[%c66] : memref<160xf32, #tpu.memory_space<smem>>
    %c4_302 = arith.constant 4 : index
    %c0_303 = arith.constant 0 : index
    %1005 = vector.load %arg5[%c4_302, %c0_303] : memref<16x256xf32, #tpu.memory_space<vmem>>, vector<2x256xf32>
    %1006 = vector.broadcast %1004 : f32 to vector<2x256xf32>
    %1007 = arith.mulf %1006, %1005 : vector<2x256xf32>
    %1008 = arith.addf %1000, %1007 : vector<2x256xf32>
    %1009 = vector.broadcast %1004 : f32 to vector<2x1xf32>
    %1010 = arith.mulf %1009, %317 : vector<2x1xf32>
    %1011 = arith.addf %1003, %1010 : vector<2x1xf32>
    %c74 = arith.constant 74 : index
    %1012 = memref.load %arg0[%c74] : memref<160xf32, #tpu.memory_space<smem>>
    %c6_304 = arith.constant 6 : index
    %c0_305 = arith.constant 0 : index
    %1013 = vector.load %arg5[%c6_304, %c0_305] : memref<16x256xf32, #tpu.memory_space<vmem>>, vector<2x256xf32>
    %1014 = vector.broadcast %1012 : f32 to vector<2x256xf32>
    %1015 = arith.mulf %1014, %1013 : vector<2x256xf32>
    %1016 = arith.addf %1008, %1015 : vector<2x256xf32>
    %1017 = vector.broadcast %1012 : f32 to vector<2x1xf32>
    %1018 = arith.mulf %1017, %423 : vector<2x1xf32>
    %1019 = arith.addf %1011, %1018 : vector<2x1xf32>
    %c82 = arith.constant 82 : index
    %1020 = memref.load %arg0[%c82] : memref<160xf32, #tpu.memory_space<smem>>
    %c8_306 = arith.constant 8 : index
    %c0_307 = arith.constant 0 : index
    %1021 = vector.load %arg5[%c8_306, %c0_307] : memref<16x256xf32, #tpu.memory_space<vmem>>, vector<2x256xf32>
    %1022 = vector.broadcast %1020 : f32 to vector<2x256xf32>
    %1023 = arith.mulf %1022, %1021 : vector<2x256xf32>
    %1024 = arith.addf %1016, %1023 : vector<2x256xf32>
    %1025 = vector.broadcast %1020 : f32 to vector<2x1xf32>
    %1026 = arith.mulf %1025, %529 : vector<2x1xf32>
    %1027 = arith.addf %1019, %1026 : vector<2x1xf32>
    %c90 = arith.constant 90 : index
    %1028 = memref.load %arg0[%c90] : memref<160xf32, #tpu.memory_space<smem>>
    %c10_308 = arith.constant 10 : index
    %c0_309 = arith.constant 0 : index
    %1029 = vector.load %arg5[%c10_308, %c0_309] : memref<16x256xf32, #tpu.memory_space<vmem>>, vector<2x256xf32>
    %1030 = vector.broadcast %1028 : f32 to vector<2x256xf32>
    %1031 = arith.mulf %1030, %1029 : vector<2x256xf32>
    %1032 = arith.addf %1024, %1031 : vector<2x256xf32>
    %1033 = vector.broadcast %1028 : f32 to vector<2x1xf32>
    %1034 = arith.mulf %1033, %635 : vector<2x1xf32>
    %1035 = arith.addf %1027, %1034 : vector<2x1xf32>
    %c98 = arith.constant 98 : index
    %1036 = memref.load %arg0[%c98] : memref<160xf32, #tpu.memory_space<smem>>
    %c12_310 = arith.constant 12 : index
    %c0_311 = arith.constant 0 : index
    %1037 = vector.load %arg5[%c12_310, %c0_311] : memref<16x256xf32, #tpu.memory_space<vmem>>, vector<2x256xf32>
    %1038 = vector.broadcast %1036 : f32 to vector<2x256xf32>
    %1039 = arith.mulf %1038, %1037 : vector<2x256xf32>
    %1040 = arith.addf %1032, %1039 : vector<2x256xf32>
    %1041 = vector.broadcast %1036 : f32 to vector<2x1xf32>
    %1042 = arith.mulf %1041, %741 : vector<2x1xf32>
    %1043 = arith.addf %1035, %1042 : vector<2x1xf32>
    %c106 = arith.constant 106 : index
    %1044 = memref.load %arg0[%c106] : memref<160xf32, #tpu.memory_space<smem>>
    %c14_312 = arith.constant 14 : index
    %c0_313 = arith.constant 0 : index
    %1045 = vector.load %arg5[%c14_312, %c0_313] : memref<16x256xf32, #tpu.memory_space<vmem>>, vector<2x256xf32>
    %1046 = vector.broadcast %1044 : f32 to vector<2x256xf32>
    %1047 = arith.mulf %1046, %1045 : vector<2x256xf32>
    %1048 = arith.addf %1040, %1047 : vector<2x256xf32>
    %1049 = vector.broadcast %1044 : f32 to vector<2x1xf32>
    %1050 = arith.mulf %1049, %847 : vector<2x1xf32>
    %1051 = arith.addf %1043, %1050 : vector<2x1xf32>
    %1052 = vector.broadcast %988 : f32 to vector<2x256xf32>
    %1053 = arith.addf %1048, %1052 : vector<2x256xf32>
    %c4_314 = arith.constant 4 : index
    %c0_315 = arith.constant 0 : index
    %1054 = vector.load %arg3[%c4_314, %c0_315] : memref<16x256xf32, #tpu.memory_space<vmem>>, vector<2x256xf32>
    tpu.vector_store %arg3[%c4_314, %c0_315], %1053 {strides = array<i32>} : memref<16x256xf32, #tpu.memory_space<vmem>>, vector<2x256xf32>,
    %1055 = vector.broadcast %988 : f32 to vector<2x1xf32>
    %1056 = arith.addf %1051, %1055 : vector<2x1xf32>
    %c0_316 = arith.constant 0 : index
    %c2_317 = arith.constant 2 : index
    %1057 = vector.load %arg4[%c0_316, %c2_317] : memref<2x8xf32, #tpu.memory_space<vmem>>, vector<2x1xf32>
    tpu.vector_store %arg4[%c0_316, %c2_317], %1056 {strides = array<i32>} : memref<2x8xf32, #tpu.memory_space<vmem>>, vector<2x1xf32>,
    %c131 = arith.constant 131 : index
    %1058 = memref.load %arg0[%c131] : memref<160xf32, #tpu.memory_space<smem>>
    %c51 = arith.constant 51 : index
    %1059 = memref.load %arg0[%c51] : memref<160xf32, #tpu.memory_space<smem>>
    %c0_318 = arith.constant 0 : index
    %c0_319 = arith.constant 0 : index
    %1060 = vector.load %arg5[%c0_318, %c0_319] : memref<16x256xf32, #tpu.memory_space<vmem>>, vector<2x256xf32>
    %1061 = vector.broadcast %1059 : f32 to vector<2x256xf32>
    %1062 = arith.mulf %1061, %1060 : vector<2x256xf32>
    %c51_320 = arith.constant 51 : index
    %1063 = memref.load %arg0[%c51_320] : memref<160xf32, #tpu.memory_space<smem>>
    %1064 = vector.broadcast %1063 : f32 to vector<2x1xf32>
    %1065 = arith.mulf %1064, %105 : vector<2x1xf32>
    %c59 = arith.constant 59 : index
    %1066 = memref.load %arg0[%c59] : memref<160xf32, #tpu.memory_space<smem>>
    %c2_321 = arith.constant 2 : index
    %c0_322 = arith.constant 0 : index
    %1067 = vector.load %arg5[%c2_321, %c0_322] : memref<16x256xf32, #tpu.memory_space<vmem>>, vector<2x256xf32>
    %1068 = vector.broadcast %1066 : f32 to vector<2x256xf32>
    %1069 = arith.mulf %1068, %1067 : vector<2x256xf32>
    %1070 = arith.addf %1062, %1069 : vector<2x256xf32>
    %1071 = vector.broadcast %1066 : f32 to vector<2x1xf32>
    %1072 = arith.mulf %1071, %211 : vector<2x1xf32>
    %1073 = arith.addf %1065, %1072 : vector<2x1xf32>
    %c67 = arith.constant 67 : index
    %1074 = memref.load %arg0[%c67] : memref<160xf32, #tpu.memory_space<smem>>
    %c4_323 = arith.constant 4 : index
    %c0_324 = arith.constant 0 : index
    %1075 = vector.load %arg5[%c4_323, %c0_324] : memref<16x256xf32, #tpu.memory_space<vmem>>, vector<2x256xf32>
    %1076 = vector.broadcast %1074 : f32 to vector<2x256xf32>
    %1077 = arith.mulf %1076, %1075 : vector<2x256xf32>
    %1078 = arith.addf %1070, %1077 : vector<2x256xf32>
    %1079 = vector.broadcast %1074 : f32 to vector<2x1xf32>
    %1080 = arith.mulf %1079, %317 : vector<2x1xf32>
    %1081 = arith.addf %1073, %1080 : vector<2x1xf32>
    %c75 = arith.constant 75 : index
    %1082 = memref.load %arg0[%c75] : memref<160xf32, #tpu.memory_space<smem>>
    %c6_325 = arith.constant 6 : index
    %c0_326 = arith.constant 0 : index
    %1083 = vector.load %arg5[%c6_325, %c0_326] : memref<16x256xf32, #tpu.memory_space<vmem>>, vector<2x256xf32>
    %1084 = vector.broadcast %1082 : f32 to vector<2x256xf32>
    %1085 = arith.mulf %1084, %1083 : vector<2x256xf32>
    %1086 = arith.addf %1078, %1085 : vector<2x256xf32>
    %1087 = vector.broadcast %1082 : f32 to vector<2x1xf32>
    %1088 = arith.mulf %1087, %423 : vector<2x1xf32>
    %1089 = arith.addf %1081, %1088 : vector<2x1xf32>
    %c83 = arith.constant 83 : index
    %1090 = memref.load %arg0[%c83] : memref<160xf32, #tpu.memory_space<smem>>
    %c8_327 = arith.constant 8 : index
    %c0_328 = arith.constant 0 : index
    %1091 = vector.load %arg5[%c8_327, %c0_328] : memref<16x256xf32, #tpu.memory_space<vmem>>, vector<2x256xf32>
    %1092 = vector.broadcast %1090 : f32 to vector<2x256xf32>
    %1093 = arith.mulf %1092, %1091 : vector<2x256xf32>
    %1094 = arith.addf %1086, %1093 : vector<2x256xf32>
    %1095 = vector.broadcast %1090 : f32 to vector<2x1xf32>
    %1096 = arith.mulf %1095, %529 : vector<2x1xf32>
    %1097 = arith.addf %1089, %1096 : vector<2x1xf32>
    %c91 = arith.constant 91 : index
    %1098 = memref.load %arg0[%c91] : memref<160xf32, #tpu.memory_space<smem>>
    %c10_329 = arith.constant 10 : index
    %c0_330 = arith.constant 0 : index
    %1099 = vector.load %arg5[%c10_329, %c0_330] : memref<16x256xf32, #tpu.memory_space<vmem>>, vector<2x256xf32>
    %1100 = vector.broadcast %1098 : f32 to vector<2x256xf32>
    %1101 = arith.mulf %1100, %1099 : vector<2x256xf32>
    %1102 = arith.addf %1094, %1101 : vector<2x256xf32>
    %1103 = vector.broadcast %1098 : f32 to vector<2x1xf32>
    %1104 = arith.mulf %1103, %635 : vector<2x1xf32>
    %1105 = arith.addf %1097, %1104 : vector<2x1xf32>
    %c99 = arith.constant 99 : index
    %1106 = memref.load %arg0[%c99] : memref<160xf32, #tpu.memory_space<smem>>
    %c12_331 = arith.constant 12 : index
    %c0_332 = arith.constant 0 : index
    %1107 = vector.load %arg5[%c12_331, %c0_332] : memref<16x256xf32, #tpu.memory_space<vmem>>, vector<2x256xf32>
    %1108 = vector.broadcast %1106 : f32 to vector<2x256xf32>
    %1109 = arith.mulf %1108, %1107 : vector<2x256xf32>
    %1110 = arith.addf %1102, %1109 : vector<2x256xf32>
    %1111 = vector.broadcast %1106 : f32 to vector<2x1xf32>
    %1112 = arith.mulf %1111, %741 : vector<2x1xf32>
    %1113 = arith.addf %1105, %1112 : vector<2x1xf32>
    %c107 = arith.constant 107 : index
    %1114 = memref.load %arg0[%c107] : memref<160xf32, #tpu.memory_space<smem>>
    %c14_333 = arith.constant 14 : index
    %c0_334 = arith.constant 0 : index
    %1115 = vector.load %arg5[%c14_333, %c0_334] : memref<16x256xf32, #tpu.memory_space<vmem>>, vector<2x256xf32>
    %1116 = vector.broadcast %1114 : f32 to vector<2x256xf32>
    %1117 = arith.mulf %1116, %1115 : vector<2x256xf32>
    %1118 = arith.addf %1110, %1117 : vector<2x256xf32>
    %1119 = vector.broadcast %1114 : f32 to vector<2x1xf32>
    %1120 = arith.mulf %1119, %847 : vector<2x1xf32>
    %1121 = arith.addf %1113, %1120 : vector<2x1xf32>
    %1122 = vector.broadcast %1058 : f32 to vector<2x256xf32>
    %1123 = arith.addf %1118, %1122 : vector<2x256xf32>
    %c6_335 = arith.constant 6 : index
    %c0_336 = arith.constant 0 : index
    %1124 = vector.load %arg3[%c6_335, %c0_336] : memref<16x256xf32, #tpu.memory_space<vmem>>, vector<2x256xf32>
    tpu.vector_store %arg3[%c6_335, %c0_336], %1123 {strides = array<i32>} : memref<16x256xf32, #tpu.memory_space<vmem>>, vector<2x256xf32>,
    %1125 = vector.broadcast %1058 : f32 to vector<2x1xf32>
    %1126 = arith.addf %1121, %1125 : vector<2x1xf32>
    %c0_337 = arith.constant 0 : index
    %c3_338 = arith.constant 3 : index
    %1127 = vector.load %arg4[%c0_337, %c3_338] : memref<2x8xf32, #tpu.memory_space<vmem>>, vector<2x1xf32>
    tpu.vector_store %arg4[%c0_337, %c3_338], %1126 {strides = array<i32>} : memref<2x8xf32, #tpu.memory_space<vmem>>, vector<2x1xf32>,
    %c132 = arith.constant 132 : index
    %1128 = memref.load %arg0[%c132] : memref<160xf32, #tpu.memory_space<smem>>
    %c52 = arith.constant 52 : index
    %1129 = memref.load %arg0[%c52] : memref<160xf32, #tpu.memory_space<smem>>
    %c0_339 = arith.constant 0 : index
    %c0_340 = arith.constant 0 : index
    %1130 = vector.load %arg5[%c0_339, %c0_340] : memref<16x256xf32, #tpu.memory_space<vmem>>, vector<2x256xf32>
    %1131 = vector.broadcast %1129 : f32 to vector<2x256xf32>
    %1132 = arith.mulf %1131, %1130 : vector<2x256xf32>
    %c52_341 = arith.constant 52 : index
    %1133 = memref.load %arg0[%c52_341] : memref<160xf32, #tpu.memory_space<smem>>
    %1134 = vector.broadcast %1133 : f32 to vector<2x1xf32>
    %1135 = arith.mulf %1134, %105 : vector<2x1xf32>
    %c60 = arith.constant 60 : index
    %1136 = memref.load %arg0[%c60] : memref<160xf32, #tpu.memory_space<smem>>
    %c2_342 = arith.constant 2 : index
    %c0_343 = arith.constant 0 : index
    %1137 = vector.load %arg5[%c2_342, %c0_343] : memref<16x256xf32, #tpu.memory_space<vmem>>, vector<2x256xf32>
    %1138 = vector.broadcast %1136 : f32 to vector<2x256xf32>
    %1139 = arith.mulf %1138, %1137 : vector<2x256xf32>
    %1140 = arith.addf %1132, %1139 : vector<2x256xf32>
    %1141 = vector.broadcast %1136 : f32 to vector<2x1xf32>
    %1142 = arith.mulf %1141, %211 : vector<2x1xf32>
    %1143 = arith.addf %1135, %1142 : vector<2x1xf32>
    %c68 = arith.constant 68 : index
    %1144 = memref.load %arg0[%c68] : memref<160xf32, #tpu.memory_space<smem>>
    %c4_344 = arith.constant 4 : index
    %c0_345 = arith.constant 0 : index
    %1145 = vector.load %arg5[%c4_344, %c0_345] : memref<16x256xf32, #tpu.memory_space<vmem>>, vector<2x256xf32>
    %1146 = vector.broadcast %1144 : f32 to vector<2x256xf32>
    %1147 = arith.mulf %1146, %1145 : vector<2x256xf32>
    %1148 = arith.addf %1140, %1147 : vector<2x256xf32>
    %1149 = vector.broadcast %1144 : f32 to vector<2x1xf32>
    %1150 = arith.mulf %1149, %317 : vector<2x1xf32>
    %1151 = arith.addf %1143, %1150 : vector<2x1xf32>
    %c76 = arith.constant 76 : index
    %1152 = memref.load %arg0[%c76] : memref<160xf32, #tpu.memory_space<smem>>
    %c6_346 = arith.constant 6 : index
    %c0_347 = arith.constant 0 : index
    %1153 = vector.load %arg5[%c6_346, %c0_347] : memref<16x256xf32, #tpu.memory_space<vmem>>, vector<2x256xf32>
    %1154 = vector.broadcast %1152 : f32 to vector<2x256xf32>
    %1155 = arith.mulf %1154, %1153 : vector<2x256xf32>
    %1156 = arith.addf %1148, %1155 : vector<2x256xf32>
    %1157 = vector.broadcast %1152 : f32 to vector<2x1xf32>
    %1158 = arith.mulf %1157, %423 : vector<2x1xf32>
    %1159 = arith.addf %1151, %1158 : vector<2x1xf32>
    %c84 = arith.constant 84 : index
    %1160 = memref.load %arg0[%c84] : memref<160xf32, #tpu.memory_space<smem>>
    %c8_348 = arith.constant 8 : index
    %c0_349 = arith.constant 0 : index
    %1161 = vector.load %arg5[%c8_348, %c0_349] : memref<16x256xf32, #tpu.memory_space<vmem>>, vector<2x256xf32>
    %1162 = vector.broadcast %1160 : f32 to vector<2x256xf32>
    %1163 = arith.mulf %1162, %1161 : vector<2x256xf32>
    %1164 = arith.addf %1156, %1163 : vector<2x256xf32>
    %1165 = vector.broadcast %1160 : f32 to vector<2x1xf32>
    %1166 = arith.mulf %1165, %529 : vector<2x1xf32>
    %1167 = arith.addf %1159, %1166 : vector<2x1xf32>
    %c92 = arith.constant 92 : index
    %1168 = memref.load %arg0[%c92] : memref<160xf32, #tpu.memory_space<smem>>
    %c10_350 = arith.constant 10 : index
    %c0_351 = arith.constant 0 : index
    %1169 = vector.load %arg5[%c10_350, %c0_351] : memref<16x256xf32, #tpu.memory_space<vmem>>, vector<2x256xf32>
    %1170 = vector.broadcast %1168 : f32 to vector<2x256xf32>
    %1171 = arith.mulf %1170, %1169 : vector<2x256xf32>
    %1172 = arith.addf %1164, %1171 : vector<2x256xf32>
    %1173 = vector.broadcast %1168 : f32 to vector<2x1xf32>
    %1174 = arith.mulf %1173, %635 : vector<2x1xf32>
    %1175 = arith.addf %1167, %1174 : vector<2x1xf32>
    %c100 = arith.constant 100 : index
    %1176 = memref.load %arg0[%c100] : memref<160xf32, #tpu.memory_space<smem>>
    %c12_352 = arith.constant 12 : index
    %c0_353 = arith.constant 0 : index
    %1177 = vector.load %arg5[%c12_352, %c0_353] : memref<16x256xf32, #tpu.memory_space<vmem>>, vector<2x256xf32>
    %1178 = vector.broadcast %1176 : f32 to vector<2x256xf32>
    %1179 = arith.mulf %1178, %1177 : vector<2x256xf32>
    %1180 = arith.addf %1172, %1179 : vector<2x256xf32>
    %1181 = vector.broadcast %1176 : f32 to vector<2x1xf32>
    %1182 = arith.mulf %1181, %741 : vector<2x1xf32>
    %1183 = arith.addf %1175, %1182 : vector<2x1xf32>
    %c108 = arith.constant 108 : index
    %1184 = memref.load %arg0[%c108] : memref<160xf32, #tpu.memory_space<smem>>
    %c14_354 = arith.constant 14 : index
    %c0_355 = arith.constant 0 : index
    %1185 = vector.load %arg5[%c14_354, %c0_355] : memref<16x256xf32, #tpu.memory_space<vmem>>, vector<2x256xf32>
    %1186 = vector.broadcast %1184 : f32 to vector<2x256xf32>
    %1187 = arith.mulf %1186, %1185 : vector<2x256xf32>
    %1188 = arith.addf %1180, %1187 : vector<2x256xf32>
    %1189 = vector.broadcast %1184 : f32 to vector<2x1xf32>
    %1190 = arith.mulf %1189, %847 : vector<2x1xf32>
    %1191 = arith.addf %1183, %1190 : vector<2x1xf32>
    %1192 = vector.broadcast %1128 : f32 to vector<2x256xf32>
    %1193 = arith.addf %1188, %1192 : vector<2x256xf32>
    %c8_356 = arith.constant 8 : index
    %c0_357 = arith.constant 0 : index
    %1194 = vector.load %arg3[%c8_356, %c0_357] : memref<16x256xf32, #tpu.memory_space<vmem>>, vector<2x256xf32>
    tpu.vector_store %arg3[%c8_356, %c0_357], %1193 {strides = array<i32>} : memref<16x256xf32, #tpu.memory_space<vmem>>, vector<2x256xf32>,
    %1195 = vector.broadcast %1128 : f32 to vector<2x1xf32>
    %1196 = arith.addf %1191, %1195 : vector<2x1xf32>
    %c0_358 = arith.constant 0 : index
    %c4_359 = arith.constant 4 : index
    %1197 = vector.load %arg4[%c0_358, %c4_359] : memref<2x8xf32, #tpu.memory_space<vmem>>, vector<2x1xf32>
    tpu.vector_store %arg4[%c0_358, %c4_359], %1196 {strides = array<i32>} : memref<2x8xf32, #tpu.memory_space<vmem>>, vector<2x1xf32>,
    %c133 = arith.constant 133 : index
    %1198 = memref.load %arg0[%c133] : memref<160xf32, #tpu.memory_space<smem>>
    %c53 = arith.constant 53 : index
    %1199 = memref.load %arg0[%c53] : memref<160xf32, #tpu.memory_space<smem>>
    %c0_360 = arith.constant 0 : index
    %c0_361 = arith.constant 0 : index
    %1200 = vector.load %arg5[%c0_360, %c0_361] : memref<16x256xf32, #tpu.memory_space<vmem>>, vector<2x256xf32>
    %1201 = vector.broadcast %1199 : f32 to vector<2x256xf32>
    %1202 = arith.mulf %1201, %1200 : vector<2x256xf32>
    %c53_362 = arith.constant 53 : index
    %1203 = memref.load %arg0[%c53_362] : memref<160xf32, #tpu.memory_space<smem>>
    %1204 = vector.broadcast %1203 : f32 to vector<2x1xf32>
    %1205 = arith.mulf %1204, %105 : vector<2x1xf32>
    %c61 = arith.constant 61 : index
    %1206 = memref.load %arg0[%c61] : memref<160xf32, #tpu.memory_space<smem>>
    %c2_363 = arith.constant 2 : index
    %c0_364 = arith.constant 0 : index
    %1207 = vector.load %arg5[%c2_363, %c0_364] : memref<16x256xf32, #tpu.memory_space<vmem>>, vector<2x256xf32>
    %1208 = vector.broadcast %1206 : f32 to vector<2x256xf32>
    %1209 = arith.mulf %1208, %1207 : vector<2x256xf32>
    %1210 = arith.addf %1202, %1209 : vector<2x256xf32>
    %1211 = vector.broadcast %1206 : f32 to vector<2x1xf32>
    %1212 = arith.mulf %1211, %211 : vector<2x1xf32>
    %1213 = arith.addf %1205, %1212 : vector<2x1xf32>
    %c69 = arith.constant 69 : index
    %1214 = memref.load %arg0[%c69] : memref<160xf32, #tpu.memory_space<smem>>
    %c4_365 = arith.constant 4 : index
    %c0_366 = arith.constant 0 : index
    %1215 = vector.load %arg5[%c4_365, %c0_366] : memref<16x256xf32, #tpu.memory_space<vmem>>, vector<2x256xf32>
    %1216 = vector.broadcast %1214 : f32 to vector<2x256xf32>
    %1217 = arith.mulf %1216, %1215 : vector<2x256xf32>
    %1218 = arith.addf %1210, %1217 : vector<2x256xf32>
    %1219 = vector.broadcast %1214 : f32 to vector<2x1xf32>
    %1220 = arith.mulf %1219, %317 : vector<2x1xf32>
    %1221 = arith.addf %1213, %1220 : vector<2x1xf32>
    %c77 = arith.constant 77 : index
    %1222 = memref.load %arg0[%c77] : memref<160xf32, #tpu.memory_space<smem>>
    %c6_367 = arith.constant 6 : index
    %c0_368 = arith.constant 0 : index
    %1223 = vector.load %arg5[%c6_367, %c0_368] : memref<16x256xf32, #tpu.memory_space<vmem>>, vector<2x256xf32>
    %1224 = vector.broadcast %1222 : f32 to vector<2x256xf32>
    %1225 = arith.mulf %1224, %1223 : vector<2x256xf32>
    %1226 = arith.addf %1218, %1225 : vector<2x256xf32>
    %1227 = vector.broadcast %1222 : f32 to vector<2x1xf32>
    %1228 = arith.mulf %1227, %423 : vector<2x1xf32>
    %1229 = arith.addf %1221, %1228 : vector<2x1xf32>
    %c85 = arith.constant 85 : index
    %1230 = memref.load %arg0[%c85] : memref<160xf32, #tpu.memory_space<smem>>
    %c8_369 = arith.constant 8 : index
    %c0_370 = arith.constant 0 : index
    %1231 = vector.load %arg5[%c8_369, %c0_370] : memref<16x256xf32, #tpu.memory_space<vmem>>, vector<2x256xf32>
    %1232 = vector.broadcast %1230 : f32 to vector<2x256xf32>
    %1233 = arith.mulf %1232, %1231 : vector<2x256xf32>
    %1234 = arith.addf %1226, %1233 : vector<2x256xf32>
    %1235 = vector.broadcast %1230 : f32 to vector<2x1xf32>
    %1236 = arith.mulf %1235, %529 : vector<2x1xf32>
    %1237 = arith.addf %1229, %1236 : vector<2x1xf32>
    %c93 = arith.constant 93 : index
    %1238 = memref.load %arg0[%c93] : memref<160xf32, #tpu.memory_space<smem>>
    %c10_371 = arith.constant 10 : index
    %c0_372 = arith.constant 0 : index
    %1239 = vector.load %arg5[%c10_371, %c0_372] : memref<16x256xf32, #tpu.memory_space<vmem>>, vector<2x256xf32>
    %1240 = vector.broadcast %1238 : f32 to vector<2x256xf32>
    %1241 = arith.mulf %1240, %1239 : vector<2x256xf32>
    %1242 = arith.addf %1234, %1241 : vector<2x256xf32>
    %1243 = vector.broadcast %1238 : f32 to vector<2x1xf32>
    %1244 = arith.mulf %1243, %635 : vector<2x1xf32>
    %1245 = arith.addf %1237, %1244 : vector<2x1xf32>
    %c101 = arith.constant 101 : index
    %1246 = memref.load %arg0[%c101] : memref<160xf32, #tpu.memory_space<smem>>
    %c12_373 = arith.constant 12 : index
    %c0_374 = arith.constant 0 : index
    %1247 = vector.load %arg5[%c12_373, %c0_374] : memref<16x256xf32, #tpu.memory_space<vmem>>, vector<2x256xf32>
    %1248 = vector.broadcast %1246 : f32 to vector<2x256xf32>
    %1249 = arith.mulf %1248, %1247 : vector<2x256xf32>
    %1250 = arith.addf %1242, %1249 : vector<2x256xf32>
    %1251 = vector.broadcast %1246 : f32 to vector<2x1xf32>
    %1252 = arith.mulf %1251, %741 : vector<2x1xf32>
    %1253 = arith.addf %1245, %1252 : vector<2x1xf32>
    %c109 = arith.constant 109 : index
    %1254 = memref.load %arg0[%c109] : memref<160xf32, #tpu.memory_space<smem>>
    %c14_375 = arith.constant 14 : index
    %c0_376 = arith.constant 0 : index
    %1255 = vector.load %arg5[%c14_375, %c0_376] : memref<16x256xf32, #tpu.memory_space<vmem>>, vector<2x256xf32>
    %1256 = vector.broadcast %1254 : f32 to vector<2x256xf32>
    %1257 = arith.mulf %1256, %1255 : vector<2x256xf32>
    %1258 = arith.addf %1250, %1257 : vector<2x256xf32>
    %1259 = vector.broadcast %1254 : f32 to vector<2x1xf32>
    %1260 = arith.mulf %1259, %847 : vector<2x1xf32>
    %1261 = arith.addf %1253, %1260 : vector<2x1xf32>
    %1262 = vector.broadcast %1198 : f32 to vector<2x256xf32>
    %1263 = arith.addf %1258, %1262 : vector<2x256xf32>
    %c10_377 = arith.constant 10 : index
    %c0_378 = arith.constant 0 : index
    %1264 = vector.load %arg3[%c10_377, %c0_378] : memref<16x256xf32, #tpu.memory_space<vmem>>, vector<2x256xf32>
    tpu.vector_store %arg3[%c10_377, %c0_378], %1263 {strides = array<i32>} : memref<16x256xf32, #tpu.memory_space<vmem>>, vector<2x256xf32>,
    %1265 = vector.broadcast %1198 : f32 to vector<2x1xf32>
    %1266 = arith.addf %1261, %1265 : vector<2x1xf32>
    %c0_379 = arith.constant 0 : index
    %c5_380 = arith.constant 5 : index
    %1267 = vector.load %arg4[%c0_379, %c5_380] : memref<2x8xf32, #tpu.memory_space<vmem>>, vector<2x1xf32>
    tpu.vector_store %arg4[%c0_379, %c5_380], %1266 {strides = array<i32>} : memref<2x8xf32, #tpu.memory_space<vmem>>, vector<2x1xf32>,
    %c134 = arith.constant 134 : index
    %1268 = memref.load %arg0[%c134] : memref<160xf32, #tpu.memory_space<smem>>
    %c54 = arith.constant 54 : index
    %1269 = memref.load %arg0[%c54] : memref<160xf32, #tpu.memory_space<smem>>
    %c0_381 = arith.constant 0 : index
    %c0_382 = arith.constant 0 : index
    %1270 = vector.load %arg5[%c0_381, %c0_382] : memref<16x256xf32, #tpu.memory_space<vmem>>, vector<2x256xf32>
    %1271 = vector.broadcast %1269 : f32 to vector<2x256xf32>
    %1272 = arith.mulf %1271, %1270 : vector<2x256xf32>
    %c54_383 = arith.constant 54 : index
    %1273 = memref.load %arg0[%c54_383] : memref<160xf32, #tpu.memory_space<smem>>
    %1274 = vector.broadcast %1273 : f32 to vector<2x1xf32>
    %1275 = arith.mulf %1274, %105 : vector<2x1xf32>
    %c62 = arith.constant 62 : index
    %1276 = memref.load %arg0[%c62] : memref<160xf32, #tpu.memory_space<smem>>
    %c2_384 = arith.constant 2 : index
    %c0_385 = arith.constant 0 : index
    %1277 = vector.load %arg5[%c2_384, %c0_385] : memref<16x256xf32, #tpu.memory_space<vmem>>, vector<2x256xf32>
    %1278 = vector.broadcast %1276 : f32 to vector<2x256xf32>
    %1279 = arith.mulf %1278, %1277 : vector<2x256xf32>
    %1280 = arith.addf %1272, %1279 : vector<2x256xf32>
    %1281 = vector.broadcast %1276 : f32 to vector<2x1xf32>
    %1282 = arith.mulf %1281, %211 : vector<2x1xf32>
    %1283 = arith.addf %1275, %1282 : vector<2x1xf32>
    %c70 = arith.constant 70 : index
    %1284 = memref.load %arg0[%c70] : memref<160xf32, #tpu.memory_space<smem>>
    %c4_386 = arith.constant 4 : index
    %c0_387 = arith.constant 0 : index
    %1285 = vector.load %arg5[%c4_386, %c0_387] : memref<16x256xf32, #tpu.memory_space<vmem>>, vector<2x256xf32>
    %1286 = vector.broadcast %1284 : f32 to vector<2x256xf32>
    %1287 = arith.mulf %1286, %1285 : vector<2x256xf32>
    %1288 = arith.addf %1280, %1287 : vector<2x256xf32>
    %1289 = vector.broadcast %1284 : f32 to vector<2x1xf32>
    %1290 = arith.mulf %1289, %317 : vector<2x1xf32>
    %1291 = arith.addf %1283, %1290 : vector<2x1xf32>
    %c78 = arith.constant 78 : index
    %1292 = memref.load %arg0[%c78] : memref<160xf32, #tpu.memory_space<smem>>
    %c6_388 = arith.constant 6 : index
    %c0_389 = arith.constant 0 : index
    %1293 = vector.load %arg5[%c6_388, %c0_389] : memref<16x256xf32, #tpu.memory_space<vmem>>, vector<2x256xf32>
    %1294 = vector.broadcast %1292 : f32 to vector<2x256xf32>
    %1295 = arith.mulf %1294, %1293 : vector<2x256xf32>
    %1296 = arith.addf %1288, %1295 : vector<2x256xf32>
    %1297 = vector.broadcast %1292 : f32 to vector<2x1xf32>
    %1298 = arith.mulf %1297, %423 : vector<2x1xf32>
    %1299 = arith.addf %1291, %1298 : vector<2x1xf32>
    %c86 = arith.constant 86 : index
    %1300 = memref.load %arg0[%c86] : memref<160xf32, #tpu.memory_space<smem>>
    %c8_390 = arith.constant 8 : index
    %c0_391 = arith.constant 0 : index
    %1301 = vector.load %arg5[%c8_390, %c0_391] : memref<16x256xf32, #tpu.memory_space<vmem>>, vector<2x256xf32>
    %1302 = vector.broadcast %1300 : f32 to vector<2x256xf32>
    %1303 = arith.mulf %1302, %1301 : vector<2x256xf32>
    %1304 = arith.addf %1296, %1303 : vector<2x256xf32>
    %1305 = vector.broadcast %1300 : f32 to vector<2x1xf32>
    %1306 = arith.mulf %1305, %529 : vector<2x1xf32>
    %1307 = arith.addf %1299, %1306 : vector<2x1xf32>
    %c94 = arith.constant 94 : index
    %1308 = memref.load %arg0[%c94] : memref<160xf32, #tpu.memory_space<smem>>
    %c10_392 = arith.constant 10 : index
    %c0_393 = arith.constant 0 : index
    %1309 = vector.load %arg5[%c10_392, %c0_393] : memref<16x256xf32, #tpu.memory_space<vmem>>, vector<2x256xf32>
    %1310 = vector.broadcast %1308 : f32 to vector<2x256xf32>
    %1311 = arith.mulf %1310, %1309 : vector<2x256xf32>
    %1312 = arith.addf %1304, %1311 : vector<2x256xf32>
    %1313 = vector.broadcast %1308 : f32 to vector<2x1xf32>
    %1314 = arith.mulf %1313, %635 : vector<2x1xf32>
    %1315 = arith.addf %1307, %1314 : vector<2x1xf32>
    %c102 = arith.constant 102 : index
    %1316 = memref.load %arg0[%c102] : memref<160xf32, #tpu.memory_space<smem>>
    %c12_394 = arith.constant 12 : index
    %c0_395 = arith.constant 0 : index
    %1317 = vector.load %arg5[%c12_394, %c0_395] : memref<16x256xf32, #tpu.memory_space<vmem>>, vector<2x256xf32>
    %1318 = vector.broadcast %1316 : f32 to vector<2x256xf32>
    %1319 = arith.mulf %1318, %1317 : vector<2x256xf32>
    %1320 = arith.addf %1312, %1319 : vector<2x256xf32>
    %1321 = vector.broadcast %1316 : f32 to vector<2x1xf32>
    %1322 = arith.mulf %1321, %741 : vector<2x1xf32>
    %1323 = arith.addf %1315, %1322 : vector<2x1xf32>
    %c110 = arith.constant 110 : index
    %1324 = memref.load %arg0[%c110] : memref<160xf32, #tpu.memory_space<smem>>
    %c14_396 = arith.constant 14 : index
    %c0_397 = arith.constant 0 : index
    %1325 = vector.load %arg5[%c14_396, %c0_397] : memref<16x256xf32, #tpu.memory_space<vmem>>, vector<2x256xf32>
    %1326 = vector.broadcast %1324 : f32 to vector<2x256xf32>
    %1327 = arith.mulf %1326, %1325 : vector<2x256xf32>
    %1328 = arith.addf %1320, %1327 : vector<2x256xf32>
    %1329 = vector.broadcast %1324 : f32 to vector<2x1xf32>
    %1330 = arith.mulf %1329, %847 : vector<2x1xf32>
    %1331 = arith.addf %1323, %1330 : vector<2x1xf32>
    %1332 = vector.broadcast %1268 : f32 to vector<2x256xf32>
    %1333 = arith.addf %1328, %1332 : vector<2x256xf32>
    %c12_398 = arith.constant 12 : index
    %c0_399 = arith.constant 0 : index
    %1334 = vector.load %arg3[%c12_398, %c0_399] : memref<16x256xf32, #tpu.memory_space<vmem>>, vector<2x256xf32>
    tpu.vector_store %arg3[%c12_398, %c0_399], %1333 {strides = array<i32>} : memref<16x256xf32, #tpu.memory_space<vmem>>, vector<2x256xf32>,
    %1335 = vector.broadcast %1268 : f32 to vector<2x1xf32>
    %1336 = arith.addf %1331, %1335 : vector<2x1xf32>
    %c0_400 = arith.constant 0 : index
    %c6_401 = arith.constant 6 : index
    %1337 = vector.load %arg4[%c0_400, %c6_401] : memref<2x8xf32, #tpu.memory_space<vmem>>, vector<2x1xf32>
    tpu.vector_store %arg4[%c0_400, %c6_401], %1336 {strides = array<i32>} : memref<2x8xf32, #tpu.memory_space<vmem>>, vector<2x1xf32>,
    %c135 = arith.constant 135 : index
    %1338 = memref.load %arg0[%c135] : memref<160xf32, #tpu.memory_space<smem>>
    %c55 = arith.constant 55 : index
    %1339 = memref.load %arg0[%c55] : memref<160xf32, #tpu.memory_space<smem>>
    %c0_402 = arith.constant 0 : index
    %c0_403 = arith.constant 0 : index
    %1340 = vector.load %arg5[%c0_402, %c0_403] : memref<16x256xf32, #tpu.memory_space<vmem>>, vector<2x256xf32>
    %1341 = vector.broadcast %1339 : f32 to vector<2x256xf32>
    %1342 = arith.mulf %1341, %1340 : vector<2x256xf32>
    %c55_404 = arith.constant 55 : index
    %1343 = memref.load %arg0[%c55_404] : memref<160xf32, #tpu.memory_space<smem>>
    %1344 = vector.broadcast %1343 : f32 to vector<2x1xf32>
    %1345 = arith.mulf %1344, %105 : vector<2x1xf32>
    %c63 = arith.constant 63 : index
    %1346 = memref.load %arg0[%c63] : memref<160xf32, #tpu.memory_space<smem>>
    %c2_405 = arith.constant 2 : index
    %c0_406 = arith.constant 0 : index
    %1347 = vector.load %arg5[%c2_405, %c0_406] : memref<16x256xf32, #tpu.memory_space<vmem>>, vector<2x256xf32>
    %1348 = vector.broadcast %1346 : f32 to vector<2x256xf32>
    %1349 = arith.mulf %1348, %1347 : vector<2x256xf32>
    %1350 = arith.addf %1342, %1349 : vector<2x256xf32>
    %1351 = vector.broadcast %1346 : f32 to vector<2x1xf32>
    %1352 = arith.mulf %1351, %211 : vector<2x1xf32>
    %1353 = arith.addf %1345, %1352 : vector<2x1xf32>
    %c71 = arith.constant 71 : index
    %1354 = memref.load %arg0[%c71] : memref<160xf32, #tpu.memory_space<smem>>
    %c4_407 = arith.constant 4 : index
    %c0_408 = arith.constant 0 : index
    %1355 = vector.load %arg5[%c4_407, %c0_408] : memref<16x256xf32, #tpu.memory_space<vmem>>, vector<2x256xf32>
    %1356 = vector.broadcast %1354 : f32 to vector<2x256xf32>
    %1357 = arith.mulf %1356, %1355 : vector<2x256xf32>
    %1358 = arith.addf %1350, %1357 : vector<2x256xf32>
    %1359 = vector.broadcast %1354 : f32 to vector<2x1xf32>
    %1360 = arith.mulf %1359, %317 : vector<2x1xf32>
    %1361 = arith.addf %1353, %1360 : vector<2x1xf32>
    %c79 = arith.constant 79 : index
    %1362 = memref.load %arg0[%c79] : memref<160xf32, #tpu.memory_space<smem>>
    %c6_409 = arith.constant 6 : index
    %c0_410 = arith.constant 0 : index
    %1363 = vector.load %arg5[%c6_409, %c0_410] : memref<16x256xf32, #tpu.memory_space<vmem>>, vector<2x256xf32>
    %1364 = vector.broadcast %1362 : f32 to vector<2x256xf32>
    %1365 = arith.mulf %1364, %1363 : vector<2x256xf32>
    %1366 = arith.addf %1358, %1365 : vector<2x256xf32>
    %1367 = vector.broadcast %1362 : f32 to vector<2x1xf32>
    %1368 = arith.mulf %1367, %423 : vector<2x1xf32>
    %1369 = arith.addf %1361, %1368 : vector<2x1xf32>
    %c87 = arith.constant 87 : index
    %1370 = memref.load %arg0[%c87] : memref<160xf32, #tpu.memory_space<smem>>
    %c8_411 = arith.constant 8 : index
    %c0_412 = arith.constant 0 : index
    %1371 = vector.load %arg5[%c8_411, %c0_412] : memref<16x256xf32, #tpu.memory_space<vmem>>, vector<2x256xf32>
    %1372 = vector.broadcast %1370 : f32 to vector<2x256xf32>
    %1373 = arith.mulf %1372, %1371 : vector<2x256xf32>
    %1374 = arith.addf %1366, %1373 : vector<2x256xf32>
    %1375 = vector.broadcast %1370 : f32 to vector<2x1xf32>
    %1376 = arith.mulf %1375, %529 : vector<2x1xf32>
    %1377 = arith.addf %1369, %1376 : vector<2x1xf32>
    %c95 = arith.constant 95 : index
    %1378 = memref.load %arg0[%c95] : memref<160xf32, #tpu.memory_space<smem>>
    %c10_413 = arith.constant 10 : index
    %c0_414 = arith.constant 0 : index
    %1379 = vector.load %arg5[%c10_413, %c0_414] : memref<16x256xf32, #tpu.memory_space<vmem>>, vector<2x256xf32>
    %1380 = vector.broadcast %1378 : f32 to vector<2x256xf32>
    %1381 = arith.mulf %1380, %1379 : vector<2x256xf32>
    %1382 = arith.addf %1374, %1381 : vector<2x256xf32>
    %1383 = vector.broadcast %1378 : f32 to vector<2x1xf32>
    %1384 = arith.mulf %1383, %635 : vector<2x1xf32>
    %1385 = arith.addf %1377, %1384 : vector<2x1xf32>
    %c103 = arith.constant 103 : index
    %1386 = memref.load %arg0[%c103] : memref<160xf32, #tpu.memory_space<smem>>
    %c12_415 = arith.constant 12 : index
    %c0_416 = arith.constant 0 : index
    %1387 = vector.load %arg5[%c12_415, %c0_416] : memref<16x256xf32, #tpu.memory_space<vmem>>, vector<2x256xf32>
    %1388 = vector.broadcast %1386 : f32 to vector<2x256xf32>
    %1389 = arith.mulf %1388, %1387 : vector<2x256xf32>
    %1390 = arith.addf %1382, %1389 : vector<2x256xf32>
    %1391 = vector.broadcast %1386 : f32 to vector<2x1xf32>
    %1392 = arith.mulf %1391, %741 : vector<2x1xf32>
    %1393 = arith.addf %1385, %1392 : vector<2x1xf32>
    %c111 = arith.constant 111 : index
    %1394 = memref.load %arg0[%c111] : memref<160xf32, #tpu.memory_space<smem>>
    %c14_417 = arith.constant 14 : index
    %c0_418 = arith.constant 0 : index
    %1395 = vector.load %arg5[%c14_417, %c0_418] : memref<16x256xf32, #tpu.memory_space<vmem>>, vector<2x256xf32>
    %1396 = vector.broadcast %1394 : f32 to vector<2x256xf32>
    %1397 = arith.mulf %1396, %1395 : vector<2x256xf32>
    %1398 = arith.addf %1390, %1397 : vector<2x256xf32>
    %1399 = vector.broadcast %1394 : f32 to vector<2x1xf32>
    %1400 = arith.mulf %1399, %847 : vector<2x1xf32>
    %1401 = arith.addf %1393, %1400 : vector<2x1xf32>
    %1402 = vector.broadcast %1338 : f32 to vector<2x256xf32>
    %1403 = arith.addf %1398, %1402 : vector<2x256xf32>
    %c14_419 = arith.constant 14 : index
    %c0_420 = arith.constant 0 : index
    %1404 = vector.load %arg3[%c14_419, %c0_420] : memref<16x256xf32, #tpu.memory_space<vmem>>, vector<2x256xf32>
    tpu.vector_store %arg3[%c14_419, %c0_420], %1403 {strides = array<i32>} : memref<16x256xf32, #tpu.memory_space<vmem>>, vector<2x256xf32>,
    %1405 = vector.broadcast %1338 : f32 to vector<2x1xf32>
    %1406 = arith.addf %1401, %1405 : vector<2x1xf32>
    %c0_421 = arith.constant 0 : index
    %c7_422 = arith.constant 7 : index
    %1407 = vector.load %arg4[%c0_421, %c7_422] : memref<2x8xf32, #tpu.memory_space<vmem>>, vector<2x1xf32>
    tpu.vector_store %arg4[%c0_421, %c7_422], %1406 {strides = array<i32>} : memref<2x8xf32, #tpu.memory_space<vmem>>, vector<2x1xf32>,
    return
  }
}

</mosaic_0001>

<llo_original>
// kernel: model_forward.1
$region0: #{model_forward.1}
  #allocation0 [shape = 'u32[]', space=smem, size = 0x4, offset = 0x4, fixed_abs, tag = 'smem constant byte address 0x4 - core index']
  #allocation1 [shape = 'u32[144,128]{1,0:T(1,128)}', space=vmem, size = 0x12000, scoped, tag = 'internal scratch']
  #allocation2 [shape = 'f32[16,256]{1,0:T(8,128)}', space=vmem, size = 0x4000, scoped, tag = 'scratch operand']
  %s0 = inlined_call_operand.vmem [shape: f32[160], index: 0, kind: input, shape index: {}]
  %s1 = inlined_call_operand.vmem [shape: f32[6,256], index: 1, kind: input, shape index: {}]
  %s2 = inlined_call_operand.vmem [shape: f32[6,256], index: 2, kind: input, shape index: {}]
  %s3 = inlined_call_operand.vmem [shape: f32[16,256], index: 3, kind: output, shape index: {0}]
  %s4 = inlined_call_operand.vmem [shape: f32[2,8], index: 4, kind: output, shape index: {1}]
  %5 = xla_tuple %s3, %s4
  %s6 = sld [smem:[#allocation0]]
  $region34: #{model_forward.1} parent=0
    _
  %s8 = ssub.s32 1, %s6
  %s9 = scalar_select 0, %s8, %s6
  $region1: #{model_forward.1} parent=0
    #allocation3 [shape = 'u8[1024]{0}', space=smem, size = 0x400, scoped, tag = 'input window, operand 0, single buffered']
    #allocation4 [shape = 's32[1]{0}', space=sflag, size = 0x4, scoped, tag = 'scoped memory for model_forward.1']
    %10 = vsyncpa [#allocation4], 0
    // Predicated region
    $region2: #{model_forward.1} parent=1 // pred_check
      _
    $region3: #{model_forward.1} parent=1 // pred_check_branch
      %12 = sbr.rel (0) target = $region5
    $region4: #{model_forward.1} parent=1 // pred_region
      %s14 = ssub.s32 32, 32
      %15 = vsyncadd [#allocation4], %s14
      %s17 = sshll.u32 %s0, 4
      %s18 = int_to_ptr.vmem [resolvable:$true] %s17
      %20 = dma.vmem_to_smem %s18, 32, [#allocation3], [#allocation4]
    $region5: #{model_forward.1} parent=1 // pred_fallthru
      _
    // Predicated region
    $region6: #{model_forward.1} parent=1 // pred_check
      _
    $region7: #{model_forward.1} parent=1 // pred_check_branch
      %22 = sbr.rel (0) target = $region9
    $region8: #{model_forward.1} parent=1 // pred_region
      _
    $region9: #{model_forward.1} parent=1 // pred_fallthru
      _
    // Predicated region
    $region10: #{model_forward.1} parent=1 // pred_check
      _
    $region11: #{model_forward.1} parent=1 // pred_check_branch
      %24 = sbr.rel (0) target = $region13
    $region12: #{model_forward.1} parent=1 // pred_region
      _
    $region13: #{model_forward.1} parent=1 // pred_fallthru
      _
    // Predicated region
    $region14: #{model_forward.1} parent=1 // pred_check
      _
    $region15: #{model_forward.1} parent=1 // pred_check_branch
      %26 = sbr.rel (0) target = $region17
    $region16: #{model_forward.1} parent=1 // pred_region
      %27 = dma.done [#allocation4], 32
    $region17: #{model_forward.1} parent=1 // pred_fallthru
      _
    %28 = sfence
    %s29 = sld [smem:[#allocation3 + $0x70]]
    %s30 = sld [smem:[#allocation3 + $0x78]]
    %s31 = sadd.f32 %s29, %s30
    %s32 = sld [smem:[#allocation3]]
    %v33 = vld [vmem:[%s1] sm:$0x3]
    %v34 = vld [vmem:[%s1 + $0x8] sm:$0x3]
    %v35 = vstv %s32
    %v36 = vmul.f32 %v35, %v33
    %v37 = vmul.f32 %v35, %v34
    %s38 = sld [smem:[#allocation3 + $0x18]]
    %v39 = vld [vmem:[%s2] sm:$0x3]
    %v40 = vld [vmem:[%s2 + $0x8] sm:$0x3]
    %v41 = vstv %s38
    %v42 = vmul.f32 %v41, %v39
    %v43 = vmul.f32 %v41, %v40
    %v44 = vadd.f32 %v36, %v42
    %v45 = vadd.f32 %v37, %v43
    %s46 = sld [smem:[#allocation3 + $0x8]]
    %v47 = vld [vmem:[%s1] sm:$0xc]
    %v48 = vld [vmem:[%s1 + $0x8] sm:$0xc]
    %v49 = vstv %s46
    %v50 = vmul.f32 %v49, %v47
    %v51 = vmul.f32 %v49, %v48
    %v54 = vrot.slane %v50, 2
    %v55 = vrot.slane %v51, 2
    %v58 = vadd.f32 %v44, %v54
    %v59 = vadd.f32 %v45, %v55
    %s60 = sld [smem:[#allocation3 + $0x20]]
    %v61 = vld [vmem:[%s2] sm:$0xc]
    %v62 = vld [vmem:[%s2 + $0x8] sm:$0xc]
    %v63 = vstv %s60
    %v64 = vmul.f32 %v63, %v61
    %v65 = vmul.f32 %v63, %v62
    %v68 = vrot.slane %v64, 2
    %v69 = vrot.slane %v65, 2
    %v72 = vadd.f32 %v58, %v68
    %v73 = vadd.f32 %v59, %v69
    %s74 = sld [smem:[#allocation3 + $0x10]]
    %v75 = vld [vmem:[%s1] sm:$0x30]
    %v76 = vld [vmem:[%s1 + $0x8] sm:$0x30]
    %v77 = vstv %s74
    %v78 = vmul.f32 %v77, %v75
    %v79 = vmul.f32 %v77, %v76
    %v82 = vrot.slane %v78, 4
    %v83 = vrot.slane %v79, 4
    %v86 = vadd.f32 %v72, %v82
    %v87 = vadd.f32 %v73, %v83
    %s88 = sld [smem:[#allocation3 + $0x28]]
    %v89 = vld [vmem:[%s2] sm:$0x30]
    %v90 = vld [vmem:[%s2 + $0x8] sm:$0x30]
    %v91 = vstv %s88
    %v92 = vmul.f32 %v91, %v89
    %v93 = vmul.f32 %v91, %v90
    %v96 = vrot.slane %v92, 4
    %v97 = vrot.slane %v93, 4
    %v100 = vadd.f32 %v86, %v96
    %v101 = vadd.f32 %v87, %v97
    %v102 = vstv %s31
    %v103 = vadd.f32 %v100, %v102
    %v104 = vadd.f32 %v101, %v102
    %v105 = vmul.f32 %v103, %v103
    %v106 = vmul.f32 %v104, %v104
    %vm107 = vcmask 1041408
    %v108 = vsel %vm107, %v103, 0.0
    %v109 = vsel %vm107, %v104, 0.0
    %v110 = vadd.f32 %v108, %v109
    %111 = vadd.xlane.f32.xlu0 %v110
    %v112 = vpop.xlane.xlu0 %111
    %s113 = smul.f32 %s31, 68.0
    %v114 = vstv %s113
    %v115 = vadd.f32 %v112, %v114
    %v116 = vsel %vm107, %v105, 0.0
    %v117 = vsel %vm107, %v106, 0.0
    %v118 = vadd.f32 %v116, %v117
    %119 = vadd.xlane.f32.xlu0 %v118
    %v120 = vpop.xlane.xlu0 %119
    %s121 = smul.f32 %s31, %s31
    %s122 = smul.f32 %s121, 68.0
    %v123 = vstv %s122
    %v124 = vadd.f32 %v120, %v123
    %v125 = vsel %vm107, %v115, 0.0
    %v126 = vrot.slane %v125, 4
    %v127 = vadd.f32 %v125, %v126
    %v128 = vrot.slane %v127, 2
    %v129 = vadd.f32 %v127, %v128
    %v130 = vrot.slane %v129, 1
    %v131 = vadd.f32 %v129, %v130
    %v132 = vsel %vm107, %v124, 0.0
    %v133 = vrot.slane %v132, 4
    %v134 = vadd.f32 %v132, %v133
    %v135 = vrot.slane %v134, 2
    %v136 = vadd.f32 %v134, %v135
    %v137 = vrot.slane %v136, 1
    %v138 = vadd.f32 %v136, %v137
    %v139 = vmul.f32 %v131, 0.0015432099
    %v140 = vmul.f32 %v138, 0.0015432099
    %v141 = vmul.f32 %v139, %v139
    %v142 = vsub.f32 %v140, %v141
    %s143 = sld [smem:[#allocation3 + $0x88]]
    %v144 = vadd.f32 %v142, 1e-05
    %v145 = vrsqrt.pop %v144
    %v146 = vstv %s143
    %v147 = vmul.f32 %v146, %v145
    %v148 = vmul.f32 %v115, 0.0030864198
    %v149 = vmul.f32 %v124, 0.0030864198
    %v150 = vmul.f32 %v148, %v148
    %v151 = vsub.f32 %v149, %v150
    %s152 = sld [smem:[#allocation3 + $0x90]]
    %v153 = vstv %s152
    %v154 = vmul.f32 %v153, %v147
    %v155 = vmul.f32 %v147, %v147
    %v156 = vmul.f32 %v155, %v151
    %v157 = vadd.f32 %v156, 1e-05
    %v158 = vrsqrt.pop %v157
    %v159 = vmul.f32 %v154, %v158
    %s160 = sld [smem:[#allocation3 + $0x98]]
    %v161 = vsub.f32 %v103, %v148
    %v162 = vsub.f32 %v104, %v148
    %v163 = vmul.f32 %v161, %v159
    %v164 = vmul.f32 %v162, %v159
    %v165 = vstv %s160
    %v166 = vadd.f32 %v163, %v165
    %v167 = vadd.f32 %v164, %v165
    %v168 = vmul.f32 %v166, 0.5
    %v169 = vmul.f32 %v167, 0.5
    %v170 = vtanh.pop %v168
    %v171 = vtanh.pop %v169
    %v172 = vmul.f32 %v170, 0.5
    %v173 = vmul.f32 %v171, 0.5
    %v174 = vadd.f32 %v172, 0.5
    %v175 = vadd.f32 %v173, 0.5
    %176 = vst [vmem:[#allocation2] sm:$0x3] %v174
    %177 = vst [vmem:[#allocation2 + $0x8] sm:$0x3] %v175
    %v178 = vsub.f32 %v102, %v148
    %v179 = vmul.f32 %v178, %v159
    %v180 = vadd.f32 %v179, %v165
    %v181 = vmul.f32 %v180, 0.5
    %v182 = vtanh.pop %v181
    %v183 = vmul.f32 %v182, 0.5
    %v184 = vadd.f32 %v183, 0.5
    %s185 = sld [smem:[#allocation3 + $0x71]]
    %s186 = sld [smem:[#allocation3 + $0x79]]
    %s187 = sadd.f32 %s185, %s186
    %s188 = sld [smem:[#allocation3 + $0x1]]
    %v189 = vld [vmem:[%s1] sm:$0x3]
    %v190 = vld [vmem:[%s1 + $0x8] sm:$0x3]
    %v191 = vstv %s188
    %v192 = vmul.f32 %v191, %v189
    %v193 = vmul.f32 %v191, %v190
    %s194 = sld [smem:[#allocation3 + $0x19]]
    %v195 = vld [vmem:[%s2] sm:$0x3]
    %v196 = vld [vmem:[%s2 + $0x8] sm:$0x3]
    %v197 = vstv %s194
    %v198 = vmul.f32 %v197, %v195
    %v199 = vmul.f32 %v197, %v196
    %v200 = vadd.f32 %v192, %v198
    %v201 = vadd.f32 %v193, %v199
    %s202 = sld [smem:[#allocation3 + $0x9]]
    %v203 = vld [vmem:[%s1] sm:$0xc]
    %v204 = vld [vmem:[%s1 + $0x8] sm:$0xc]
    %v205 = vstv %s202
    %v206 = vmul.f32 %v205, %v203
    %v207 = vmul.f32 %v205, %v204
    %v210 = vrot.slane %v206, 2
    %v211 = vrot.slane %v207, 2
    %v214 = vadd.f32 %v200, %v210
    %v215 = vadd.f32 %v201, %v211
    %s216 = sld [smem:[#allocation3 + $0x21]]
    %v217 = vld [vmem:[%s2] sm:$0xc]
    %v218 = vld [vmem:[%s2 + $0x8] sm:$0xc]
    %v219 = vstv %s216
    %v220 = vmul.f32 %v219, %v217
    %v221 = vmul.f32 %v219, %v218
    %v224 = vrot.slane %v220, 2
    %v225 = vrot.slane %v221, 2
    %v228 = vadd.f32 %v214, %v224
    %v229 = vadd.f32 %v215, %v225
    %s230 = sld [smem:[#allocation3 + $0x11]]
    %v231 = vld [vmem:[%s1] sm:$0x30]
    %v232 = vld [vmem:[%s1 + $0x8] sm:$0x30]
    %v233 = vstv %s230
    %v234 = vmul.f32 %v233, %v231
    %v235 = vmul.f32 %v233, %v232
    %v238 = vrot.slane %v234, 4
    %v239 = vrot.slane %v235, 4
    %v242 = vadd.f32 %v228, %v238
    %v243 = vadd.f32 %v229, %v239
    %s244 = sld [smem:[#allocation3 + $0x29]]
    %v245 = vld [vmem:[%s2] sm:$0x30]
    %v246 = vld [vmem:[%s2 + $0x8] sm:$0x30]
    %v247 = vstv %s244
    %v248 = vmul.f32 %v247, %v245
    %v249 = vmul.f32 %v247, %v246
    %v252 = vrot.slane %v248, 4
    %v253 = vrot.slane %v249, 4
    %v256 = vadd.f32 %v242, %v252
    %v257 = vadd.f32 %v243, %v253
    %v258 = vstv %s187
    %v259 = vadd.f32 %v256, %v258
    %v260 = vadd.f32 %v257, %v258
    %v261 = vmul.f32 %v259, %v259
    %v262 = vmul.f32 %v260, %v260
    %v263 = vsel %vm107, %v259, 0.0
    %v264 = vsel %vm107, %v260, 0.0
    %v265 = vadd.f32 %v263, %v264
    %266 = vadd.xlane.f32.xlu0 %v265
    %v267 = vpop.xlane.xlu0 %266
    %s268 = smul.f32 %s187, 68.0
    %v269 = vstv %s268
    %v270 = vadd.f32 %v267, %v269
    %v271 = vsel %vm107, %v261, 0.0
    %v272 = vsel %vm107, %v262, 0.0
    %v273 = vadd.f32 %v271, %v272
    %274 = vadd.xlane.f32.xlu0 %v273
    %v275 = vpop.xlane.xlu0 %274
    %s276 = smul.f32 %s187, %s187
    %s277 = smul.f32 %s276, 68.0
    %v278 = vstv %s277
    %v279 = vadd.f32 %v275, %v278
    %v280 = vsel %vm107, %v270, 0.0
    %v281 = vrot.slane %v280, 4
    %v282 = vadd.f32 %v280, %v281
    %v283 = vrot.slane %v282, 2
    %v284 = vadd.f32 %v282, %v283
    %v285 = vrot.slane %v284, 1
    %v286 = vadd.f32 %v284, %v285
    %v287 = vsel %vm107, %v279, 0.0
    %v288 = vrot.slane %v287, 4
    %v289 = vadd.f32 %v287, %v288
    %v290 = vrot.slane %v289, 2
    %v291 = vadd.f32 %v289, %v290
    %v292 = vrot.slane %v291, 1
    %v293 = vadd.f32 %v291, %v292
    %v294 = vmul.f32 %v286, 0.0015432099
    %v295 = vmul.f32 %v293, 0.0015432099
    %v296 = vmul.f32 %v294, %v294
    %v297 = vsub.f32 %v295, %v296
    %s298 = sld [smem:[#allocation3 + $0x89]]
    %v299 = vadd.f32 %v297, 1e-05
    %v300 = vrsqrt.pop %v299
    %v301 = vstv %s298
    %v302 = vmul.f32 %v301, %v300
    %v303 = vmul.f32 %v270, 0.0030864198
    %v304 = vmul.f32 %v279, 0.0030864198
    %v305 = vmul.f32 %v303, %v303
    %v306 = vsub.f32 %v304, %v305
    %s307 = sld [smem:[#allocation3 + $0x91]]
    %v308 = vstv %s307
    %v309 = vmul.f32 %v308, %v302
    %v310 = vmul.f32 %v302, %v302
    %v311 = vmul.f32 %v310, %v306
    %v312 = vadd.f32 %v311, 1e-05
    %v313 = vrsqrt.pop %v312
    %v314 = vmul.f32 %v309, %v313
    %s315 = sld [smem:[#allocation3 + $0x99]]
    %v316 = vsub.f32 %v259, %v303
    %v317 = vsub.f32 %v260, %v303
    %v318 = vmul.f32 %v316, %v314
    %v319 = vmul.f32 %v317, %v314
    %v320 = vstv %s315
    %v321 = vadd.f32 %v318, %v320
    %v322 = vadd.f32 %v319, %v320
    %v323 = vmul.f32 %v321, 0.5
    %v324 = vmul.f32 %v322, 0.5
    %v325 = vtanh.pop %v323
    %v326 = vtanh.pop %v324
    %v327 = vmul.f32 %v325, 0.5
    %v328 = vmul.f32 %v326, 0.5
    %v329 = vadd.f32 %v327, 0.5
    %v330 = vadd.f32 %v328, 0.5
    %v333 = vrot.slane %v329, 6
    %v334 = vrot.slane %v330, 6
    %337 = vst [vmem:[#allocation2] sm:$0xc] %v333
    %338 = vst [vmem:[#allocation2 + $0x8] sm:$0xc] %v334
    %v339 = vsub.f32 %v258, %v303
    %v340 = vmul.f32 %v339, %v314
    %v341 = vadd.f32 %v340, %v320
    %v342 = vmul.f32 %v341, 0.5
    %v343 = vtanh.pop %v342
    %v344 = vmul.f32 %v343, 0.5
    %v345 = vadd.f32 %v344, 0.5
    %s346 = sld [smem:[#allocation3 + $0x72]]
    %s347 = sld [smem:[#allocation3 + $0x7a]]
    %s348 = sadd.f32 %s346, %s347
    %s349 = sld [smem:[#allocation3 + $0x2]]
    %v350 = vld [vmem:[%s1] sm:$0x3]
    %v351 = vld [vmem:[%s1 + $0x8] sm:$0x3]
    %v352 = vstv %s349
    %v353 = vmul.f32 %v352, %v350
    %v354 = vmul.f32 %v352, %v351
    %s355 = sld [smem:[#allocation3 + $0x1a]]
    %v356 = vld [vmem:[%s2] sm:$0x3]
    %v357 = vld [vmem:[%s2 + $0x8] sm:$0x3]
    %v358 = vstv %s355
    %v359 = vmul.f32 %v358, %v356
    %v360 = vmul.f32 %v358, %v357
    %v361 = vadd.f32 %v353, %v359
    %v362 = vadd.f32 %v354, %v360
    %s363 = sld [smem:[#allocation3 + $0xa]]
    %v364 = vld [vmem:[%s1] sm:$0xc]
    %v365 = vld [vmem:[%s1 + $0x8] sm:$0xc]
    %v366 = vstv %s363
    %v367 = vmul.f32 %v366, %v364
    %v368 = vmul.f32 %v366, %v365
    %v371 = vrot.slane %v367, 2
    %v372 = vrot.slane %v368, 2
    %v375 = vadd.f32 %v361, %v371
    %v376 = vadd.f32 %v362, %v372
    %s377 = sld [smem:[#allocation3 + $0x22]]
    %v378 = vld [vmem:[%s2] sm:$0xc]
    %v379 = vld [vmem:[%s2 + $0x8] sm:$0xc]
    %v380 = vstv %s377
    %v381 = vmul.f32 %v380, %v378
    %v382 = vmul.f32 %v380, %v379
    %v385 = vrot.slane %v381, 2
    %v386 = vrot.slane %v382, 2
    %v389 = vadd.f32 %v375, %v385
    %v390 = vadd.f32 %v376, %v386
    %s391 = sld [smem:[#allocation3 + $0x12]]
    %v392 = vld [vmem:[%s1] sm:$0x30]
    %v393 = vld [vmem:[%s1 + $0x8] sm:$0x30]
    %v394 = vstv %s391
    %v395 = vmul.f32 %v394, %v392
    %v396 = vmul.f32 %v394, %v393
    %v399 = vrot.slane %v395, 4
    %v400 = vrot.slane %v396, 4
    %v403 = vadd.f32 %v389, %v399
    %v404 = vadd.f32 %v390, %v400
    %s405 = sld [smem:[#allocation3 + $0x2a]]
    %v406 = vld [vmem:[%s2] sm:$0x30]
    %v407 = vld [vmem:[%s2 + $0x8] sm:$0x30]
    %v408 = vstv %s405
    %v409 = vmul.f32 %v408, %v406
    %v410 = vmul.f32 %v408, %v407
    %v413 = vrot.slane %v409, 4
    %v414 = vrot.slane %v410, 4
    %v417 = vadd.f32 %v403, %v413
    %v418 = vadd.f32 %v404, %v414
    %v419 = vstv %s348
    %v420 = vadd.f32 %v417, %v419
    %v421 = vadd.f32 %v418, %v419
    %v422 = vmul.f32 %v420, %v420
    %v423 = vmul.f32 %v421, %v421
    %v424 = vsel %vm107, %v420, 0.0
    %v425 = vsel %vm107, %v421, 0.0
    %v426 = vadd.f32 %v424, %v425
    %427 = vadd.xlane.f32.xlu0 %v426
    %v428 = vpop.xlane.xlu0 %427
    %s429 = smul.f32 %s348, 68.0
    %v430 = vstv %s429
    %v431 = vadd.f32 %v428, %v430
    %v432 = vsel %vm107, %v422, 0.0
    %v433 = vsel %vm107, %v423, 0.0
    %v434 = vadd.f32 %v432, %v433
    %435 = vadd.xlane.f32.xlu0 %v434
    %v436 = vpop.xlane.xlu0 %435
    %s437 = smul.f32 %s348, %s348
    %s438 = smul.f32 %s437, 68.0
    %v439 = vstv %s438
    %v440 = vadd.f32 %v436, %v439
    %v441 = vsel %vm107, %v431, 0.0
    %v442 = vrot.slane %v441, 4
    %v443 = vadd.f32 %v441, %v442
    %v444 = vrot.slane %v443, 2
    %v445 = vadd.f32 %v443, %v444
    %v446 = vrot.slane %v445, 1
    %v447 = vadd.f32 %v445, %v446
    %v448 = vsel %vm107, %v440, 0.0
    %v449 = vrot.slane %v448, 4
    %v450 = vadd.f32 %v448, %v449
    %v451 = vrot.slane %v450, 2
    %v452 = vadd.f32 %v450, %v451
    %v453 = vrot.slane %v452, 1
    %v454 = vadd.f32 %v452, %v453
    %v455 = vmul.f32 %v447, 0.0015432099
    %v456 = vmul.f32 %v454, 0.0015432099
    %v457 = vmul.f32 %v455, %v455
    %v458 = vsub.f32 %v456, %v457
    %s459 = sld [smem:[#allocation3 + $0x8a]]
    %v460 = vadd.f32 %v458, 1e-05
    %v461 = vrsqrt.pop %v460
    %v462 = vstv %s459
    %v463 = vmul.f32 %v462, %v461
    %v464 = vmul.f32 %v431, 0.0030864198
    %v465 = vmul.f32 %v440, 0.0030864198
    %v466 = vmul.f32 %v464, %v464
    %v467 = vsub.f32 %v465, %v466
    %s468 = sld [smem:[#allocation3 + $0x92]]
    %v469 = vstv %s468
    %v470 = vmul.f32 %v469, %v463
    %v471 = vmul.f32 %v463, %v463
    %v472 = vmul.f32 %v471, %v467
    %v473 = vadd.f32 %v472, 1e-05
    %v474 = vrsqrt.pop %v473
    %v475 = vmul.f32 %v470, %v474
    %s476 = sld [smem:[#allocation3 + $0x9a]]
    %v477 = vsub.f32 %v420, %v464
    %v478 = vsub.f32 %v421, %v464
    %v479 = vmul.f32 %v477, %v475
    %v480 = vmul.f32 %v478, %v475
    %v481 = vstv %s476
    %v482 = vadd.f32 %v479, %v481
    %v483 = vadd.f32 %v480, %v481
    %v484 = vmul.f32 %v482, 0.5
    %v485 = vmul.f32 %v483, 0.5
    %v486 = vtanh.pop %v484
    %v487 = vtanh.pop %v485
    %v488 = vmul.f32 %v486, 0.5
    %v489 = vmul.f32 %v487, 0.5
    %v490 = vadd.f32 %v488, 0.5
    %v491 = vadd.f32 %v489, 0.5
    %v494 = vrot.slane %v490, 4
    %v495 = vrot.slane %v491, 4
    %498 = vst [vmem:[#allocation2] sm:$0x30] %v494
    %499 = vst [vmem:[#allocation2 + $0x8] sm:$0x30] %v495
    %v500 = vsub.f32 %v419, %v464
    %v501 = vmul.f32 %v500, %v475
    %v502 = vadd.f32 %v501, %v481
    %v503 = vmul.f32 %v502, 0.5
    %v504 = vtanh.pop %v503
    %v505 = vmul.f32 %v504, 0.5
    %v506 = vadd.f32 %v505, 0.5
    %s507 = sld [smem:[#allocation3 + $0x73]]
    %s508 = sld [smem:[#allocation3 + $0x7b]]
    %s509 = sadd.f32 %s507, %s508
    %s510 = sld [smem:[#allocation3 + $0x3]]
    %v511 = vld [vmem:[%s1] sm:$0x3]
    %v512 = vld [vmem:[%s1 + $0x8] sm:$0x3]
    %v513 = vstv %s510
    %v514 = vmul.f32 %v513, %v511
    %v515 = vmul.f32 %v513, %v512
    %s516 = sld [smem:[#allocation3 + $0x1b]]
    %v517 = vld [vmem:[%s2] sm:$0x3]
    %v518 = vld [vmem:[%s2 + $0x8] sm:$0x3]
    %v519 = vstv %s516
    %v520 = vmul.f32 %v519, %v517
    %v521 = vmul.f32 %v519, %v518
    %v522 = vadd.f32 %v514, %v520
    %v523 = vadd.f32 %v515, %v521
    %s524 = sld [smem:[#allocation3 + $0xb]]
    %v525 = vld [vmem:[%s1] sm:$0xc]
    %v526 = vld [vmem:[%s1 + $0x8] sm:$0xc]
    %v527 = vstv %s524
    %v528 = vmul.f32 %v527, %v525
    %v529 = vmul.f32 %v527, %v526
    %v532 = vrot.slane %v528, 2
    %v533 = vrot.slane %v529, 2
    %v536 = vadd.f32 %v522, %v532
    %v537 = vadd.f32 %v523, %v533
    %s538 = sld [smem:[#allocation3 + $0x23]]
    %v539 = vld [vmem:[%s2] sm:$0xc]
    %v540 = vld [vmem:[%s2 + $0x8] sm:$0xc]
    %v541 = vstv %s538
    %v542 = vmul.f32 %v541, %v539
    %v543 = vmul.f32 %v541, %v540
    %v546 = vrot.slane %v542, 2
    %v547 = vrot.slane %v543, 2
    %v550 = vadd.f32 %v536, %v546
    %v551 = vadd.f32 %v537, %v547
    %s552 = sld [smem:[#allocation3 + $0x13]]
    %v553 = vld [vmem:[%s1] sm:$0x30]
    %v554 = vld [vmem:[%s1 + $0x8] sm:$0x30]
    %v555 = vstv %s552
    %v556 = vmul.f32 %v555, %v553
    %v557 = vmul.f32 %v555, %v554
    %v560 = vrot.slane %v556, 4
    %v561 = vrot.slane %v557, 4
    %v564 = vadd.f32 %v550, %v560
    %v565 = vadd.f32 %v551, %v561
    %s566 = sld [smem:[#allocation3 + $0x2b]]
    %v567 = vld [vmem:[%s2] sm:$0x30]
    %v568 = vld [vmem:[%s2 + $0x8] sm:$0x30]
    %v569 = vstv %s566
    %v570 = vmul.f32 %v569, %v567
    %v571 = vmul.f32 %v569, %v568
    %v574 = vrot.slane %v570, 4
    %v575 = vrot.slane %v571, 4
    %v578 = vadd.f32 %v564, %v574
    %v579 = vadd.f32 %v565, %v575
    %v580 = vstv %s509
    %v581 = vadd.f32 %v578, %v580
    %v582 = vadd.f32 %v579, %v580
    %v583 = vmul.f32 %v581, %v581
    %v584 = vmul.f32 %v582, %v582
    %v585 = vsel %vm107, %v581, 0.0
    %v586 = vsel %vm107, %v582, 0.0
    %v587 = vadd.f32 %v585, %v586
    %588 = vadd.xlane.f32.xlu0 %v587
    %v589 = vpop.xlane.xlu0 %588
    %s590 = smul.f32 %s509, 68.0
    %v591 = vstv %s590
    %v592 = vadd.f32 %v589, %v591
    %v593 = vsel %vm107, %v583, 0.0
    %v594 = vsel %vm107, %v584, 0.0
    %v595 = vadd.f32 %v593, %v594
    %596 = vadd.xlane.f32.xlu0 %v595
    %v597 = vpop.xlane.xlu0 %596
    %s598 = smul.f32 %s509, %s509
    %s599 = smul.f32 %s598, 68.0
    %v600 = vstv %s599
    %v601 = vadd.f32 %v597, %v600
    %v602 = vsel %vm107, %v592, 0.0
    %v603 = vrot.slane %v602, 4
    %v604 = vadd.f32 %v602, %v603
    %v605 = vrot.slane %v604, 2
    %v606 = vadd.f32 %v604, %v605
    %v607 = vrot.slane %v606, 1
    %v608 = vadd.f32 %v606, %v607
    %v609 = vsel %vm107, %v601, 0.0
    %v610 = vrot.slane %v609, 4
    %v611 = vadd.f32 %v609, %v610
    %v612 = vrot.slane %v611, 2
    %v613 = vadd.f32 %v611, %v612
    %v614 = vrot.slane %v613, 1
    %v615 = vadd.f32 %v613, %v614
    %v616 = vmul.f32 %v608, 0.0015432099
    %v617 = vmul.f32 %v615, 0.0015432099
    %v618 = vmul.f32 %v616, %v616
    %v619 = vsub.f32 %v617, %v618
    %s620 = sld [smem:[#allocation3 + $0x8b]]
    %v621 = vadd.f32 %v619, 1e-05
    %v622 = vrsqrt.pop %v621
    %v623 = vstv %s620
    %v624 = vmul.f32 %v623, %v622
    %v625 = vmul.f32 %v592, 0.0030864198
    %v626 = vmul.f32 %v601, 0.0030864198
    %v627 = vmul.f32 %v625, %v625
    %v628 = vsub.f32 %v626, %v627
    %s629 = sld [smem:[#allocation3 + $0x93]]
    %v630 = vstv %s629
    %v631 = vmul.f32 %v630, %v624
    %v632 = vmul.f32 %v624, %v624
    %v633 = vmul.f32 %v632, %v628
    %v634 = vadd.f32 %v633, 1e-05
    %v635 = vrsqrt.pop %v634
    %v636 = vmul.f32 %v631, %v635
    %s637 = sld [smem:[#allocation3 + $0x9b]]
    %v638 = vsub.f32 %v581, %v625
    %v639 = vsub.f32 %v582, %v625
    %v640 = vmul.f32 %v638, %v636
    %v641 = vmul.f32 %v639, %v636
    %v642 = vstv %s637
    %v643 = vadd.f32 %v640, %v642
    %v644 = vadd.f32 %v641, %v642
    %v645 = vmul.f32 %v643, 0.5
    %v646 = vmul.f32 %v644, 0.5
    %v647 = vtanh.pop %v645
    %v648 = vtanh.pop %v646
    %v649 = vmul.f32 %v647, 0.5
    %v650 = vmul.f32 %v648, 0.5
    %v651 = vadd.f32 %v649, 0.5
    %v652 = vadd.f32 %v650, 0.5
    %v655 = vrot.slane %v651, 2
    %v656 = vrot.slane %v652, 2
    %659 = vst [vmem:[#allocation2] sm:$0xc0] %v655
    %660 = vst [vmem:[#allocation2 + $0x8] sm:$0xc0] %v656
    %v661 = vsub.f32 %v580, %v625
    %v662 = vmul.f32 %v661, %v636
    %v663 = vadd.f32 %v662, %v642
    %v664 = vmul.f32 %v663, 0.5
    %v665 = vtanh.pop %v664
    %v666 = vmul.f32 %v665, 0.5
    %v667 = vadd.f32 %v666, 0.5
    %s668 = sld [smem:[#allocation3 + $0x74]]
    %s669 = sld [smem:[#allocation3 + $0x7c]]
    %s670 = sadd.f32 %s668, %s669
    %s671 = sld [smem:[#allocation3 + $0x4]]
    %v672 = vld [vmem:[%s1] sm:$0x3]
    %v673 = vld [vmem:[%s1 + $0x8] sm:$0x3]
    %v674 = vstv %s671
    %v675 = vmul.f32 %v674, %v672
    %v676 = vmul.f32 %v674, %v673
    %s677 = sld [smem:[#allocation3 + $0x1c]]
    %v678 = vld [vmem:[%s2] sm:$0x3]
    %v679 = vld [vmem:[%s2 + $0x8] sm:$0x3]
    %v680 = vstv %s677
    %v681 = vmul.f32 %v680, %v678
    %v682 = vmul.f32 %v680, %v679
    %v683 = vadd.f32 %v675, %v681
    %v684 = vadd.f32 %v676, %v682
    %s685 = sld [smem:[#allocation3 + $0xc]]
    %v686 = vld [vmem:[%s1] sm:$0xc]
    %v687 = vld [vmem:[%s1 + $0x8] sm:$0xc]
    %v688 = vstv %s685
    %v689 = vmul.f32 %v688, %v686
    %v690 = vmul.f32 %v688, %v687
    %v693 = vrot.slane %v689, 2
    %v694 = vrot.slane %v690, 2
    %v697 = vadd.f32 %v683, %v693
    %v698 = vadd.f32 %v684, %v694
    %s699 = sld [smem:[#allocation3 + $0x24]]
    %v700 = vld [vmem:[%s2] sm:$0xc]
    %v701 = vld [vmem:[%s2 + $0x8] sm:$0xc]
    %v702 = vstv %s699
    %v703 = vmul.f32 %v702, %v700
    %v704 = vmul.f32 %v702, %v701
    %v707 = vrot.slane %v703, 2
    %v708 = vrot.slane %v704, 2
    %v711 = vadd.f32 %v697, %v707
    %v712 = vadd.f32 %v698, %v708
    %s713 = sld [smem:[#allocation3 + $0x14]]
    %v714 = vld [vmem:[%s1] sm:$0x30]
    %v715 = vld [vmem:[%s1 + $0x8] sm:$0x30]
    %v716 = vstv %s713
    %v717 = vmul.f32 %v716, %v714
    %v718 = vmul.f32 %v716, %v715
    %v721 = vrot.slane %v717, 4
    %v722 = vrot.slane %v718, 4
    %v725 = vadd.f32 %v711, %v721
    %v726 = vadd.f32 %v712, %v722
    %s727 = sld [smem:[#allocation3 + $0x2c]]
    %v728 = vld [vmem:[%s2] sm:$0x30]
    %v729 = vld [vmem:[%s2 + $0x8] sm:$0x30]
    %v730 = vstv %s727
    %v731 = vmul.f32 %v730, %v728
    %v732 = vmul.f32 %v730, %v729
    %v735 = vrot.slane %v731, 4
    %v736 = vrot.slane %v732, 4
    %v739 = vadd.f32 %v725, %v735
    %v740 = vadd.f32 %v726, %v736
    %v741 = vstv %s670
    %v742 = vadd.f32 %v739, %v741
    %v743 = vadd.f32 %v740, %v741
    %v744 = vmul.f32 %v742, %v742
    %v745 = vmul.f32 %v743, %v743
    %v746 = vsel %vm107, %v742, 0.0
    %v747 = vsel %vm107, %v743, 0.0
    %v748 = vadd.f32 %v746, %v747
    %749 = vadd.xlane.f32.xlu0 %v748
    %v750 = vpop.xlane.xlu0 %749
    %s751 = smul.f32 %s670, 68.0
    %v752 = vstv %s751
    %v753 = vadd.f32 %v750, %v752
    %v754 = vsel %vm107, %v744, 0.0
    %v755 = vsel %vm107, %v745, 0.0
    %v756 = vadd.f32 %v754, %v755
    %757 = vadd.xlane.f32.xlu0 %v756
    %v758 = vpop.xlane.xlu0 %757
    %s759 = smul.f32 %s670, %s670
    %s760 = smul.f32 %s759, 68.0
    %v761 = vstv %s760
    %v762 = vadd.f32 %v758, %v761
    %v763 = vsel %vm107, %v753, 0.0
    %v764 = vrot.slane %v763, 4
    %v765 = vadd.f32 %v763, %v764
    %v766 = vrot.slane %v765, 2
    %v767 = vadd.f32 %v765, %v766
    %v768 = vrot.slane %v767, 1
    %v769 = vadd.f32 %v767, %v768
    %v770 = vsel %vm107, %v762, 0.0
    %v771 = vrot.slane %v770, 4
    %v772 = vadd.f32 %v770, %v771
    %v773 = vrot.slane %v772, 2
    %v774 = vadd.f32 %v772, %v773
    %v775 = vrot.slane %v774, 1
    %v776 = vadd.f32 %v774, %v775
    %v777 = vmul.f32 %v769, 0.0015432099
    %v778 = vmul.f32 %v776, 0.0015432099
    %v779 = vmul.f32 %v777, %v777
    %v780 = vsub.f32 %v778, %v779
    %s781 = sld [smem:[#allocation3 + $0x8c]]
    %v782 = vadd.f32 %v780, 1e-05
    %v783 = vrsqrt.pop %v782
    %v784 = vstv %s781
    %v785 = vmul.f32 %v784, %v783
    %v786 = vmul.f32 %v753, 0.0030864198
    %v787 = vmul.f32 %v762, 0.0030864198
    %v788 = vmul.f32 %v786, %v786
    %v789 = vsub.f32 %v787, %v788
    %s790 = sld [smem:[#allocation3 + $0x94]]
    %v791 = vstv %s790
    %v792 = vmul.f32 %v791, %v785
    %v793 = vmul.f32 %v785, %v785
    %v794 = vmul.f32 %v793, %v789
    %v795 = vadd.f32 %v794, 1e-05
    %v796 = vrsqrt.pop %v795
    %v797 = vmul.f32 %v792, %v796
    %s798 = sld [smem:[#allocation3 + $0x9c]]
    %v799 = vsub.f32 %v742, %v786
    %v800 = vsub.f32 %v743, %v786
    %v801 = vmul.f32 %v799, %v797
    %v802 = vmul.f32 %v800, %v797
    %v803 = vstv %s798
    %v804 = vadd.f32 %v801, %v803
    %v805 = vadd.f32 %v802, %v803
    %v806 = vmul.f32 %v804, 0.5
    %v807 = vmul.f32 %v805, 0.5
    %v808 = vtanh.pop %v806
    %v809 = vtanh.pop %v807
    %v810 = vmul.f32 %v808, 0.5
    %v811 = vmul.f32 %v809, 0.5
    %v812 = vadd.f32 %v810, 0.5
    %v813 = vadd.f32 %v811, 0.5
    %814 = vst [vmem:[#allocation2 + $0x10] sm:$0x3] %v812
    %815 = vst [vmem:[#allocation2 + $0x18] sm:$0x3] %v813
    %v816 = vsub.f32 %v741, %v786
    %v817 = vmul.f32 %v816, %v797
    %v818 = vadd.f32 %v817, %v803
    %v819 = vmul.f32 %v818, 0.5
    %v820 = vtanh.pop %v819
    %v821 = vmul.f32 %v820, 0.5
    %v822 = vadd.f32 %v821, 0.5
    %s823 = sld [smem:[#allocation3 + $0x75]]
    %s824 = sld [smem:[#allocation3 + $0x7d]]
    %s825 = sadd.f32 %s823, %s824
    %s826 = sld [smem:[#allocation3 + $0x5]]
    %v827 = vld [vmem:[%s1] sm:$0x3]
    %v828 = vld [vmem:[%s1 + $0x8] sm:$0x3]
    %v829 = vstv %s826
    %v830 = vmul.f32 %v829, %v827
    %v831 = vmul.f32 %v829, %v828
    %s832 = sld [smem:[#allocation3 + $0x1d]]
    %v833 = vld [vmem:[%s2] sm:$0x3]
    %v834 = vld [vmem:[%s2 + $0x8] sm:$0x3]
    %v835 = vstv %s832
    %v836 = vmul.f32 %v835, %v833
    %v837 = vmul.f32 %v835, %v834
    %v838 = vadd.f32 %v830, %v836
    %v839 = vadd.f32 %v831, %v837
    %s840 = sld [smem:[#allocation3 + $0xd]]
    %v841 = vld [vmem:[%s1] sm:$0xc]
    %v842 = vld [vmem:[%s1 + $0x8] sm:$0xc]
    %v843 = vstv %s840
    %v844 = vmul.f32 %v843, %v841
    %v845 = vmul.f32 %v843, %v842
    %v848 = vrot.slane %v844, 2
    %v849 = vrot.slane %v845, 2
    %v852 = vadd.f32 %v838, %v848
    %v853 = vadd.f32 %v839, %v849
    %s854 = sld [smem:[#allocation3 + $0x25]]
    %v855 = vld [vmem:[%s2] sm:$0xc]
    %v856 = vld [vmem:[%s2 + $0x8] sm:$0xc]
    %v857 = vstv %s854
    %v858 = vmul.f32 %v857, %v855
    %v859 = vmul.f32 %v857, %v856
    %v862 = vrot.slane %v858, 2
    %v863 = vrot.slane %v859, 2
    %v866 = vadd.f32 %v852, %v862
    %v867 = vadd.f32 %v853, %v863
    %s868 = sld [smem:[#allocation3 + $0x15]]
    %v869 = vld [vmem:[%s1] sm:$0x30]
    %v870 = vld [vmem:[%s1 + $0x8] sm:$0x30]
    %v871 = vstv %s868
    %v872 = vmul.f32 %v871, %v869
    %v873 = vmul.f32 %v871, %v870
    %v876 = vrot.slane %v872, 4
    %v877 = vrot.slane %v873, 4
    %v880 = vadd.f32 %v866, %v876
    %v881 = vadd.f32 %v867, %v877
    %s882 = sld [smem:[#allocation3 + $0x2d]]
    %v883 = vld [vmem:[%s2] sm:$0x30]
    %v884 = vld [vmem:[%s2 + $0x8] sm:$0x30]
    %v885 = vstv %s882
    %v886 = vmul.f32 %v885, %v883
    %v887 = vmul.f32 %v885, %v884
    %v890 = vrot.slane %v886, 4
    %v891 = vrot.slane %v887, 4
    %v894 = vadd.f32 %v880, %v890
    %v895 = vadd.f32 %v881, %v891
    %v896 = vstv %s825
    %v897 = vadd.f32 %v894, %v896
    %v898 = vadd.f32 %v895, %v896
    %v899 = vmul.f32 %v897, %v897
    %v900 = vmul.f32 %v898, %v898
    %v901 = vsel %vm107, %v897, 0.0
    %v902 = vsel %vm107, %v898, 0.0
    %v903 = vadd.f32 %v901, %v902
    %904 = vadd.xlane.f32.xlu0 %v903
    %v905 = vpop.xlane.xlu0 %904
    %s906 = smul.f32 %s825, 68.0
    %v907 = vstv %s906
    %v908 = vadd.f32 %v905, %v907
    %v909 = vsel %vm107, %v899, 0.0
    %v910 = vsel %vm107, %v900, 0.0
    %v911 = vadd.f32 %v909, %v910
    %912 = vadd.xlane.f32.xlu0 %v911
    %v913 = vpop.xlane.xlu0 %912
    %s914 = smul.f32 %s825, %s825
    %s915 = smul.f32 %s914, 68.0
    %v916 = vstv %s915
    %v917 = vadd.f32 %v913, %v916
    %v918 = vsel %vm107, %v908, 0.0
    %v919 = vrot.slane %v918, 4
    %v920 = vadd.f32 %v918, %v919
    %v921 = vrot.slane %v920, 2
    %v922 = vadd.f32 %v920, %v921
    %v923 = vrot.slane %v922, 1
    %v924 = vadd.f32 %v922, %v923
    %v925 = vsel %vm107, %v917, 0.0
    %v926 = vrot.slane %v925, 4
    %v927 = vadd.f32 %v925, %v926
    %v928 = vrot.slane %v927, 2
    %v929 = vadd.f32 %v927, %v928
    %v930 = vrot.slane %v929, 1
    %v931 = vadd.f32 %v929, %v930
    %v932 = vmul.f32 %v924, 0.0015432099
    %v933 = vmul.f32 %v931, 0.0015432099
    %v934 = vmul.f32 %v932, %v932
    %v935 = vsub.f32 %v933, %v934
    %s936 = sld [smem:[#allocation3 + $0x8d]]
    %v937 = vadd.f32 %v935, 1e-05
    %v938 = vrsqrt.pop %v937
    %v939 = vstv %s936
    %v940 = vmul.f32 %v939, %v938
    %v941 = vmul.f32 %v908, 0.0030864198
    %v942 = vmul.f32 %v917, 0.0030864198
    %v943 = vmul.f32 %v941, %v941
    %v944 = vsub.f32 %v942, %v943
    %s945 = sld [smem:[#allocation3 + $0x95]]
    %v946 = vstv %s945
    %v947 = vmul.f32 %v946, %v940
    %v948 = vmul.f32 %v940, %v940
    %v949 = vmul.f32 %v948, %v944
    %v950 = vadd.f32 %v949, 1e-05
    %v951 = vrsqrt.pop %v950
    %v952 = vmul.f32 %v947, %v951
    %s953 = sld [smem:[#allocation3 + $0x9d]]
    %v954 = vsub.f32 %v897, %v941
    %v955 = vsub.f32 %v898, %v941
    %v956 = vmul.f32 %v954, %v952
    %v957 = vmul.f32 %v955, %v952
    %v958 = vstv %s953
    %v959 = vadd.f32 %v956, %v958
    %v960 = vadd.f32 %v957, %v958
    %v961 = vmul.f32 %v959, 0.5
    %v962 = vmul.f32 %v960, 0.5
    %v963 = vtanh.pop %v961
    %v964 = vtanh.pop %v962
    %v965 = vmul.f32 %v963, 0.5
    %v966 = vmul.f32 %v964, 0.5
    %v967 = vadd.f32 %v965, 0.5
    %v968 = vadd.f32 %v966, 0.5
    %v971 = vrot.slane %v967, 6
    %v972 = vrot.slane %v968, 6
    %975 = vst [vmem:[#allocation2 + $0x10] sm:$0xc] %v971
    %976 = vst [vmem:[#allocation2 + $0x18] sm:$0xc] %v972
    %v977 = vsub.f32 %v896, %v941
    %v978 = vmul.f32 %v977, %v952
    %v979 = vadd.f32 %v978, %v958
    %v980 = vmul.f32 %v979, 0.5
    %v981 = vtanh.pop %v980
    %v982 = vmul.f32 %v981, 0.5
    %v983 = vadd.f32 %v982, 0.5
    %s984 = sld [smem:[#allocation3 + $0x76]]
    %s985 = sld [smem:[#allocation3 + $0x7e]]
    %s986 = sadd.f32 %s984, %s985
    %s987 = sld [smem:[#allocation3 + $0x6]]
    %v988 = vld [vmem:[%s1] sm:$0x3]
    %v989 = vld [vmem:[%s1 + $0x8] sm:$0x3]
    %v990 = vstv %s987
    %v991 = vmul.f32 %v990, %v988
    %v992 = vmul.f32 %v990, %v989
    %s993 = sld [smem:[#allocation3 + $0x1e]]
    %v994 = vld [vmem:[%s2] sm:$0x3]
    %v995 = vld [vmem:[%s2 + $0x8] sm:$0x3]
    %v996 = vstv %s993
    %v997 = vmul.f32 %v996, %v994
    %v998 = vmul.f32 %v996, %v995
    %v999 = vadd.f32 %v991, %v997
    %v1000 = vadd.f32 %v992, %v998
    %s1001 = sld [smem:[#allocation3 + $0xe]]
    %v1002 = vld [vmem:[%s1] sm:$0xc]
    %v1003 = vld [vmem:[%s1 + $0x8] sm:$0xc]
    %v1004 = vstv %s1001
    %v1005 = vmul.f32 %v1004, %v1002
    %v1006 = vmul.f32 %v1004, %v1003
    %v1009 = vrot.slane %v1005, 2
    %v1010 = vrot.slane %v1006, 2
    %v1013 = vadd.f32 %v999, %v1009
    %v1014 = vadd.f32 %v1000, %v1010
    %s1015 = sld [smem:[#allocation3 + $0x26]]
    %v1016 = vld [vmem:[%s2] sm:$0xc]
    %v1017 = vld [vmem:[%s2 + $0x8] sm:$0xc]
    %v1018 = vstv %s1015
    %v1019 = vmul.f32 %v1018, %v1016
    %v1020 = vmul.f32 %v1018, %v1017
    %v1023 = vrot.slane %v1019, 2
    %v1024 = vrot.slane %v1020, 2
    %v1027 = vadd.f32 %v1013, %v1023
    %v1028 = vadd.f32 %v1014, %v1024
    %s1029 = sld [smem:[#allocation3 + $0x16]]
    %v1030 = vld [vmem:[%s1] sm:$0x30]
    %v1031 = vld [vmem:[%s1 + $0x8] sm:$0x30]
    %v1032 = vstv %s1029
    %v1033 = vmul.f32 %v1032, %v1030
    %v1034 = vmul.f32 %v1032, %v1031
    %v1037 = vrot.slane %v1033, 4
    %v1038 = vrot.slane %v1034, 4
    %v1041 = vadd.f32 %v1027, %v1037
    %v1042 = vadd.f32 %v1028, %v1038
    %s1043 = sld [smem:[#allocation3 + $0x2e]]
    %v1044 = vld [vmem:[%s2] sm:$0x30]
    %v1045 = vld [vmem:[%s2 + $0x8] sm:$0x30]
    %v1046 = vstv %s1043
    %v1047 = vmul.f32 %v1046, %v1044
    %v1048 = vmul.f32 %v1046, %v1045
    %v1051 = vrot.slane %v1047, 4
    %v1052 = vrot.slane %v1048, 4
    %v1055 = vadd.f32 %v1041, %v1051
    %v1056 = vadd.f32 %v1042, %v1052
    %v1057 = vstv %s986
    %v1058 = vadd.f32 %v1055, %v1057
    %v1059 = vadd.f32 %v1056, %v1057
    %v1060 = vmul.f32 %v1058, %v1058
    %v1061 = vmul.f32 %v1059, %v1059
    %v1062 = vsel %vm107, %v1058, 0.0
    %v1063 = vsel %vm107, %v1059, 0.0
    %v1064 = vadd.f32 %v1062, %v1063
    %1065 = vadd.xlane.f32.xlu0 %v1064
    %v1066 = vpop.xlane.xlu0 %1065
    %s1067 = smul.f32 %s986, 68.0
    %v1068 = vstv %s1067
    %v1069 = vadd.f32 %v1066, %v1068
    %v1070 = vsel %vm107, %v1060, 0.0
    %v1071 = vsel %vm107, %v1061, 0.0
    %v1072 = vadd.f32 %v1070, %v1071
    %1073 = vadd.xlane.f32.xlu0 %v1072
    %v1074 = vpop.xlane.xlu0 %1073
    %s1075 = smul.f32 %s986, %s986
    %s1076 = smul.f32 %s1075, 68.0
    %v1077 = vstv %s1076
    %v1078 = vadd.f32 %v1074, %v1077
    %v1079 = vsel %vm107, %v1069, 0.0
    %v1080 = vrot.slane %v1079, 4
    %v1081 = vadd.f32 %v1079, %v1080
    %v1082 = vrot.slane %v1081, 2
    %v1083 = vadd.f32 %v1081, %v1082
    %v1084 = vrot.slane %v1083, 1
    %v1085 = vadd.f32 %v1083, %v1084
    %v1086 = vsel %vm107, %v1078, 0.0
    %v1087 = vrot.slane %v1086, 4
    %v1088 = vadd.f32 %v1086, %v1087
    %v1089 = vrot.slane %v1088, 2
    %v1090 = vadd.f32 %v1088, %v1089
    %v1091 = vrot.slane %v1090, 1
    %v1092 = vadd.f32 %v1090, %v1091
    %v1093 = vmul.f32 %v1085, 0.0015432099
    %v1094 = vmul.f32 %v1092, 0.0015432099
    %v1095 = vmul.f32 %v1093, %v1093
    %v1096 = vsub.f32 %v1094, %v1095
    %s1097 = sld [smem:[#allocation3 + $0x8e]]
    %v1098 = vadd.f32 %v1096, 1e-05
    %v1099 = vrsqrt.pop %v1098
    %v1100 = vstv %s1097
    %v1101 = vmul.f32 %v1100, %v1099
    %v1102 = vmul.f32 %v1069, 0.0030864198
    %v1103 = vmul.f32 %v1078, 0.0030864198
    %v1104 = vmul.f32 %v1102, %v1102
    %v1105 = vsub.f32 %v1103, %v1104
    %s1106 = sld [smem:[#allocation3 + $0x96]]
    %v1107 = vstv %s1106
    %v1108 = vmul.f32 %v1107, %v1101
    %v1109 = vmul.f32 %v1101, %v1101
    %v1110 = vmul.f32 %v1109, %v1105
    %v1111 = vadd.f32 %v1110, 1e-05
    %v1112 = vrsqrt.pop %v1111
    %v1113 = vmul.f32 %v1108, %v1112
    %s1114 = sld [smem:[#allocation3 + $0x9e]]
    %v1115 = vsub.f32 %v1058, %v1102
    %v1116 = vsub.f32 %v1059, %v1102
    %v1117 = vmul.f32 %v1115, %v1113
    %v1118 = vmul.f32 %v1116, %v1113
    %v1119 = vstv %s1114
    %v1120 = vadd.f32 %v1117, %v1119
    %v1121 = vadd.f32 %v1118, %v1119
    %v1122 = vmul.f32 %v1120, 0.5
    %v1123 = vmul.f32 %v1121, 0.5
    %v1124 = vtanh.pop %v1122
    %v1125 = vtanh.pop %v1123
    %v1126 = vmul.f32 %v1124, 0.5
    %v1127 = vmul.f32 %v1125, 0.5
    %v1128 = vadd.f32 %v1126, 0.5
    %v1129 = vadd.f32 %v1127, 0.5
    %v1132 = vrot.slane %v1128, 4
    %v1133 = vrot.slane %v1129, 4
    %1136 = vst [vmem:[#allocation2 + $0x10] sm:$0x30] %v1132
    %1137 = vst [vmem:[#allocation2 + $0x18] sm:$0x30] %v1133
    %v1138 = vsub.f32 %v1057, %v1102
    %v1139 = vmul.f32 %v1138, %v1113
    %v1140 = vadd.f32 %v1139, %v1119
    %v1141 = vmul.f32 %v1140, 0.5
    %v1142 = vtanh.pop %v1141
    %v1143 = vmul.f32 %v1142, 0.5
    %v1144 = vadd.f32 %v1143, 0.5
    %s1145 = sld [smem:[#allocation3 + $0x77]]
    %s1146 = sld [smem:[#allocation3 + $0x7f]]
    %s1147 = sadd.f32 %s1145, %s1146
    %s1148 = sld [smem:[#allocation3 + $0x7]]
    %v1149 = vld [vmem:[%s1] sm:$0x3]
    %v1150 = vld [vmem:[%s1 + $0x8] sm:$0x3]
    %v1151 = vstv %s1148
    %v1152 = vmul.f32 %v1151, %v1149
    %v1153 = vmul.f32 %v1151, %v1150
    %s1154 = sld [smem:[#allocation3 + $0x1f]]
    %v1155 = vld [vmem:[%s2] sm:$0x3]
    %v1156 = vld [vmem:[%s2 + $0x8] sm:$0x3]
    %v1157 = vstv %s1154
    %v1158 = vmul.f32 %v1157, %v1155
    %v1159 = vmul.f32 %v1157, %v1156
    %v1160 = vadd.f32 %v1152, %v1158
    %v1161 = vadd.f32 %v1153, %v1159
    %s1162 = sld [smem:[#allocation3 + $0xf]]
    %v1163 = vld [vmem:[%s1] sm:$0xc]
    %v1164 = vld [vmem:[%s1 + $0x8] sm:$0xc]
    %v1165 = vstv %s1162
    %v1166 = vmul.f32 %v1165, %v1163
    %v1167 = vmul.f32 %v1165, %v1164
    %v1170 = vrot.slane %v1166, 2
    %v1171 = vrot.slane %v1167, 2
    %v1174 = vadd.f32 %v1160, %v1170
    %v1175 = vadd.f32 %v1161, %v1171
    %s1176 = sld [smem:[#allocation3 + $0x27]]
    %v1177 = vld [vmem:[%s2] sm:$0xc]
    %v1178 = vld [vmem:[%s2 + $0x8] sm:$0xc]
    %v1179 = vstv %s1176
    %v1180 = vmul.f32 %v1179, %v1177
    %v1181 = vmul.f32 %v1179, %v1178
    %v1184 = vrot.slane %v1180, 2
    %v1185 = vrot.slane %v1181, 2
    %v1188 = vadd.f32 %v1174, %v1184
    %v1189 = vadd.f32 %v1175, %v1185
    %s1190 = sld [smem:[#allocation3 + $0x17]]
    %v1191 = vld [vmem:[%s1] sm:$0x30]
    %v1192 = vld [vmem:[%s1 + $0x8] sm:$0x30]
    %v1193 = vstv %s1190
    %v1194 = vmul.f32 %v1193, %v1191
    %v1195 = vmul.f32 %v1193, %v1192
    %v1198 = vrot.slane %v1194, 4
    %v1199 = vrot.slane %v1195, 4
    %v1202 = vadd.f32 %v1188, %v1198
    %v1203 = vadd.f32 %v1189, %v1199
    %s1204 = sld [smem:[#allocation3 + $0x2f]]
    %v1205 = vld [vmem:[%s2] sm:$0x30]
    %v1206 = vld [vmem:[%s2 + $0x8] sm:$0x30]
    %v1207 = vstv %s1204
    %v1208 = vmul.f32 %v1207, %v1205
    %v1209 = vmul.f32 %v1207, %v1206
    %v1212 = vrot.slane %v1208, 4
    %v1213 = vrot.slane %v1209, 4
    %v1216 = vadd.f32 %v1202, %v1212
    %v1217 = vadd.f32 %v1203, %v1213
    %v1218 = vstv %s1147
    %v1219 = vadd.f32 %v1216, %v1218
    %v1220 = vadd.f32 %v1217, %v1218
    %v1221 = vmul.f32 %v1219, %v1219
    %v1222 = vmul.f32 %v1220, %v1220
    %v1223 = vsel %vm107, %v1219, 0.0
    %v1224 = vsel %vm107, %v1220, 0.0
    %v1225 = vadd.f32 %v1223, %v1224
    %1226 = vadd.xlane.f32.xlu0 %v1225
    %v1227 = vpop.xlane.xlu0 %1226
    %s1228 = smul.f32 %s1147, 68.0
    %v1229 = vstv %s1228
    %v1230 = vadd.f32 %v1227, %v1229
    %v1231 = vsel %vm107, %v1221, 0.0
    %v1232 = vsel %vm107, %v1222, 0.0
    %v1233 = vadd.f32 %v1231, %v1232
    %1234 = vadd.xlane.f32.xlu0 %v1233
    %v1235 = vpop.xlane.xlu0 %1234
    %s1236 = smul.f32 %s1147, %s1147
    %s1237 = smul.f32 %s1236, 68.0
    %v1238 = vstv %s1237
    %v1239 = vadd.f32 %v1235, %v1238
    %v1240 = vsel %vm107, %v1230, 0.0
    %v1241 = vrot.slane %v1240, 4
    %v1242 = vadd.f32 %v1240, %v1241
    %v1243 = vrot.slane %v1242, 2
    %v1244 = vadd.f32 %v1242, %v1243
    %v1245 = vrot.slane %v1244, 1
    %v1246 = vadd.f32 %v1244, %v1245
    %v1247 = vsel %vm107, %v1239, 0.0
    %v1248 = vrot.slane %v1247, 4
    %v1249 = vadd.f32 %v1247, %v1248
    %v1250 = vrot.slane %v1249, 2
    %v1251 = vadd.f32 %v1249, %v1250
    %v1252 = vrot.slane %v1251, 1
    %v1253 = vadd.f32 %v1251, %v1252
    %v1254 = vmul.f32 %v1246, 0.0015432099
    %v1255 = vmul.f32 %v1253, 0.0015432099
    %v1256 = vmul.f32 %v1254, %v1254
    %v1257 = vsub.f32 %v1255, %v1256
    %s1258 = sld [smem:[#allocation3 + $0x8f]]
    %v1259 = vadd.f32 %v1257, 1e-05
    %v1260 = vrsqrt.pop %v1259
    %v1261 = vstv %s1258
    %v1262 = vmul.f32 %v1261, %v1260
    %v1263 = vmul.f32 %v1230, 0.0030864198
    %v1264 = vmul.f32 %v1239, 0.0030864198
    %v1265 = vmul.f32 %v1263, %v1263
    %v1266 = vsub.f32 %v1264, %v1265
    %s1267 = sld [smem:[#allocation3 + $0x97]]
    %v1268 = vstv %s1267
    %v1269 = vmul.f32 %v1268, %v1262
    %v1270 = vmul.f32 %v1262, %v1262
    %v1271 = vmul.f32 %v1270, %v1266
    %v1272 = vadd.f32 %v1271, 1e-05
    %v1273 = vrsqrt.pop %v1272
    %v1274 = vmul.f32 %v1269, %v1273
    %s1275 = sld [smem:[#allocation3 + $0x9f]]
    %v1276 = vsub.f32 %v1219, %v1263
    %v1277 = vsub.f32 %v1220, %v1263
    %v1278 = vmul.f32 %v1276, %v1274
    %v1279 = vmul.f32 %v1277, %v1274
    %v1280 = vstv %s1275
    %v1281 = vadd.f32 %v1278, %v1280
    %v1282 = vadd.f32 %v1279, %v1280
    %v1283 = vmul.f32 %v1281, 0.5
    %v1284 = vmul.f32 %v1282, 0.5
    %v1285 = vtanh.pop %v1283
    %v1286 = vtanh.pop %v1284
    %v1287 = vmul.f32 %v1285, 0.5
    %v1288 = vmul.f32 %v1286, 0.5
    %v1289 = vadd.f32 %v1287, 0.5
    %v1290 = vadd.f32 %v1288, 0.5
    %v1293 = vrot.slane %v1289, 2
    %v1294 = vrot.slane %v1290, 2
    %1297 = vst [vmem:[#allocation2 + $0x10] sm:$0xc0] %v1293
    %1298 = vst [vmem:[#allocation2 + $0x18] sm:$0xc0] %v1294
    %v1299 = vsub.f32 %v1218, %v1263
    %v1300 = vmul.f32 %v1299, %v1274
    %v1301 = vadd.f32 %v1300, %v1280
    %v1302 = vmul.f32 %v1301, 0.5
    %v1303 = vtanh.pop %v1302
    %v1304 = vmul.f32 %v1303, 0.5
    %v1305 = vadd.f32 %v1304, 0.5
    %s1306 = sld [smem:[#allocation3 + $0x80]]
    %s1307 = sld [smem:[#allocation3 + $0x30]]
    %v1308 = vld [vmem:[#allocation2] sm:$0x3]
    %v1309 = vld [vmem:[#allocation2 + $0x8] sm:$0x3]
    %v1310 = vstv %s1307
    %v1311 = vmul.f32 %v1310, %v1308
    %v1312 = vmul.f32 %v1310, %v1309
    %v1313 = vmul.f32 %v1310, %v184
    %s1314 = sld [smem:[#allocation3 + $0x38]]
    %v1315 = vld [vmem:[#allocation2] sm:$0xc]
    %v1316 = vld [vmem:[#allocation2 + $0x8] sm:$0xc]
    %v1317 = vstv %s1314
    %v1318 = vmul.f32 %v1317, %v1315
    %v1319 = vmul.f32 %v1317, %v1316
    %v1322 = vrot.slane %v1318, 2
    %v1323 = vrot.slane %v1319, 2
    %v1326 = vadd.f32 %v1311, %v1322
    %v1327 = vadd.f32 %v1312, %v1323
    %v1328 = vmul.f32 %v1317, %v345
    %v1329 = vadd.f32 %v1313, %v1328
    %s1330 = sld [smem:[#allocation3 + $0x40]]
    %v1331 = vld [vmem:[#allocation2] sm:$0x30]
    %v1332 = vld [vmem:[#allocation2 + $0x8] sm:$0x30]
    %v1333 = vstv %s1330
    %v1334 = vmul.f32 %v1333, %v1331
    %v1335 = vmul.f32 %v1333, %v1332
    %v1338 = vrot.slane %v1334, 4
    %v1339 = vrot.slane %v1335, 4
    %v1342 = vadd.f32 %v1326, %v1338
    %v1343 = vadd.f32 %v1327, %v1339
    %v1344 = vmul.f32 %v1333, %v506
    %v1345 = vadd.f32 %v1329, %v1344
    %s1346 = sld [smem:[#allocation3 + $0x48]]
    %v1347 = vld [vmem:[#allocation2] sm:$0xc0]
    %v1348 = vld [vmem:[#allocation2 + $0x8] sm:$0xc0]
    %v1349 = vstv %s1346
    %v1350 = vmul.f32 %v1349, %v1347
    %v1351 = vmul.f32 %v1349, %v1348
    %v1354 = vrot.slane %v1350, 6
    %v1355 = vrot.slane %v1351, 6
    %v1358 = vadd.f32 %v1342, %v1354
    %v1359 = vadd.f32 %v1343, %v1355
    %v1360 = vmul.f32 %v1349, %v667
    %v1361 = vadd.f32 %v1345, %v1360
    %s1362 = sld [smem:[#allocation3 + $0x50]]
    %v1363 = vld [vmem:[#allocation2 + $0x10] sm:$0x3]
    %v1364 = vld [vmem:[#allocation2 + $0x18] sm:$0x3]
    %v1365 = vstv %s1362
    %v1366 = vmul.f32 %v1365, %v1363
    %v1367 = vmul.f32 %v1365, %v1364
    %v1368 = vadd.f32 %v1358, %v1366
    %v1369 = vadd.f32 %v1359, %v1367
    %v1370 = vmul.f32 %v1365, %v822
    %v1371 = vadd.f32 %v1361, %v1370
    %s1372 = sld [smem:[#allocation3 + $0x58]]
    %v1373 = vld [vmem:[#allocation2 + $0x10] sm:$0xc]
    %v1374 = vld [vmem:[#allocation2 + $0x18] sm:$0xc]
    %v1375 = vstv %s1372
    %v1376 = vmul.f32 %v1375, %v1373
    %v1377 = vmul.f32 %v1375, %v1374
    %v1380 = vrot.slane %v1376, 2
    %v1381 = vrot.slane %v1377, 2
    %v1384 = vadd.f32 %v1368, %v1380
    %v1385 = vadd.f32 %v1369, %v1381
    %v1386 = vmul.f32 %v1375, %v983
    %v1387 = vadd.f32 %v1371, %v1386
    %s1388 = sld [smem:[#allocation3 + $0x60]]
    %v1389 = vld [vmem:[#allocation2 + $0x10] sm:$0x30]
    %v1390 = vld [vmem:[#allocation2 + $0x18] sm:$0x30]
    %v1391 = vstv %s1388
    %v1392 = vmul.f32 %v1391, %v1389
    %v1393 = vmul.f32 %v1391, %v1390
    %v1396 = vrot.slane %v1392, 4
    %v1397 = vrot.slane %v1393, 4
    %v1400 = vadd.f32 %v1384, %v1396
    %v1401 = vadd.f32 %v1385, %v1397
    %v1402 = vmul.f32 %v1391, %v1144
    %v1403 = vadd.f32 %v1387, %v1402
    %s1404 = sld [smem:[#allocation3 + $0x68]]
    %v1405 = vld [vmem:[#allocation2 + $0x10] sm:$0xc0]
    %v1406 = vld [vmem:[#allocation2 + $0x18] sm:$0xc0]
    %v1407 = vstv %s1404
    %v1408 = vmul.f32 %v1407, %v1405
    %v1409 = vmul.f32 %v1407, %v1406
    %v1412 = vrot.slane %v1408, 6
    %v1413 = vrot.slane %v1409, 6
    %v1416 = vadd.f32 %v1400, %v1412
    %v1417 = vadd.f32 %v1401, %v1413
    %v1418 = vmul.f32 %v1407, %v1305
    %v1419 = vadd.f32 %v1403, %v1418
    %v1420 = vstv %s1306
    %v1421 = vadd.f32 %v1416, %v1420
    %v1422 = vadd.f32 %v1417, %v1420
    %1423 = vst [vmem:[%s3] sm:$0x3] %v1421
    %1424 = vst [vmem:[%s3 + $0x8] sm:$0x3] %v1422
    %v1425 = vadd.f32 %v1419, %v1420
    %vm1426 = vcmask 1024
    %1427 = vst.msk [vmem:[%s4] sm:$0x3] %vm1426, %v1425
    %s1428 = sld [smem:[#allocation3 + $0x81]]
    %s1429 = sld [smem:[#allocation3 + $0x31]]
    %v1430 = vld [vmem:[#allocation2] sm:$0x3]
    %v1431 = vld [vmem:[#allocation2 + $0x8] sm:$0x3]
    %v1432 = vstv %s1429
    %v1433 = vmul.f32 %v1432, %v1430
    %v1434 = vmul.f32 %v1432, %v1431
    %v1435 = vmul.f32 %v1432, %v184
    %s1436 = sld [smem:[#allocation3 + $0x39]]
    %v1437 = vld [vmem:[#allocation2] sm:$0xc]
    %v1438 = vld [vmem:[#allocation2 + $0x8] sm:$0xc]
    %v1439 = vstv %s1436
    %v1440 = vmul.f32 %v1439, %v1437
    %v1441 = vmul.f32 %v1439, %v1438
    %v1444 = vrot.slane %v1440, 2
    %v1445 = vrot.slane %v1441, 2
    %v1448 = vadd.f32 %v1433, %v1444
    %v1449 = vadd.f32 %v1434, %v1445
    %v1450 = vmul.f32 %v1439, %v345
    %v1451 = vadd.f32 %v1435, %v1450
    %s1452 = sld [smem:[#allocation3 + $0x41]]
    %v1453 = vld [vmem:[#allocation2] sm:$0x30]
    %v1454 = vld [vmem:[#allocation2 + $0x8] sm:$0x30]
    %v1455 = vstv %s1452
    %v1456 = vmul.f32 %v1455, %v1453
    %v1457 = vmul.f32 %v1455, %v1454
    %v1460 = vrot.slane %v1456, 4
    %v1461 = vrot.slane %v1457, 4
    %v1464 = vadd.f32 %v1448, %v1460
    %v1465 = vadd.f32 %v1449, %v1461
    %v1466 = vmul.f32 %v1455, %v506
    %v1467 = vadd.f32 %v1451, %v1466
    %s1468 = sld [smem:[#allocation3 + $0x49]]
    %v1469 = vld [vmem:[#allocation2] sm:$0xc0]
    %v1470 = vld [vmem:[#allocation2 + $0x8] sm:$0xc0]
    %v1471 = vstv %s1468
    %v1472 = vmul.f32 %v1471, %v1469
    %v1473 = vmul.f32 %v1471, %v1470
    %v1476 = vrot.slane %v1472, 6
    %v1477 = vrot.slane %v1473, 6
    %v1480 = vadd.f32 %v1464, %v1476
    %v1481 = vadd.f32 %v1465, %v1477
    %v1482 = vmul.f32 %v1471, %v667
    %v1483 = vadd.f32 %v1467, %v1482
    %s1484 = sld [smem:[#allocation3 + $0x51]]
    %v1485 = vld [vmem:[#allocation2 + $0x10] sm:$0x3]
    %v1486 = vld [vmem:[#allocation2 + $0x18] sm:$0x3]
    %v1487 = vstv %s1484
    %v1488 = vmul.f32 %v1487, %v1485
    %v1489 = vmul.f32 %v1487, %v1486
    %v1490 = vadd.f32 %v1480, %v1488
    %v1491 = vadd.f32 %v1481, %v1489
    %v1492 = vmul.f32 %v1487, %v822
    %v1493 = vadd.f32 %v1483, %v1492
    %s1494 = sld [smem:[#allocation3 + $0x59]]
    %v1495 = vld [vmem:[#allocation2 + $0x10] sm:$0xc]
    %v1496 = vld [vmem:[#allocation2 + $0x18] sm:$0xc]
    %v1497 = vstv %s1494
    %v1498 = vmul.f32 %v1497, %v1495
    %v1499 = vmul.f32 %v1497, %v1496
    %v1502 = vrot.slane %v1498, 2
    %v1503 = vrot.slane %v1499, 2
    %v1506 = vadd.f32 %v1490, %v1502
    %v1507 = vadd.f32 %v1491, %v1503
    %v1508 = vmul.f32 %v1497, %v983
    %v1509 = vadd.f32 %v1493, %v1508
    %s1510 = sld [smem:[#allocation3 + $0x61]]
    %v1511 = vld [vmem:[#allocation2 + $0x10] sm:$0x30]
    %v1512 = vld [vmem:[#allocation2 + $0x18] sm:$0x30]
    %v1513 = vstv %s1510
    %v1514 = vmul.f32 %v1513, %v1511
    %v1515 = vmul.f32 %v1513, %v1512
    %v1518 = vrot.slane %v1514, 4
    %v1519 = vrot.slane %v1515, 4
    %v1522 = vadd.f32 %v1506, %v1518
    %v1523 = vadd.f32 %v1507, %v1519
    %v1524 = vmul.f32 %v1513, %v1144
    %v1525 = vadd.f32 %v1509, %v1524
    %s1526 = sld [smem:[#allocation3 + $0x69]]
    %v1527 = vld [vmem:[#allocation2 + $0x10] sm:$0xc0]
    %v1528 = vld [vmem:[#allocation2 + $0x18] sm:$0xc0]
    %v1529 = vstv %s1526
    %v1530 = vmul.f32 %v1529, %v1527
    %v1531 = vmul.f32 %v1529, %v1528
    %v1534 = vrot.slane %v1530, 6
    %v1535 = vrot.slane %v1531, 6
    %v1538 = vadd.f32 %v1522, %v1534
    %v1539 = vadd.f32 %v1523, %v1535
    %v1540 = vmul.f32 %v1529, %v1305
    %v1541 = vadd.f32 %v1525, %v1540
    %v1542 = vstv %s1428
    %v1543 = vadd.f32 %v1538, %v1542
    %v1544 = vadd.f32 %v1539, %v1542
    %v1547 = vrot.slane %v1543, 6
    %v1548 = vrot.slane %v1544, 6
    %1551 = vst [vmem:[%s3] sm:$0xc] %v1547
    %1552 = vst [vmem:[%s3 + $0x8] sm:$0xc] %v1548
    %v1553 = vadd.f32 %v1541, %v1542
    %vm1554 = vcmask 9224
    %1555 = vst.msk [vmem:[%s4] sm:$0x3] %vm1554, %v1553
    %s1556 = sld [smem:[#allocation3 + $0x82]]
    %s1557 = sld [smem:[#allocation3 + $0x32]]
    %v1558 = vld [vmem:[#allocation2] sm:$0x3]
    %v1559 = vld [vmem:[#allocation2 + $0x8] sm:$0x3]
    %v1560 = vstv %s1557
    %v1561 = vmul.f32 %v1560, %v1558
    %v1562 = vmul.f32 %v1560, %v1559
    %v1563 = vmul.f32 %v1560, %v184
    %s1564 = sld [smem:[#allocation3 + $0x3a]]
    %v1565 = vld [vmem:[#allocation2] sm:$0xc]
    %v1566 = vld [vmem:[#allocation2 + $0x8] sm:$0xc]
    %v1567 = vstv %s1564
    %v1568 = vmul.f32 %v1567, %v1565
    %v1569 = vmul.f32 %v1567, %v1566
    %v1572 = vrot.slane %v1568, 2
    %v1573 = vrot.slane %v1569, 2
    %v1576 = vadd.f32 %v1561, %v1572
    %v1577 = vadd.f32 %v1562, %v1573
    %v1578 = vmul.f32 %v1567, %v345
    %v1579 = vadd.f32 %v1563, %v1578
    %s1580 = sld [smem:[#allocation3 + $0x42]]
    %v1581 = vld [vmem:[#allocation2] sm:$0x30]
    %v1582 = vld [vmem:[#allocation2 + $0x8] sm:$0x30]
    %v1583 = vstv %s1580
    %v1584 = vmul.f32 %v1583, %v1581
    %v1585 = vmul.f32 %v1583, %v1582
    %v1588 = vrot.slane %v1584, 4
    %v1589 = vrot.slane %v1585, 4
    %v1592 = vadd.f32 %v1576, %v1588
    %v1593 = vadd.f32 %v1577, %v1589
    %v1594 = vmul.f32 %v1583, %v506
    %v1595 = vadd.f32 %v1579, %v1594
    %s1596 = sld [smem:[#allocation3 + $0x4a]]
    %v1597 = vld [vmem:[#allocation2] sm:$0xc0]
    %v1598 = vld [vmem:[#allocation2 + $0x8] sm:$0xc0]
    %v1599 = vstv %s1596
    %v1600 = vmul.f32 %v1599, %v1597
    %v1601 = vmul.f32 %v1599, %v1598
    %v1604 = vrot.slane %v1600, 6
    %v1605 = vrot.slane %v1601, 6
    %v1608 = vadd.f32 %v1592, %v1604
    %v1609 = vadd.f32 %v1593, %v1605
    %v1610 = vmul.f32 %v1599, %v667
    %v1611 = vadd.f32 %v1595, %v1610
    %s1612 = sld [smem:[#allocation3 + $0x52]]
    %v1613 = vld [vmem:[#allocation2 + $0x10] sm:$0x3]
    %v1614 = vld [vmem:[#allocation2 + $0x18] sm:$0x3]
    %v1615 = vstv %s1612
    %v1616 = vmul.f32 %v1615, %v1613
    %v1617 = vmul.f32 %v1615, %v1614
    %v1618 = vadd.f32 %v1608, %v1616
    %v1619 = vadd.f32 %v1609, %v1617
    %v1620 = vmul.f32 %v1615, %v822
    %v1621 = vadd.f32 %v1611, %v1620
    %s1622 = sld [smem:[#allocation3 + $0x5a]]
    %v1623 = vld [vmem:[#allocation2 + $0x10] sm:$0xc]
    %v1624 = vld [vmem:[#allocation2 + $0x18] sm:$0xc]
    %v1625 = vstv %s1622
    %v1626 = vmul.f32 %v1625, %v1623
    %v1627 = vmul.f32 %v1625, %v1624
    %v1630 = vrot.slane %v1626, 2
    %v1631 = vrot.slane %v1627, 2
    %v1634 = vadd.f32 %v1618, %v1630
    %v1635 = vadd.f32 %v1619, %v1631
    %v1636 = vmul.f32 %v1625, %v983
    %v1637 = vadd.f32 %v1621, %v1636
    %s1638 = sld [smem:[#allocation3 + $0x62]]
    %v1639 = vld [vmem:[#allocation2 + $0x10] sm:$0x30]
    %v1640 = vld [vmem:[#allocation2 + $0x18] sm:$0x30]
    %v1641 = vstv %s1638
    %v1642 = vmul.f32 %v1641, %v1639
    %v1643 = vmul.f32 %v1641, %v1640
    %v1646 = vrot.slane %v1642, 4
    %v1647 = vrot.slane %v1643, 4
    %v1650 = vadd.f32 %v1634, %v1646
    %v1651 = vadd.f32 %v1635, %v1647
    %v1652 = vmul.f32 %v1641, %v1144
    %v1653 = vadd.f32 %v1637, %v1652
    %s1654 = sld [smem:[#allocation3 + $0x6a]]
    %v1655 = vld [vmem:[#allocation2 + $0x10] sm:$0xc0]
    %v1656 = vld [vmem:[#allocation2 + $0x18] sm:$0xc0]
    %v1657 = vstv %s1654
    %v1658 = vmul.f32 %v1657, %v1655
    %v1659 = vmul.f32 %v1657, %v1656
    %v1662 = vrot.slane %v1658, 6
    %v1663 = vrot.slane %v1659, 6
    %v1666 = vadd.f32 %v1650, %v1662
    %v1667 = vadd.f32 %v1651, %v1663
    %v1668 = vmul.f32 %v1657, %v1305
    %v1669 = vadd.f32 %v1653, %v1668
    %v1670 = vstv %s1556
    %v1671 = vadd.f32 %v1666, %v1670
    %v1672 = vadd.f32 %v1667, %v1670
    %v1675 = vrot.slane %v1671, 4
    %v1676 = vrot.slane %v1672, 4
    %1679 = vst [vmem:[%s3] sm:$0x30] %v1675
    %1680 = vst [vmem:[%s3 + $0x8] sm:$0x30] %v1676
    %v1681 = vadd.f32 %v1669, %v1670
    %vm1682 = vcmask 17424
    %1683 = vst.msk [vmem:[%s4] sm:$0x3] %vm1682, %v1681
    %s1684 = sld [smem:[#allocation3 + $0x83]]
    %s1685 = sld [smem:[#allocation3 + $0x33]]
    %v1686 = vld [vmem:[#allocation2] sm:$0x3]
    %v1687 = vld [vmem:[#allocation2 + $0x8] sm:$0x3]
    %v1688 = vstv %s1685
    %v1689 = vmul.f32 %v1688, %v1686
    %v1690 = vmul.f32 %v1688, %v1687
    %v1691 = vmul.f32 %v1688, %v184
    %s1692 = sld [smem:[#allocation3 + $0x3b]]
    %v1693 = vld [vmem:[#allocation2] sm:$0xc]
    %v1694 = vld [vmem:[#allocation2 + $0x8] sm:$0xc]
    %v1695 = vstv %s1692
    %v1696 = vmul.f32 %v1695, %v1693
    %v1697 = vmul.f32 %v1695, %v1694
    %v1700 = vrot.slane %v1696, 2
    %v1701 = vrot.slane %v1697, 2
    %v1704 = vadd.f32 %v1689, %v1700
    %v1705 = vadd.f32 %v1690, %v1701
    %v1706 = vmul.f32 %v1695, %v345
    %v1707 = vadd.f32 %v1691, %v1706
    %s1708 = sld [smem:[#allocation3 + $0x43]]
    %v1709 = vld [vmem:[#allocation2] sm:$0x30]
    %v1710 = vld [vmem:[#allocation2 + $0x8] sm:$0x30]
    %v1711 = vstv %s1708
    %v1712 = vmul.f32 %v1711, %v1709
    %v1713 = vmul.f32 %v1711, %v1710
    %v1716 = vrot.slane %v1712, 4
    %v1717 = vrot.slane %v1713, 4
    %v1720 = vadd.f32 %v1704, %v1716
    %v1721 = vadd.f32 %v1705, %v1717
    %v1722 = vmul.f32 %v1711, %v506
    %v1723 = vadd.f32 %v1707, %v1722
    %s1724 = sld [smem:[#allocation3 + $0x4b]]
    %v1725 = vld [vmem:[#allocation2] sm:$0xc0]
    %v1726 = vld [vmem:[#allocation2 + $0x8] sm:$0xc0]
    %v1727 = vstv %s1724
    %v1728 = vmul.f32 %v1727, %v1725
    %v1729 = vmul.f32 %v1727, %v1726
    %v1732 = vrot.slane %v1728, 6
    %v1733 = vrot.slane %v1729, 6
    %v1736 = vadd.f32 %v1720, %v1732
    %v1737 = vadd.f32 %v1721, %v1733
    %v1738 = vmul.f32 %v1727, %v667
    %v1739 = vadd.f32 %v1723, %v1738
    %s1740 = sld [smem:[#allocation3 + $0x53]]
    %v1741 = vld [vmem:[#allocation2 + $0x10] sm:$0x3]
    %v1742 = vld [vmem:[#allocation2 + $0x18] sm:$0x3]
    %v1743 = vstv %s1740
    %v1744 = vmul.f32 %v1743, %v1741
    %v1745 = vmul.f32 %v1743, %v1742
    %v1746 = vadd.f32 %v1736, %v1744
    %v1747 = vadd.f32 %v1737, %v1745
    %v1748 = vmul.f32 %v1743, %v822
    %v1749 = vadd.f32 %v1739, %v1748
    %s1750 = sld [smem:[#allocation3 + $0x5b]]
    %v1751 = vld [vmem:[#allocation2 + $0x10] sm:$0xc]
    %v1752 = vld [vmem:[#allocation2 + $0x18] sm:$0xc]
    %v1753 = vstv %s1750
    %v1754 = vmul.f32 %v1753, %v1751
    %v1755 = vmul.f32 %v1753, %v1752
    %v1758 = vrot.slane %v1754, 2
    %v1759 = vrot.slane %v1755, 2
    %v1762 = vadd.f32 %v1746, %v1758
    %v1763 = vadd.f32 %v1747, %v1759
    %v1764 = vmul.f32 %v1753, %v983
    %v1765 = vadd.f32 %v1749, %v1764
    %s1766 = sld [smem:[#allocation3 + $0x63]]
    %v1767 = vld [vmem:[#allocation2 + $0x10] sm:$0x30]
    %v1768 = vld [vmem:[#allocation2 + $0x18] sm:$0x30]
    %v1769 = vstv %s1766
    %v1770 = vmul.f32 %v1769, %v1767
    %v1771 = vmul.f32 %v1769, %v1768
    %v1774 = vrot.slane %v1770, 4
    %v1775 = vrot.slane %v1771, 4
    %v1778 = vadd.f32 %v1762, %v1774
    %v1779 = vadd.f32 %v1763, %v1775
    %v1780 = vmul.f32 %v1769, %v1144
    %v1781 = vadd.f32 %v1765, %v1780
    %s1782 = sld [smem:[#allocation3 + $0x6b]]
    %v1783 = vld [vmem:[#allocation2 + $0x10] sm:$0xc0]
    %v1784 = vld [vmem:[#allocation2 + $0x18] sm:$0xc0]
    %v1785 = vstv %s1782
    %v1786 = vmul.f32 %v1785, %v1783
    %v1787 = vmul.f32 %v1785, %v1784
    %v1790 = vrot.slane %v1786, 6
    %v1791 = vrot.slane %v1787, 6
    %v1794 = vadd.f32 %v1778, %v1790
    %v1795 = vadd.f32 %v1779, %v1791
    %v1796 = vmul.f32 %v1785, %v1305
    %v1797 = vadd.f32 %v1781, %v1796
    %v1798 = vstv %s1684
    %v1799 = vadd.f32 %v1794, %v1798
    %v1800 = vadd.f32 %v1795, %v1798
    %v1803 = vrot.slane %v1799, 2
    %v1804 = vrot.slane %v1800, 2
    %1807 = vst [vmem:[%s3] sm:$0xc0] %v1803
    %1808 = vst [vmem:[%s3 + $0x8] sm:$0xc0] %v1804
    %v1809 = vadd.f32 %v1797, %v1798
    %vm1810 = vcmask 25624
    %1811 = vst.msk [vmem:[%s4] sm:$0x3] %vm1810, %v1809
    %s1812 = sld [smem:[#allocation3 + $0x84]]
    %s1813 = sld [smem:[#allocation3 + $0x34]]
    %v1814 = vld [vmem:[#allocation2] sm:$0x3]
    %v1815 = vld [vmem:[#allocation2 + $0x8] sm:$0x3]
    %v1816 = vstv %s1813
    %v1817 = vmul.f32 %v1816, %v1814
    %v1818 = vmul.f32 %v1816, %v1815
    %v1819 = vmul.f32 %v1816, %v184
    %s1820 = sld [smem:[#allocation3 + $0x3c]]
    %v1821 = vld [vmem:[#allocation2] sm:$0xc]
    %v1822 = vld [vmem:[#allocation2 + $0x8] sm:$0xc]
    %v1823 = vstv %s1820
    %v1824 = vmul.f32 %v1823, %v1821
    %v1825 = vmul.f32 %v1823, %v1822
    %v1828 = vrot.slane %v1824, 2
    %v1829 = vrot.slane %v1825, 2
    %v1832 = vadd.f32 %v1817, %v1828
    %v1833 = vadd.f32 %v1818, %v1829
    %v1834 = vmul.f32 %v1823, %v345
    %v1835 = vadd.f32 %v1819, %v1834
    %s1836 = sld [smem:[#allocation3 + $0x44]]
    %v1837 = vld [vmem:[#allocation2] sm:$0x30]
    %v1838 = vld [vmem:[#allocation2 + $0x8] sm:$0x30]
    %v1839 = vstv %s1836
    %v1840 = vmul.f32 %v1839, %v1837
    %v1841 = vmul.f32 %v1839, %v1838
    %v1844 = vrot.slane %v1840, 4
    %v1845 = vrot.slane %v1841, 4
    %v1848 = vadd.f32 %v1832, %v1844
    %v1849 = vadd.f32 %v1833, %v1845
    %v1850 = vmul.f32 %v1839, %v506
    %v1851 = vadd.f32 %v1835, %v1850
    %s1852 = sld [smem:[#allocation3 + $0x4c]]
    %v1853 = vld [vmem:[#allocation2] sm:$0xc0]
    %v1854 = vld [vmem:[#allocation2 + $0x8] sm:$0xc0]
    %v1855 = vstv %s1852
    %v1856 = vmul.f32 %v1855, %v1853
    %v1857 = vmul.f32 %v1855, %v1854
    %v1860 = vrot.slane %v1856, 6
    %v1861 = vrot.slane %v1857, 6
    %v1864 = vadd.f32 %v1848, %v1860
    %v1865 = vadd.f32 %v1849, %v1861
    %v1866 = vmul.f32 %v1855, %v667
    %v1867 = vadd.f32 %v1851, %v1866
    %s1868 = sld [smem:[#allocation3 + $0x54]]
    %v1869 = vld [vmem:[#allocation2 + $0x10] sm:$0x3]
    %v1870 = vld [vmem:[#allocation2 + $0x18] sm:$0x3]
    %v1871 = vstv %s1868
    %v1872 = vmul.f32 %v1871, %v1869
    %v1873 = vmul.f32 %v1871, %v1870
    %v1874 = vadd.f32 %v1864, %v1872
    %v1875 = vadd.f32 %v1865, %v1873
    %v1876 = vmul.f32 %v1871, %v822
    %v1877 = vadd.f32 %v1867, %v1876
    %s1878 = sld [smem:[#allocation3 + $0x5c]]
    %v1879 = vld [vmem:[#allocation2 + $0x10] sm:$0xc]
    %v1880 = vld [vmem:[#allocation2 + $0x18] sm:$0xc]
    %v1881 = vstv %s1878
    %v1882 = vmul.f32 %v1881, %v1879
    %v1883 = vmul.f32 %v1881, %v1880
    %v1886 = vrot.slane %v1882, 2
    %v1887 = vrot.slane %v1883, 2
    %v1890 = vadd.f32 %v1874, %v1886
    %v1891 = vadd.f32 %v1875, %v1887
    %v1892 = vmul.f32 %v1881, %v983
    %v1893 = vadd.f32 %v1877, %v1892
    %s1894 = sld [smem:[#allocation3 + $0x64]]
    %v1895 = vld [vmem:[#allocation2 + $0x10] sm:$0x30]
    %v1896 = vld [vmem:[#allocation2 + $0x18] sm:$0x30]
    %v1897 = vstv %s1894
    %v1898 = vmul.f32 %v1897, %v1895
    %v1899 = vmul.f32 %v1897, %v1896
    %v1902 = vrot.slane %v1898, 4
    %v1903 = vrot.slane %v1899, 4
    %v1906 = vadd.f32 %v1890, %v1902
    %v1907 = vadd.f32 %v1891, %v1903
    %v1908 = vmul.f32 %v1897, %v1144
    %v1909 = vadd.f32 %v1893, %v1908
    %s1910 = sld [smem:[#allocation3 + $0x6c]]
    %v1911 = vld [vmem:[#allocation2 + $0x10] sm:$0xc0]
    %v1912 = vld [vmem:[#allocation2 + $0x18] sm:$0xc0]
    %v1913 = vstv %s1910
    %v1914 = vmul.f32 %v1913, %v1911
    %v1915 = vmul.f32 %v1913, %v1912
    %v1918 = vrot.slane %v1914, 6
    %v1919 = vrot.slane %v1915, 6
    %v1922 = vadd.f32 %v1906, %v1918
    %v1923 = vadd.f32 %v1907, %v1919
    %v1924 = vmul.f32 %v1913, %v1305
    %v1925 = vadd.f32 %v1909, %v1924
    %v1926 = vstv %s1812
    %v1927 = vadd.f32 %v1922, %v1926
    %v1928 = vadd.f32 %v1923, %v1926
    %1929 = vst [vmem:[%s3 + $0x10] sm:$0x3] %v1927
    %1930 = vst [vmem:[%s3 + $0x18] sm:$0x3] %v1928
    %v1931 = vadd.f32 %v1925, %v1926
    %vm1932 = vcmask 33824
    %1933 = vst.msk [vmem:[%s4] sm:$0x3] %vm1932, %v1931
    %s1934 = sld [smem:[#allocation3 + $0x85]]
    %s1935 = sld [smem:[#allocation3 + $0x35]]
    %v1936 = vld [vmem:[#allocation2] sm:$0x3]
    %v1937 = vld [vmem:[#allocation2 + $0x8] sm:$0x3]
    %v1938 = vstv %s1935
    %v1939 = vmul.f32 %v1938, %v1936
    %v1940 = vmul.f32 %v1938, %v1937
    %v1941 = vmul.f32 %v1938, %v184
    %s1942 = sld [smem:[#allocation3 + $0x3d]]
    %v1943 = vld [vmem:[#allocation2] sm:$0xc]
    %v1944 = vld [vmem:[#allocation2 + $0x8] sm:$0xc]
    %v1945 = vstv %s1942
    %v1946 = vmul.f32 %v1945, %v1943
    %v1947 = vmul.f32 %v1945, %v1944
    %v1950 = vrot.slane %v1946, 2
    %v1951 = vrot.slane %v1947, 2
    %v1954 = vadd.f32 %v1939, %v1950
    %v1955 = vadd.f32 %v1940, %v1951
    %v1956 = vmul.f32 %v1945, %v345
    %v1957 = vadd.f32 %v1941, %v1956
    %s1958 = sld [smem:[#allocation3 + $0x45]]
    %v1959 = vld [vmem:[#allocation2] sm:$0x30]
    %v1960 = vld [vmem:[#allocation2 + $0x8] sm:$0x30]
    %v1961 = vstv %s1958
    %v1962 = vmul.f32 %v1961, %v1959
    %v1963 = vmul.f32 %v1961, %v1960
    %v1966 = vrot.slane %v1962, 4
    %v1967 = vrot.slane %v1963, 4
    %v1970 = vadd.f32 %v1954, %v1966
    %v1971 = vadd.f32 %v1955, %v1967
    %v1972 = vmul.f32 %v1961, %v506
    %v1973 = vadd.f32 %v1957, %v1972
    %s1974 = sld [smem:[#allocation3 + $0x4d]]
    %v1975 = vld [vmem:[#allocation2] sm:$0xc0]
    %v1976 = vld [vmem:[#allocation2 + $0x8] sm:$0xc0]
    %v1977 = vstv %s1974
    %v1978 = vmul.f32 %v1977, %v1975
    %v1979 = vmul.f32 %v1977, %v1976
    %v1982 = vrot.slane %v1978, 6
    %v1983 = vrot.slane %v1979, 6
    %v1986 = vadd.f32 %v1970, %v1982
    %v1987 = vadd.f32 %v1971, %v1983
    %v1988 = vmul.f32 %v1977, %v667
    %v1989 = vadd.f32 %v1973, %v1988
    %s1990 = sld [smem:[#allocation3 + $0x55]]
    %v1991 = vld [vmem:[#allocation2 + $0x10] sm:$0x3]
    %v1992 = vld [vmem:[#allocation2 + $0x18] sm:$0x3]
    %v1993 = vstv %s1990
    %v1994 = vmul.f32 %v1993, %v1991
    %v1995 = vmul.f32 %v1993, %v1992
    %v1996 = vadd.f32 %v1986, %v1994
    %v1997 = vadd.f32 %v1987, %v1995
    %v1998 = vmul.f32 %v1993, %v822
    %v1999 = vadd.f32 %v1989, %v1998
    %s2000 = sld [smem:[#allocation3 + $0x5d]]
    %v2001 = vld [vmem:[#allocation2 + $0x10] sm:$0xc]
    %v2002 = vld [vmem:[#allocation2 + $0x18] sm:$0xc]
    %v2003 = vstv %s2000
    %v2004 = vmul.f32 %v2003, %v2001
    %v2005 = vmul.f32 %v2003, %v2002
    %v2008 = vrot.slane %v2004, 2
    %v2009 = vrot.slane %v2005, 2
    %v2012 = vadd.f32 %v1996, %v2008
    %v2013 = vadd.f32 %v1997, %v2009
    %v2014 = vmul.f32 %v2003, %v983
    %v2015 = vadd.f32 %v1999, %v2014
    %s2016 = sld [smem:[#allocation3 + $0x65]]
    %v2017 = vld [vmem:[#allocation2 + $0x10] sm:$0x30]
    %v2018 = vld [vmem:[#allocation2 + $0x18] sm:$0x30]
    %v2019 = vstv %s2016
    %v2020 = vmul.f32 %v2019, %v2017
    %v2021 = vmul.f32 %v2019, %v2018
    %v2024 = vrot.slane %v2020, 4
    %v2025 = vrot.slane %v2021, 4
    %v2028 = vadd.f32 %v2012, %v2024
    %v2029 = vadd.f32 %v2013, %v2025
    %v2030 = vmul.f32 %v2019, %v1144
    %v2031 = vadd.f32 %v2015, %v2030
    %s2032 = sld [smem:[#allocation3 + $0x6d]]
    %v2033 = vld [vmem:[#allocation2 + $0x10] sm:$0xc0]
    %v2034 = vld [vmem:[#allocation2 + $0x18] sm:$0xc0]
    %v2035 = vstv %s2032
    %v2036 = vmul.f32 %v2035, %v2033
    %v2037 = vmul.f32 %v2035, %v2034
    %v2040 = vrot.slane %v2036, 6
    %v2041 = vrot.slane %v2037, 6
    %v2044 = vadd.f32 %v2028, %v2040
    %v2045 = vadd.f32 %v2029, %v2041
    %v2046 = vmul.f32 %v2035, %v1305
    %v2047 = vadd.f32 %v2031, %v2046
    %v2048 = vstv %s1934
    %v2049 = vadd.f32 %v2044, %v2048
    %v2050 = vadd.f32 %v2045, %v2048
    %v2053 = vrot.slane %v2049, 6
    %v2054 = vrot.slane %v2050, 6
    %2057 = vst [vmem:[%s3 + $0x10] sm:$0xc] %v2053
    %2058 = vst [vmem:[%s3 + $0x18] sm:$0xc] %v2054
    %v2059 = vadd.f32 %v2047, %v2048
    %vm2060 = vcmask 42024
    %2061 = vst.msk [vmem:[%s4] sm:$0x3] %vm2060, %v2059
    %s2062 = sld [smem:[#allocation3 + $0x86]]
    %s2063 = sld [smem:[#allocation3 + $0x36]]
    %v2064 = vld [vmem:[#allocation2] sm:$0x3]
    %v2065 = vld [vmem:[#allocation2 + $0x8] sm:$0x3]
    %v2066 = vstv %s2063
    %v2067 = vmul.f32 %v2066, %v2064
    %v2068 = vmul.f32 %v2066, %v2065
    %v2069 = vmul.f32 %v2066, %v184
    %s2070 = sld [smem:[#allocation3 + $0x3e]]
    %v2071 = vld [vmem:[#allocation2] sm:$0xc]
    %v2072 = vld [vmem:[#allocation2 + $0x8] sm:$0xc]
    %v2073 = vstv %s2070
    %v2074 = vmul.f32 %v2073, %v2071
    %v2075 = vmul.f32 %v2073, %v2072
    %v2078 = vrot.slane %v2074, 2
    %v2079 = vrot.slane %v2075, 2
    %v2082 = vadd.f32 %v2067, %v2078
    %v2083 = vadd.f32 %v2068, %v2079
    %v2084 = vmul.f32 %v2073, %v345
    %v2085 = vadd.f32 %v2069, %v2084
    %s2086 = sld [smem:[#allocation3 + $0x46]]
    %v2087 = vld [vmem:[#allocation2] sm:$0x30]
    %v2088 = vld [vmem:[#allocation2 + $0x8] sm:$0x30]
    %v2089 = vstv %s2086
    %v2090 = vmul.f32 %v2089, %v2087
    %v2091 = vmul.f32 %v2089, %v2088
    %v2094 = vrot.slane %v2090, 4
    %v2095 = vrot.slane %v2091, 4
    %v2098 = vadd.f32 %v2082, %v2094
    %v2099 = vadd.f32 %v2083, %v2095
    %v2100 = vmul.f32 %v2089, %v506
    %v2101 = vadd.f32 %v2085, %v2100
    %s2102 = sld [smem:[#allocation3 + $0x4e]]
    %v2103 = vld [vmem:[#allocation2] sm:$0xc0]
    %v2104 = vld [vmem:[#allocation2 + $0x8] sm:$0xc0]
    %v2105 = vstv %s2102
    %v2106 = vmul.f32 %v2105, %v2103
    %v2107 = vmul.f32 %v2105, %v2104
    %v2110 = vrot.slane %v2106, 6
    %v2111 = vrot.slane %v2107, 6
    %v2114 = vadd.f32 %v2098, %v2110
    %v2115 = vadd.f32 %v2099, %v2111
    %v2116 = vmul.f32 %v2105, %v667
    %v2117 = vadd.f32 %v2101, %v2116
    %s2118 = sld [smem:[#allocation3 + $0x56]]
    %v2119 = vld [vmem:[#allocation2 + $0x10] sm:$0x3]
    %v2120 = vld [vmem:[#allocation2 + $0x18] sm:$0x3]
    %v2121 = vstv %s2118
    %v2122 = vmul.f32 %v2121, %v2119
    %v2123 = vmul.f32 %v2121, %v2120
    %v2124 = vadd.f32 %v2114, %v2122
    %v2125 = vadd.f32 %v2115, %v2123
    %v2126 = vmul.f32 %v2121, %v822
    %v2127 = vadd.f32 %v2117, %v2126
    %s2128 = sld [smem:[#allocation3 + $0x5e]]
    %v2129 = vld [vmem:[#allocation2 + $0x10] sm:$0xc]
    %v2130 = vld [vmem:[#allocation2 + $0x18] sm:$0xc]
    %v2131 = vstv %s2128
    %v2132 = vmul.f32 %v2131, %v2129
    %v2133 = vmul.f32 %v2131, %v2130
    %v2136 = vrot.slane %v2132, 2
    %v2137 = vrot.slane %v2133, 2
    %v2140 = vadd.f32 %v2124, %v2136
    %v2141 = vadd.f32 %v2125, %v2137
    %v2142 = vmul.f32 %v2131, %v983
    %v2143 = vadd.f32 %v2127, %v2142
    %s2144 = sld [smem:[#allocation3 + $0x66]]
    %v2145 = vld [vmem:[#allocation2 + $0x10] sm:$0x30]
    %v2146 = vld [vmem:[#allocation2 + $0x18] sm:$0x30]
    %v2147 = vstv %s2144
    %v2148 = vmul.f32 %v2147, %v2145
    %v2149 = vmul.f32 %v2147, %v2146
    %v2152 = vrot.slane %v2148, 4
    %v2153 = vrot.slane %v2149, 4
    %v2156 = vadd.f32 %v2140, %v2152
    %v2157 = vadd.f32 %v2141, %v2153
    %v2158 = vmul.f32 %v2147, %v1144
    %v2159 = vadd.f32 %v2143, %v2158
    %s2160 = sld [smem:[#allocation3 + $0x6e]]
    %v2161 = vld [vmem:[#allocation2 + $0x10] sm:$0xc0]
    %v2162 = vld [vmem:[#allocation2 + $0x18] sm:$0xc0]
    %v2163 = vstv %s2160
    %v2164 = vmul.f32 %v2163, %v2161
    %v2165 = vmul.f32 %v2163, %v2162
    %v2168 = vrot.slane %v2164, 6
    %v2169 = vrot.slane %v2165, 6
    %v2172 = vadd.f32 %v2156, %v2168
    %v2173 = vadd.f32 %v2157, %v2169
    %v2174 = vmul.f32 %v2163, %v1305
    %v2175 = vadd.f32 %v2159, %v2174
    %v2176 = vstv %s2062
    %v2177 = vadd.f32 %v2172, %v2176
    %v2178 = vadd.f32 %v2173, %v2176
    %v2181 = vrot.slane %v2177, 4
    %v2182 = vrot.slane %v2178, 4
    %2185 = vst [vmem:[%s3 + $0x10] sm:$0x30] %v2181
    %2186 = vst [vmem:[%s3 + $0x18] sm:$0x30] %v2182
    %v2187 = vadd.f32 %v2175, %v2176
    %vm2188 = vcmask 50224
    %2189 = vst.msk [vmem:[%s4] sm:$0x3] %vm2188, %v2187
    %s2190 = sld [smem:[#allocation3 + $0x87]]
    %s2191 = sld [smem:[#allocation3 + $0x37]]
    %v2192 = vld [vmem:[#allocation2] sm:$0x3]
    %v2193 = vld [vmem:[#allocation2 + $0x8] sm:$0x3]
    %v2194 = vstv %s2191
    %v2195 = vmul.f32 %v2194, %v2192
    %v2196 = vmul.f32 %v2194, %v2193
    %v2197 = vmul.f32 %v2194, %v184
    %s2198 = sld [smem:[#allocation3 + $0x3f]]
    %v2199 = vld [vmem:[#allocation2] sm:$0xc]
    %v2200 = vld [vmem:[#allocation2 + $0x8] sm:$0xc]
    %v2201 = vstv %s2198
    %v2202 = vmul.f32 %v2201, %v2199
    %v2203 = vmul.f32 %v2201, %v2200
    %v2206 = vrot.slane %v2202, 2
    %v2207 = vrot.slane %v2203, 2
    %v2210 = vadd.f32 %v2195, %v2206
    %v2211 = vadd.f32 %v2196, %v2207
    %v2212 = vmul.f32 %v2201, %v345
    %v2213 = vadd.f32 %v2197, %v2212
    %s2214 = sld [smem:[#allocation3 + $0x47]]
    %v2215 = vld [vmem:[#allocation2] sm:$0x30]
    %v2216 = vld [vmem:[#allocation2 + $0x8] sm:$0x30]
    %v2217 = vstv %s2214
    %v2218 = vmul.f32 %v2217, %v2215
    %v2219 = vmul.f32 %v2217, %v2216
    %v2222 = vrot.slane %v2218, 4
    %v2223 = vrot.slane %v2219, 4
    %v2226 = vadd.f32 %v2210, %v2222
    %v2227 = vadd.f32 %v2211, %v2223
    %v2228 = vmul.f32 %v2217, %v506
    %v2229 = vadd.f32 %v2213, %v2228
    %s2230 = sld [smem:[#allocation3 + $0x4f]]
    %v2231 = vld [vmem:[#allocation2] sm:$0xc0]
    %v2232 = vld [vmem:[#allocation2 + $0x8] sm:$0xc0]
    %v2233 = vstv %s2230
    %v2234 = vmul.f32 %v2233, %v2231
    %v2235 = vmul.f32 %v2233, %v2232
    %v2238 = vrot.slane %v2234, 6
    %v2239 = vrot.slane %v2235, 6
    %v2242 = vadd.f32 %v2226, %v2238
    %v2243 = vadd.f32 %v2227, %v2239
    %v2244 = vmul.f32 %v2233, %v667
    %v2245 = vadd.f32 %v2229, %v2244
    %s2246 = sld [smem:[#allocation3 + $0x57]]
    %v2247 = vld [vmem:[#allocation2 + $0x10] sm:$0x3]
    %v2248 = vld [vmem:[#allocation2 + $0x18] sm:$0x3]
    %v2249 = vstv %s2246
    %v2250 = vmul.f32 %v2249, %v2247
    %v2251 = vmul.f32 %v2249, %v2248
    %v2252 = vadd.f32 %v2242, %v2250
    %v2253 = vadd.f32 %v2243, %v2251
    %v2254 = vmul.f32 %v2249, %v822
    %v2255 = vadd.f32 %v2245, %v2254
    %s2256 = sld [smem:[#allocation3 + $0x5f]]
    %v2257 = vld [vmem:[#allocation2 + $0x10] sm:$0xc]
    %v2258 = vld [vmem:[#allocation2 + $0x18] sm:$0xc]
    %v2259 = vstv %s2256
    %v2260 = vmul.f32 %v2259, %v2257
    %v2261 = vmul.f32 %v2259, %v2258
    %v2264 = vrot.slane %v2260, 2
    %v2265 = vrot.slane %v2261, 2
    %v2268 = vadd.f32 %v2252, %v2264
    %v2269 = vadd.f32 %v2253, %v2265
    %v2270 = vmul.f32 %v2259, %v983
    %v2271 = vadd.f32 %v2255, %v2270
    %s2272 = sld [smem:[#allocation3 + $0x67]]
    %v2273 = vld [vmem:[#allocation2 + $0x10] sm:$0x30]
    %v2274 = vld [vmem:[#allocation2 + $0x18] sm:$0x30]
    %v2275 = vstv %s2272
    %v2276 = vmul.f32 %v2275, %v2273
    %v2277 = vmul.f32 %v2275, %v2274
    %v2280 = vrot.slane %v2276, 4
    %v2281 = vrot.slane %v2277, 4
    %v2284 = vadd.f32 %v2268, %v2280
    %v2285 = vadd.f32 %v2269, %v2281
    %v2286 = vmul.f32 %v2275, %v1144
    %v2287 = vadd.f32 %v2271, %v2286
    %s2288 = sld [smem:[#allocation3 + $0x6f]]
    %v2289 = vld [vmem:[#allocation2 + $0x10] sm:$0xc0]
    %v2290 = vld [vmem:[#allocation2 + $0x18] sm:$0xc0]
    %v2291 = vstv %s2288
    %v2292 = vmul.f32 %v2291, %v2289
    %v2293 = vmul.f32 %v2291, %v2290
    %v2296 = vrot.slane %v2292, 6
    %v2297 = vrot.slane %v2293, 6
    %v2300 = vadd.f32 %v2284, %v2296
    %v2301 = vadd.f32 %v2285, %v2297
    %v2302 = vmul.f32 %v2291, %v1305
    %v2303 = vadd.f32 %v2287, %v2302
    %v2304 = vstv %s2190
    %v2305 = vadd.f32 %v2300, %v2304
    %v2306 = vadd.f32 %v2301, %v2304
    %v2309 = vrot.slane %v2305, 2
    %v2310 = vrot.slane %v2306, 2
    %2313 = vst [vmem:[%s3 + $0x10] sm:$0xc0] %v2309
    %2314 = vst [vmem:[%s3 + $0x18] sm:$0xc0] %v2310
    %v2315 = vadd.f32 %v2303, %v2304
    %vm2316 = vcmask 58424
    %2317 = vst.msk [vmem:[%s4] sm:$0x3] %vm2316, %v2315
    // Predicated region
    $region18: #{model_forward.1} parent=1 // pred_check
      _
    $region19: #{model_forward.1} parent=1 // pred_check_branch
      %2319 = sbr.rel (0) target = $region21
    $region20: #{model_forward.1} parent=1 // pred_region
      _
    $region21: #{model_forward.1} parent=1 // pred_fallthru
      _
    // Predicated region
    $region22: #{model_forward.1} parent=1 // pred_check
      _
    $region23: #{model_forward.1} parent=1 // pred_check_branch
      %2321 = sbr.rel (0) target = $region25
    $region24: #{model_forward.1} parent=1 // pred_region
      _
    $region25: #{model_forward.1} parent=1 // pred_fallthru
      _
    // Predicated region
    $region26: #{model_forward.1} parent=1 // pred_check
      _
    $region27: #{model_forward.1} parent=1 // pred_check_branch
      %2323 = sbr.rel (0) target = $region29
    $region28: #{model_forward.1} parent=1 // pred_region
      _
    $region29: #{model_forward.1} parent=1 // pred_fallthru
      _
    // Predicated region
    $region30: #{model_forward.1} parent=1 // pred_check
      _
    $region31: #{model_forward.1} parent=1 // pred_check_branch
      %2325 = sbr.rel (0) target = $region33
    $region32: #{model_forward.1} parent=1 // pred_region
      _
    $region33: #{model_forward.1} parent=1 // pred_fallthru
      _
    %2326 = vsyncpa [#allocation4], 1

</llo_original>
